<compile_context>
chip_gen: v6e
topology: v6e:2x2x1
jax: 0.10.0
libtpu: 0.0.40
codegen_flags: <defaults>
</compile_context>

<pallas_src>
from collections import OrderedDict
import functools

import jax
import jax.numpy as jnp
import numpy as np
from jax.experimental import pallas as pl
from jax.experimental.pallas import tpu as pltpu

NUM_CLASS = 45
TASKS = ("jmap", "jdir", "lmap", "joff", "ldir", "dpth", "jdep")
LOSS_WEIGHT = {"jmap": 1.0, "jdir": 1.0, "lmap": 5.0, "joff": 0.5,
               "ldir": 1.0, "dpth": 1.0, "jdep": 0.1}
_NUM_TASKS = len(TASKS)   # 7
_OUT_ROWS = 8             # loss output padded to a full (8, 128) tile


# ---------------------------------------------------------------------------
# Fused Pallas kernel: 1x1-conv head + all per-task losses, one batch / step
# ---------------------------------------------------------------------------
def _fused_kernel(output_pred, x_ref, wt_ref, b_ref, tjmap_ref, tjdir_ref,
                  tlmap_ref, tjoff_ref, tldir_ref, tdpth_ref, tjdep_ref,
                  *out_refs):
    """Per grid step (one batch element):
       x_ref  : (Kp, P)  zero-padded input pixels (channel, pixel-lane)
       wt_ref : (45, Kp) transposed 1x1-conv weight
       b_ref  : (45, 1)  bias
       t*_ref : (nch, P) targets
       out    : loss_ref (8, 128) [+ pred_ref (45, P) if output_pred]
    """
    loss_ref = out_refs[0]
    Kp, P = x_ref.shape

    x = x_ref[...]            # (Kp, P)
    wt = wt_ref[...]          # (45, Kp)

    # ---- 1x1 conv head: pred[c, p] = sum_k w[k, c] * x[k, p] + b[c] --------
    pred = jnp.broadcast_to(b_ref[...], (NUM_CLASS, P))
    for k in range(Kp):       # Kp <= 8, fully unrolled exact-f32 FMA chain
        pred = pred + wt[:, k:k + 1] * x[k:k + 1, :]

    if output_pred:
        out_refs[1][...] = pred

    # ---- per-task losses ----------------------------------------------------
    tjmap = tjmap_ref[...]    # (2, P)
    tjdir = tjdir_ref[...]    # (16, P)
    tlmap = tlmap_ref[...]    # (1, P)
    tjoff = tjoff_ref[...]    # (4, P)
    tldir = tldir_ref[...]    # (1, P)
    tdpth = tdpth_ref[...]    # (1, P)
    tjdep = tjdep_ref[...]    # (2, P)

    def rmean(v):             # (1, P) -> (1, 1)   (== .mean(2).mean(1))
        return jnp.mean(v, axis=1, keepdims=True)

    def row(c):               # (1, P) channel slice of pred
        return pred[c:c + 1, :]

    def ce(c0, pos):
        # binary CE over channels (c0, c0+1) via the softplus identity:
        #   pos*nlogp1 + (1-pos)*nlogp0 = softplus(d) - pos*d,  d = l1 - l0
        # with the stable softplus form max(d, 0) + log(1 + exp(-|d|)).
        d = row(c0 + 1) - row(c0)
        sp = jnp.maximum(d, 0.0) + jnp.log(1.0 + jnp.exp(-jnp.abs(d)))
        return rmean(sp - pos * d)

    # hoisted mask-mean normalizers (shared by joff and jdep masked-L2 terms)
    inv_w = []
    for i in range(2):
        wgt = rmean(tjmap[i:i + 1])
        wgt = jnp.where(wgt == 0.0, jnp.ones_like(wgt), wgt)
        inv_w.append(1.0 / wgt)

    L_jmap = ce(0, tjmap[0:1]) + ce(2, tjmap[1:2])
    L_jdir = sum(ce(4 + 16 * i + 2 * j, tjdir[8 * i + j:8 * i + j + 1])
                 for i in range(2) for j in range(8))
    L_lmap = rmean((tlmap - row(36)) ** 2)
    L_joff = sum(rmean((tjoff[2 * i + j:2 * i + j + 1]
                        - row(37 + 2 * i + j)) ** 2 * tjmap[i:i + 1]) * inv_w[i]
                 for i in range(2) for j in range(2))
    L_ldir = rmean(jnp.sin(row(41) - tldir) ** 2)
    L_dpth = rmean((tdpth - row(42)) ** 2)
    L_jdep = sum(rmean((tjdep[i:i + 1] - row(43 + i)) ** 2 * tjmap[i:i + 1])
                 * inv_w[i]
                 for i in range(2))

    weighted = (L_jmap * LOSS_WEIGHT["jmap"],
                L_jdir * LOSS_WEIGHT["jdir"],
                L_lmap * LOSS_WEIGHT["lmap"],
                L_joff * LOSS_WEIGHT["joff"],
                L_ldir * LOSS_WEIGHT["ldir"],
                L_dpth * LOSS_WEIGHT["dpth"],
                L_jdep * LOSS_WEIGHT["jdep"])

    for k, Lk in enumerate(weighted):
        loss_ref[k:k + 1, :] = jnp.broadcast_to(Lk, (1, 128))
    # keep the padded row deterministic
    loss_ref[_NUM_TASKS:_OUT_ROWS, :] = jnp.broadcast_to(
        jnp.zeros_like(weighted[0]), (_OUT_ROWS - _NUM_TASKS, 128))


def _build_fused_call(B, P, Kp, output_pred):
    def pb(nch):   # per-batch block, leading batch dim squeezed away
        return pl.BlockSpec((None, nch, P), lambda b: (b, 0, 0))

    in_specs = [
        pb(Kp),                                           # x  (B, Kp, P)
        pl.BlockSpec((NUM_CLASS, Kp), lambda b: (0, 0)),  # w^T (45, Kp)
        pl.BlockSpec((NUM_CLASS, 1), lambda b: (0, 0)),   # bias (45, 1)
        pb(2),                                            # jmap target
        pb(16),                                           # jdir target
        pb(1),                                            # lmap target
        pb(4),                                            # joff target
        pb(1),                                            # ldir target
        pb(1),                                            # dpth target
        pb(2),                                            # jdep target
    ]
    loss_spec = pl.BlockSpec((None, _OUT_ROWS, 128), lambda b: (b, 0, 0))
    loss_shape = jax.ShapeDtypeStruct((B, _OUT_ROWS, 128), jnp.float32)
    if output_pred:
        out_shape = (loss_shape,
                     jax.ShapeDtypeStruct((B, NUM_CLASS, P), jnp.float32))
        out_specs = (loss_spec, pb(NUM_CLASS))
    else:
        out_shape = loss_shape
        out_specs = loss_spec

    return pl.pallas_call(
        functools.partial(_fused_kernel, output_pred),
        out_shape=out_shape,
        grid=(B,),
        in_specs=in_specs,
        out_specs=out_specs,
        compiler_params=pltpu.CompilerParams(
            dimension_semantics=("parallel",),
            vmem_limit_bytes=64 * 1024 * 1024),
    )


# ---------------------------------------------------------------------------
# Plain-JAX glue: heatmaps (softmax / permutes only) and the full forward
# ---------------------------------------------------------------------------
def make_heatmaps(pred):  # pred: (45, B, H, W)
    C, B, H, W = pred.shape
    jmap = pred[0:4].reshape(2, 2, B, H, W)
    jdir = pred[4:36].reshape(2, 8, 2, B, H, W)
    joff = pred[37:41].reshape(2, 2, B, H, W)
    jdep = pred[43:45]
    return {
        "jmap": jax.nn.softmax(jnp.transpose(jmap, (2, 0, 1, 3, 4)),
                               axis=2)[:, :, 1],
        "jdir": jax.nn.softmax(jnp.transpose(jdir, (3, 0, 1, 2, 4, 5)),
                               axis=3)[:, :, :, 1],
        "lmap": pred[36],
        "joff": jnp.transpose(joff, (2, 0, 1, 3, 4)),
        "ldir": pred[41],
        "dpth": pred[42],
        "jdep": jnp.swapaxes(jdep, 0, 1),
    }


def multitask_forward(input_dict, params):
    data = jnp.asarray(input_dict["data"], jnp.float32)   # (B, Cin, H, W)
    T = input_dict["target"]
    B, Cin, H, W = data.shape
    P = H * W
    Kp = max(8, -(-Cin // 8) * 8)

    # pixels flattened into the lane dim; only a free reshape + tiny pad
    x = data.reshape(B, Cin, P)
    if Kp != Cin:
        x = jnp.pad(x, ((0, 0), (0, Kp - Cin), (0, 0)))

    def tprep(name, nch):
        return jnp.asarray(T[name], jnp.float32).reshape(B, nch, P)

    tjmap = tprep("jmap", 2)
    tjdir = tprep("jdir", 16)     # (B, 2, 8, H, W) -> channel 8*i + j
    tlmap = tprep("lmap", 1)
    tjoff = tprep("joff", 4)      # (B, 2, 2, H, W) -> channel 2*i + j
    tldir = tprep("ldir", 1)
    tdpth = tprep("dpth", 1)
    tjdep = tprep("jdep", 2)

    output_heatmap = bool(input_dict["output_heatmap"])
    losses = []
    heatmaps = None
    for stack, (w, b) in enumerate(params):
        wt = jnp.pad(jnp.asarray(w, jnp.float32),
                     ((0, Kp - Cin), (0, 0))).T             # (45, Kp)
        bias = jnp.asarray(b, jnp.float32).reshape(NUM_CLASS, 1)
        want_pred = output_heatmap and stack == 0
        call = _build_fused_call(B, P, Kp, want_pred)
        out = call(x, wt, bias, tjmap, tjdir, tlmap, tjoff, tldir, tdpth, tjdep)
        if want_pred:
            loss_out, pred_out = out                         # pred: (B, 45, P)
            pred_cbhw = jnp.transpose(pred_out, (1, 0, 2)).reshape(
                NUM_CLASS, B, H, W)
            heatmaps = make_heatmaps(pred_cbhw)
        else:
            loss_out = out
        loss_mat = loss_out[:, :_NUM_TASKS, 0]               # (B, 7)
        losses.append(OrderedDict(
            (t, loss_mat[:, k]) for k, t in enumerate(TASKS)))
    # TODO(synk): for many stacks, fold the stack loop into a grid axis so the
    # targets stay resident in VMEM instead of being re-fetched per call.
    if output_heatmap:
        return {"heatmaps": heatmaps, "losses": losses}
    return {"losses": losses}


# ---------------------------------------------------------------------------
# Pure-JAX reference (mirrors the PyTorch code) for verification
# ---------------------------------------------------------------------------
def _ref_losses(pred, T):
    C, B, H, W = pred.shape
    jmap = pred[0:4].reshape(2, 2, B, H, W)
    jdir = pred[4:36].reshape(2, 8, 2, B, H, W)
    lmap = pred[36]
    joff = pred[37:41].reshape(2, 2, B, H, W)
    ldir = pred[41]
    dpth = pred[42]
    jdep = pred[43:45]

    def ce(logits, pos):
        nlogp = -jax.nn.log_softmax(logits, axis=0)
        return (pos * nlogp[1] + (1 - pos) * nlogp[0]).mean(axis=2).mean(axis=1)

    def l2(x, t):
        return ((t - x) ** 2).mean(axis=2).mean(axis=1)

    def ml2(x, t, m):
        wgt = m.mean(axis=2, keepdims=True).mean(axis=1, keepdims=True)
        wgt = jnp.where(wgt == 0, 1.0, wgt)
        return ((t - x) ** 2 * (m / wgt)).mean(axis=2).mean(axis=1)

    def sine(x, t):
        return (jnp.sin(x - t) ** 2).mean(axis=2).mean(axis=1)

    L = OrderedDict()
    L["jmap"] = sum(ce(jmap[i], T["jmap"][i]) for i in range(2))
    L["jdir"] = sum(ce(jdir[i, j], T["jdir"][i, j])
                    for i in range(2) for j in range(8))
    L["lmap"] = l2(lmap, T["lmap"])
    L["joff"] = sum(ml2(joff[i, j], T["joff"][i, j], T["jmap"][i])
                    for i in range(2) for j in range(2))
    L["ldir"] = sine(ldir, T["ldir"])
    L["dpth"] = l2(dpth, T["dpth"])
    L["jdep"] = sum(ml2(jdep[i], T["jdep"][i], T["jmap"][i]) for i in range(2))
    return OrderedDict((k, v * LOSS_WEIGHT[k]) for k, v in L.items())


def _ref_forward(input_dict, params):
    data = input_dict["data"]
    T = dict(input_dict["target"])
    for task in ["jmap", "jwgt", "jdep"]:
        T[task] = jnp.transpose(T[task], (1, 0, 2, 3))
    for task in ["joff", "jdir"]:
        T[task] = jnp.transpose(T[task], (1, 2, 0, 3, 4))
    losses = []
    for (w, b) in params:
        out = jnp.einsum("bchw,co->bohw", data, w,
                         precision=jax.lax.Precision.HIGHEST)
        out = out + b[None, :, None, None]
        pred = jnp.transpose(out, (1, 0, 2, 3))
        losses.append(_ref_losses(pred, T))
    return losses


# ---------------------------------------------------------------------------
if __name__ == "__main__":
    key = jax.random.PRNGKey(0)
    B, Cin, H, W = 2, 4, 16, 16
    NUM_STACKS = 2
    ks = jax.random.split(key, 16)

    data = jax.random.normal(ks[0], (B, Cin, H, W), jnp.float32)
    target = {
        "jmap": (jax.random.uniform(ks[1], (B, 2, H, W)) > 0.7).astype(jnp.float32),
        "jwgt": jax.random.uniform(ks[2], (B, 2, H, W), dtype=jnp.float32),
        "jdep": jax.random.uniform(ks[3], (B, 2, H, W), dtype=jnp.float32),
        "joff": jax.random.uniform(ks[4], (B, 2, 2, H, W), dtype=jnp.float32) - 0.5,
        "jdir": (jax.random.uniform(ks[5], (B, 2, 8, H, W)) > 0.8).astype(jnp.float32),
        "lmap": jax.random.uniform(ks[6], (B, H, W), dtype=jnp.float32),
        "ldir": jax.random.normal(ks[7], (B, H, W), jnp.float32),
        "dpth": jax.random.uniform(ks[8], (B, H, W), dtype=jnp.float32),
    }

    # deterministic synthetic backbone params: one 1x1-conv head per stack
    params = []
    for s in range(NUM_STACKS):
        w = 0.1 * jax.random.normal(ks[9 + s], (Cin, NUM_CLASS), jnp.float32)
        b = 0.01 * jax.random.normal(ks[11 + s], (NUM_CLASS,), jnp.float32)
        params.append((w, b))

    input_dict = {"data": data, "target": target, "output_heatmap": True}

    out = multitask_forward(input_dict, params)
    out = jax.block_until_ready(out)

    # verify against the pure-JAX reference
    ref = _ref_forward(input_dict, params)
    for s in range(NUM_STACKS):
        for t in TASKS:
            got = np.asarray(out["losses"][s][t])
            exp = np.asarray(ref[s][t])
            assert got.shape == (B,), (t, got.shape)
            np.testing.assert_allclose(got, exp, rtol=1e-3, atol=1e-4,
                                       err_msg=f"stack {s} task {t}")
    assert out["heatmaps"]["jmap"].shape == (B, 2, H, W)
    assert out["heatmaps"]["jdir"].shape == (B, 2, 8, H, W)

    print("KERNEL_OK")
</pallas_src>

<mosaic_0001>
module attributes {stable_mosaic.version = 11 : i64} {
  func.func @_fused_kernel(%arg0: i32, %arg1: memref<1x8x256xf32, #tpu.memory_space<vmem>>, %arg2: memref<45x8xf32, #tpu.memory_space<vmem>>, %arg3: memref<45x1xf32, #tpu.memory_space<vmem>>, %arg4: memref<1x2x256xf32, #tpu.memory_space<vmem>>, %arg5: memref<1x16x256xf32, #tpu.memory_space<vmem>>, %arg6: memref<1x1x256xf32, #tpu.memory_space<vmem>>, %arg7: memref<1x4x256xf32, #tpu.memory_space<vmem>>, %arg8: memref<1x1x256xf32, #tpu.memory_space<vmem>>, %arg9: memref<1x1x256xf32, #tpu.memory_space<vmem>>, %arg10: memref<1x2x256xf32, #tpu.memory_space<vmem>>, %arg11: memref<1x8x128xf32, #tpu.memory_space<vmem>>, %arg12: memref<1x45x256xf32, #tpu.memory_space<vmem>>) attributes {dimension_semantics = [#tpu.dimension_semantics<parallel>], iteration_bounds = array<i64: 2>, scalar_prefetch = 0 : i64, scratch_operands = 0 : i64, tpu.core_type = #tpu.core_type<tc>, window_params = [{transform_indices = @transform_0, window_bounds = array<i64: 1, 8, 256>}, {pipeline_mode = #tpu.pipeline_mode<synchronous>, transform_indices = @transform_1, window_bounds = array<i64: 45, 8>}, {pipeline_mode = #tpu.pipeline_mode<synchronous>, transform_indices = @transform_2, window_bounds = array<i64: 45, 1>}, {transform_indices = @transform_3, window_bounds = array<i64: 1, 2, 256>}, {transform_indices = @transform_4, window_bounds = array<i64: 1, 16, 256>}, {transform_indices = @transform_5, window_bounds = array<i64: 1, 1, 256>}, {transform_indices = @transform_6, window_bounds = array<i64: 1, 4, 256>}, {transform_indices = @transform_7, window_bounds = array<i64: 1, 1, 256>}, {transform_indices = @transform_8, window_bounds = array<i64: 1, 1, 256>}, {transform_indices = @transform_9, window_bounds = array<i64: 1, 2, 256>}, {transform_indices = @transform_10, window_bounds = array<i64: 1, 8, 128>}, {transform_indices = @transform_11, window_bounds = array<i64: 1, 45, 256>}]} {
    %c0 = arith.constant 0 : index
    %c0_0 = arith.constant 0 : index
    %c0_1 = arith.constant 0 : index
    %0 = vector.load %arg1[%c0, %c0_0, %c0_1] : memref<1x8x256xf32, #tpu.memory_space<vmem>>, vector<1x8x256xf32>
    %1 = vector.shape_cast %0 : vector<1x8x256xf32> to vector<8x256xf32>
    %c0_2 = arith.constant 0 : index
    %c0_3 = arith.constant 0 : index
    %2 = vector.load %arg2[%c0_2, %c0_3] : memref<45x8xf32, #tpu.memory_space<vmem>>, vector<45x8xf32>
    %c0_4 = arith.constant 0 : index
    %c0_5 = arith.constant 0 : index
    %3 = vector.load %arg3[%c0_4, %c0_5] : memref<45x1xf32, #tpu.memory_space<vmem>>, vector<45x1xf32>
    %4 = vector.shape_cast %3 : vector<45x1xf32> to vector<45x1xf32>
    %5 = vector.broadcast %4 : vector<45x1xf32> to vector<45x256xf32>
    %6 = vector.extract_strided_slice %2 {offsets = [0, 0], sizes = [45, 1], strides = [1, 1]} : vector<45x8xf32> to vector<45x1xf32>
    %7 = vector.extract_strided_slice %1 {offsets = [0, 0], sizes = [1, 256], strides = [1, 1]} : vector<8x256xf32> to vector<1x256xf32>
    %8 = vector.broadcast %6 : vector<45x1xf32> to vector<45x256xf32>
    %9 = vector.broadcast %7 : vector<1x256xf32> to vector<45x256xf32>
    %10 = arith.mulf %8, %9 : vector<45x256xf32>
    %11 = arith.addf %5, %10 : vector<45x256xf32>
    %12 = vector.extract_strided_slice %2 {offsets = [0, 1], sizes = [45, 1], strides = [1, 1]} : vector<45x8xf32> to vector<45x1xf32>
    %13 = vector.extract_strided_slice %1 {offsets = [1, 0], sizes = [1, 256], strides = [1, 1]} : vector<8x256xf32> to vector<1x256xf32>
    %14 = vector.broadcast %12 : vector<45x1xf32> to vector<45x256xf32>
    %15 = vector.broadcast %13 : vector<1x256xf32> to vector<45x256xf32>
    %16 = arith.mulf %14, %15 : vector<45x256xf32>
    %17 = arith.addf %11, %16 : vector<45x256xf32>
    %18 = vector.extract_strided_slice %2 {offsets = [0, 2], sizes = [45, 1], strides = [1, 1]} : vector<45x8xf32> to vector<45x1xf32>
    %19 = vector.extract_strided_slice %1 {offsets = [2, 0], sizes = [1, 256], strides = [1, 1]} : vector<8x256xf32> to vector<1x256xf32>
    %20 = vector.broadcast %18 : vector<45x1xf32> to vector<45x256xf32>
    %21 = vector.broadcast %19 : vector<1x256xf32> to vector<45x256xf32>
    %22 = arith.mulf %20, %21 : vector<45x256xf32>
    %23 = arith.addf %17, %22 : vector<45x256xf32>
    %24 = vector.extract_strided_slice %2 {offsets = [0, 3], sizes = [45, 1], strides = [1, 1]} : vector<45x8xf32> to vector<45x1xf32>
    %25 = vector.extract_strided_slice %1 {offsets = [3, 0], sizes = [1, 256], strides = [1, 1]} : vector<8x256xf32> to vector<1x256xf32>
    %26 = vector.broadcast %24 : vector<45x1xf32> to vector<45x256xf32>
    %27 = vector.broadcast %25 : vector<1x256xf32> to vector<45x256xf32>
    %28 = arith.mulf %26, %27 : vector<45x256xf32>
    %29 = arith.addf %23, %28 : vector<45x256xf32>
    %30 = vector.extract_strided_slice %2 {offsets = [0, 4], sizes = [45, 1], strides = [1, 1]} : vector<45x8xf32> to vector<45x1xf32>
    %31 = vector.extract_strided_slice %1 {offsets = [4, 0], sizes = [1, 256], strides = [1, 1]} : vector<8x256xf32> to vector<1x256xf32>
    %32 = vector.broadcast %30 : vector<45x1xf32> to vector<45x256xf32>
    %33 = vector.broadcast %31 : vector<1x256xf32> to vector<45x256xf32>
    %34 = arith.mulf %32, %33 : vector<45x256xf32>
    %35 = arith.addf %29, %34 : vector<45x256xf32>
    %36 = vector.extract_strided_slice %2 {offsets = [0, 5], sizes = [45, 1], strides = [1, 1]} : vector<45x8xf32> to vector<45x1xf32>
    %37 = vector.extract_strided_slice %1 {offsets = [5, 0], sizes = [1, 256], strides = [1, 1]} : vector<8x256xf32> to vector<1x256xf32>
    %38 = vector.broadcast %36 : vector<45x1xf32> to vector<45x256xf32>
    %39 = vector.broadcast %37 : vector<1x256xf32> to vector<45x256xf32>
    %40 = arith.mulf %38, %39 : vector<45x256xf32>
    %41 = arith.addf %35, %40 : vector<45x256xf32>
    %42 = vector.extract_strided_slice %2 {offsets = [0, 6], sizes = [45, 1], strides = [1, 1]} : vector<45x8xf32> to vector<45x1xf32>
    %43 = vector.extract_strided_slice %1 {offsets = [6, 0], sizes = [1, 256], strides = [1, 1]} : vector<8x256xf32> to vector<1x256xf32>
    %44 = vector.broadcast %42 : vector<45x1xf32> to vector<45x256xf32>
    %45 = vector.broadcast %43 : vector<1x256xf32> to vector<45x256xf32>
    %46 = arith.mulf %44, %45 : vector<45x256xf32>
    %47 = arith.addf %41, %46 : vector<45x256xf32>
    %48 = vector.extract_strided_slice %2 {offsets = [0, 7], sizes = [45, 1], strides = [1, 1]} : vector<45x8xf32> to vector<45x1xf32>
    %49 = vector.extract_strided_slice %1 {offsets = [7, 0], sizes = [1, 256], strides = [1, 1]} : vector<8x256xf32> to vector<1x256xf32>
    %50 = vector.broadcast %48 : vector<45x1xf32> to vector<45x256xf32>
    %51 = vector.broadcast %49 : vector<1x256xf32> to vector<45x256xf32>
    %52 = arith.mulf %50, %51 : vector<45x256xf32>
    %53 = arith.addf %47, %52 : vector<45x256xf32>
    %c0_6 = arith.constant 0 : index
    %c0_7 = arith.constant 0 : index
    %c0_8 = arith.constant 0 : index
    %54 = vector.load %arg12[%c0_6, %c0_7, %c0_8] : memref<1x45x256xf32, #tpu.memory_space<vmem>>, vector<1x45x256xf32>
    %55 = vector.shape_cast %54 : vector<1x45x256xf32> to vector<45x256xf32>
    %56 = vector.shape_cast %53 : vector<45x256xf32> to vector<1x45x256xf32>
    tpu.vector_store %arg12[%c0_6, %c0_7, %c0_8], %56 {strides = array<i32>} : memref<1x45x256xf32, #tpu.memory_space<vmem>>, vector<1x45x256xf32>,
    %c0_9 = arith.constant 0 : index
    %c0_10 = arith.constant 0 : index
    %c0_11 = arith.constant 0 : index
    %57 = vector.load %arg4[%c0_9, %c0_10, %c0_11] : memref<1x2x256xf32, #tpu.memory_space<vmem>>, vector<1x2x256xf32>
    %58 = vector.shape_cast %57 : vector<1x2x256xf32> to vector<2x256xf32>
    %c0_12 = arith.constant 0 : index
    %c0_13 = arith.constant 0 : index
    %c0_14 = arith.constant 0 : index
    %59 = vector.load %arg5[%c0_12, %c0_13, %c0_14] : memref<1x16x256xf32, #tpu.memory_space<vmem>>, vector<1x16x256xf32>
    %60 = vector.shape_cast %59 : vector<1x16x256xf32> to vector<16x256xf32>
    %c0_15 = arith.constant 0 : index
    %c0_16 = arith.constant 0 : index
    %c0_17 = arith.constant 0 : index
    %61 = vector.load %arg6[%c0_15, %c0_16, %c0_17] : memref<1x1x256xf32, #tpu.memory_space<vmem>>, vector<1x1x256xf32>
    %62 = vector.shape_cast %61 : vector<1x1x256xf32> to vector<1x256xf32>
    %c0_18 = arith.constant 0 : index
    %c0_19 = arith.constant 0 : index
    %c0_20 = arith.constant 0 : index
    %63 = vector.load %arg7[%c0_18, %c0_19, %c0_20] : memref<1x4x256xf32, #tpu.memory_space<vmem>>, vector<1x4x256xf32>
    %64 = vector.shape_cast %63 : vector<1x4x256xf32> to vector<4x256xf32>
    %c0_21 = arith.constant 0 : index
    %c0_22 = arith.constant 0 : index
    %c0_23 = arith.constant 0 : index
    %65 = vector.load %arg8[%c0_21, %c0_22, %c0_23] : memref<1x1x256xf32, #tpu.memory_space<vmem>>, vector<1x1x256xf32>
    %66 = vector.shape_cast %65 : vector<1x1x256xf32> to vector<1x256xf32>
    %c0_24 = arith.constant 0 : index
    %c0_25 = arith.constant 0 : index
    %c0_26 = arith.constant 0 : index
    %67 = vector.load %arg9[%c0_24, %c0_25, %c0_26] : memref<1x1x256xf32, #tpu.memory_space<vmem>>, vector<1x1x256xf32>
    %68 = vector.shape_cast %67 : vector<1x1x256xf32> to vector<1x256xf32>
    %c0_27 = arith.constant 0 : index
    %c0_28 = arith.constant 0 : index
    %c0_29 = arith.constant 0 : index
    %69 = vector.load %arg10[%c0_27, %c0_28, %c0_29] : memref<1x2x256xf32, #tpu.memory_space<vmem>>, vector<1x2x256xf32>
    %70 = vector.shape_cast %69 : vector<1x2x256xf32> to vector<2x256xf32>
    %71 = vector.extract_strided_slice %58 {offsets = [0, 0], sizes = [1, 256], strides = [1, 1]} : vector<2x256xf32> to vector<1x256xf32>
    %cst = arith.constant dense<0.000000e+00> : vector<1xf32>
    %72 = vector.multi_reduction <add>, %71, %cst [1] : vector<1x256xf32> to vector<1xf32>
    %73 = vector.shape_cast %72 : vector<1xf32> to vector<1x1xf32>
    %cst_30 = arith.constant 2.560000e+02 : f32
    %74 = vector.broadcast %cst_30 : f32 to vector<1x1xf32>
    %75 = arith.divf %73, %74 : vector<1x1xf32>
    %cst_31 = arith.constant 0.000000e+00 : f32
    %76 = vector.broadcast %cst_31 : f32 to vector<1x1xf32>
    %77 = arith.cmpf oeq, %75, %76 : vector<1x1xf32>
    %cst_32 = arith.constant 1.000000e+00 : f32
    %78 = vector.broadcast %cst_32 : f32 to vector<1x1xf32>
    %79 = arith.select %77, %78, %75 : vector<1x1xi1>, vector<1x1xf32>
    %cst_33 = arith.constant 1.000000e+00 : f32
    %80 = vector.broadcast %cst_33 : f32 to vector<1x1xf32>
    %81 = arith.divf %80, %79 : vector<1x1xf32>
    %82 = vector.extract_strided_slice %58 {offsets = [1, 0], sizes = [1, 256], strides = [1, 1]} : vector<2x256xf32> to vector<1x256xf32>
    %cst_34 = arith.constant dense<0.000000e+00> : vector<1xf32>
    %83 = vector.multi_reduction <add>, %82, %cst_34 [1] : vector<1x256xf32> to vector<1xf32>
    %84 = vector.shape_cast %83 : vector<1xf32> to vector<1x1xf32>
    %cst_35 = arith.constant 2.560000e+02 : f32
    %85 = vector.broadcast %cst_35 : f32 to vector<1x1xf32>
    %86 = arith.divf %84, %85 : vector<1x1xf32>
    %cst_36 = arith.constant 0.000000e+00 : f32
    %87 = vector.broadcast %cst_36 : f32 to vector<1x1xf32>
    %88 = arith.cmpf oeq, %86, %87 : vector<1x1xf32>
    %cst_37 = arith.constant 1.000000e+00 : f32
    %89 = vector.broadcast %cst_37 : f32 to vector<1x1xf32>
    %90 = arith.select %88, %89, %86 : vector<1x1xi1>, vector<1x1xf32>
    %cst_38 = arith.constant 1.000000e+00 : f32
    %91 = vector.broadcast %cst_38 : f32 to vector<1x1xf32>
    %92 = arith.divf %91, %90 : vector<1x1xf32>
    %93 = vector.extract_strided_slice %58 {offsets = [0, 0], sizes = [1, 256], strides = [1, 1]} : vector<2x256xf32> to vector<1x256xf32>
    %94 = vector.extract_strided_slice %53 {offsets = [1, 0], sizes = [1, 256], strides = [1, 1]} : vector<45x256xf32> to vector<1x256xf32>
    %95 = vector.extract_strided_slice %53 {offsets = [0, 0], sizes = [1, 256], strides = [1, 1]} : vector<45x256xf32> to vector<1x256xf32>
    %96 = arith.subf %94, %95 : vector<1x256xf32>
    %cst_39 = arith.constant 0.000000e+00 : f32
    %97 = vector.broadcast %cst_39 : f32 to vector<1x256xf32>
    %98 = arith.maximumf %96, %97 : vector<1x256xf32>
    %99 = math.absf %96 : vector<1x256xf32>
    %cst_40 = arith.constant 0.000000e+00 : f32
    %100 = vector.broadcast %cst_40 : f32 to vector<1x256xf32>
    %101 = arith.subf %100, %99 : vector<1x256xf32>
    %102 = math.exp %101 : vector<1x256xf32>
    %cst_41 = arith.constant 1.000000e+00 : f32
    %103 = vector.broadcast %cst_41 : f32 to vector<1x256xf32>
    %104 = arith.addf %103, %102 : vector<1x256xf32>
    %105 = math.log %104 : vector<1x256xf32>
    %106 = arith.addf %98, %105 : vector<1x256xf32>
    %107 = arith.mulf %93, %96 : vector<1x256xf32>
    %108 = arith.subf %106, %107 : vector<1x256xf32>
    %cst_42 = arith.constant dense<0.000000e+00> : vector<1xf32>
    %109 = vector.multi_reduction <add>, %108, %cst_42 [1] : vector<1x256xf32> to vector<1xf32>
    %110 = vector.shape_cast %109 : vector<1xf32> to vector<1x1xf32>
    %cst_43 = arith.constant 2.560000e+02 : f32
    %111 = vector.broadcast %cst_43 : f32 to vector<1x1xf32>
    %112 = arith.divf %110, %111 : vector<1x1xf32>
    %113 = vector.extract_strided_slice %58 {offsets = [1, 0], sizes = [1, 256], strides = [1, 1]} : vector<2x256xf32> to vector<1x256xf32>
    %114 = vector.extract_strided_slice %53 {offsets = [3, 0], sizes = [1, 256], strides = [1, 1]} : vector<45x256xf32> to vector<1x256xf32>
    %115 = vector.extract_strided_slice %53 {offsets = [2, 0], sizes = [1, 256], strides = [1, 1]} : vector<45x256xf32> to vector<1x256xf32>
    %116 = arith.subf %114, %115 : vector<1x256xf32>
    %cst_44 = arith.constant 0.000000e+00 : f32
    %117 = vector.broadcast %cst_44 : f32 to vector<1x256xf32>
    %118 = arith.maximumf %116, %117 : vector<1x256xf32>
    %119 = math.absf %116 : vector<1x256xf32>
    %cst_45 = arith.constant 0.000000e+00 : f32
    %120 = vector.broadcast %cst_45 : f32 to vector<1x256xf32>
    %121 = arith.subf %120, %119 : vector<1x256xf32>
    %122 = math.exp %121 : vector<1x256xf32>
    %cst_46 = arith.constant 1.000000e+00 : f32
    %123 = vector.broadcast %cst_46 : f32 to vector<1x256xf32>
    %124 = arith.addf %123, %122 : vector<1x256xf32>
    %125 = math.log %124 : vector<1x256xf32>
    %126 = arith.addf %118, %125 : vector<1x256xf32>
    %127 = arith.mulf %113, %116 : vector<1x256xf32>
    %128 = arith.subf %126, %127 : vector<1x256xf32>
    %cst_47 = arith.constant dense<0.000000e+00> : vector<1xf32>
    %129 = vector.multi_reduction <add>, %128, %cst_47 [1] : vector<1x256xf32> to vector<1xf32>
    %130 = vector.shape_cast %129 : vector<1xf32> to vector<1x1xf32>
    %cst_48 = arith.constant 2.560000e+02 : f32
    %131 = vector.broadcast %cst_48 : f32 to vector<1x1xf32>
    %132 = arith.divf %130, %131 : vector<1x1xf32>
    %133 = arith.addf %112, %132 : vector<1x1xf32>
    %134 = vector.extract_strided_slice %60 {offsets = [0, 0], sizes = [1, 256], strides = [1, 1]} : vector<16x256xf32> to vector<1x256xf32>
    %135 = vector.extract_strided_slice %53 {offsets = [5, 0], sizes = [1, 256], strides = [1, 1]} : vector<45x256xf32> to vector<1x256xf32>
    %136 = vector.extract_strided_slice %53 {offsets = [4, 0], sizes = [1, 256], strides = [1, 1]} : vector<45x256xf32> to vector<1x256xf32>
    %137 = arith.subf %135, %136 : vector<1x256xf32>
    %cst_49 = arith.constant 0.000000e+00 : f32
    %138 = vector.broadcast %cst_49 : f32 to vector<1x256xf32>
    %139 = arith.maximumf %137, %138 : vector<1x256xf32>
    %140 = math.absf %137 : vector<1x256xf32>
    %cst_50 = arith.constant 0.000000e+00 : f32
    %141 = vector.broadcast %cst_50 : f32 to vector<1x256xf32>
    %142 = arith.subf %141, %140 : vector<1x256xf32>
    %143 = math.exp %142 : vector<1x256xf32>
    %cst_51 = arith.constant 1.000000e+00 : f32
    %144 = vector.broadcast %cst_51 : f32 to vector<1x256xf32>
    %145 = arith.addf %144, %143 : vector<1x256xf32>
    %146 = math.log %145 : vector<1x256xf32>
    %147 = arith.addf %139, %146 : vector<1x256xf32>
    %148 = arith.mulf %134, %137 : vector<1x256xf32>
    %149 = arith.subf %147, %148 : vector<1x256xf32>
    %cst_52 = arith.constant dense<0.000000e+00> : vector<1xf32>
    %150 = vector.multi_reduction <add>, %149, %cst_52 [1] : vector<1x256xf32> to vector<1xf32>
    %151 = vector.shape_cast %150 : vector<1xf32> to vector<1x1xf32>
    %cst_53 = arith.constant 2.560000e+02 : f32
    %152 = vector.broadcast %cst_53 : f32 to vector<1x1xf32>
    %153 = arith.divf %151, %152 : vector<1x1xf32>
    %cst_54 = arith.constant 0.000000e+00 : f32
    %154 = vector.broadcast %cst_54 : f32 to vector<1x1xf32>
    %155 = arith.addf %154, %153 : vector<1x1xf32>
    %156 = vector.extract_strided_slice %60 {offsets = [1, 0], sizes = [1, 256], strides = [1, 1]} : vector<16x256xf32> to vector<1x256xf32>
    %157 = vector.extract_strided_slice %53 {offsets = [7, 0], sizes = [1, 256], strides = [1, 1]} : vector<45x256xf32> to vector<1x256xf32>
    %158 = vector.extract_strided_slice %53 {offsets = [6, 0], sizes = [1, 256], strides = [1, 1]} : vector<45x256xf32> to vector<1x256xf32>
    %159 = arith.subf %157, %158 : vector<1x256xf32>
    %cst_55 = arith.constant 0.000000e+00 : f32
    %160 = vector.broadcast %cst_55 : f32 to vector<1x256xf32>
    %161 = arith.maximumf %159, %160 : vector<1x256xf32>
    %162 = math.absf %159 : vector<1x256xf32>
    %cst_56 = arith.constant 0.000000e+00 : f32
    %163 = vector.broadcast %cst_56 : f32 to vector<1x256xf32>
    %164 = arith.subf %163, %162 : vector<1x256xf32>
    %165 = math.exp %164 : vector<1x256xf32>
    %cst_57 = arith.constant 1.000000e+00 : f32
    %166 = vector.broadcast %cst_57 : f32 to vector<1x256xf32>
    %167 = arith.addf %166, %165 : vector<1x256xf32>
    %168 = math.log %167 : vector<1x256xf32>
    %169 = arith.addf %161, %168 : vector<1x256xf32>
    %170 = arith.mulf %156, %159 : vector<1x256xf32>
    %171 = arith.subf %169, %170 : vector<1x256xf32>
    %cst_58 = arith.constant dense<0.000000e+00> : vector<1xf32>
    %172 = vector.multi_reduction <add>, %171, %cst_58 [1] : vector<1x256xf32> to vector<1xf32>
    %173 = vector.shape_cast %172 : vector<1xf32> to vector<1x1xf32>
    %cst_59 = arith.constant 2.560000e+02 : f32
    %174 = vector.broadcast %cst_59 : f32 to vector<1x1xf32>
    %175 = arith.divf %173, %174 : vector<1x1xf32>
    %176 = arith.addf %155, %175 : vector<1x1xf32>
    %177 = vector.extract_strided_slice %60 {offsets = [2, 0], sizes = [1, 256], strides = [1, 1]} : vector<16x256xf32> to vector<1x256xf32>
    %178 = vector.extract_strided_slice %53 {offsets = [9, 0], sizes = [1, 256], strides = [1, 1]} : vector<45x256xf32> to vector<1x256xf32>
    %179 = vector.extract_strided_slice %53 {offsets = [8, 0], sizes = [1, 256], strides = [1, 1]} : vector<45x256xf32> to vector<1x256xf32>
    %180 = arith.subf %178, %179 : vector<1x256xf32>
    %cst_60 = arith.constant 0.000000e+00 : f32
    %181 = vector.broadcast %cst_60 : f32 to vector<1x256xf32>
    %182 = arith.maximumf %180, %181 : vector<1x256xf32>
    %183 = math.absf %180 : vector<1x256xf32>
    %cst_61 = arith.constant 0.000000e+00 : f32
    %184 = vector.broadcast %cst_61 : f32 to vector<1x256xf32>
    %185 = arith.subf %184, %183 : vector<1x256xf32>
    %186 = math.exp %185 : vector<1x256xf32>
    %cst_62 = arith.constant 1.000000e+00 : f32
    %187 = vector.broadcast %cst_62 : f32 to vector<1x256xf32>
    %188 = arith.addf %187, %186 : vector<1x256xf32>
    %189 = math.log %188 : vector<1x256xf32>
    %190 = arith.addf %182, %189 : vector<1x256xf32>
    %191 = arith.mulf %177, %180 : vector<1x256xf32>
    %192 = arith.subf %190, %191 : vector<1x256xf32>
    %cst_63 = arith.constant dense<0.000000e+00> : vector<1xf32>
    %193 = vector.multi_reduction <add>, %192, %cst_63 [1] : vector<1x256xf32> to vector<1xf32>
    %194 = vector.shape_cast %193 : vector<1xf32> to vector<1x1xf32>
    %cst_64 = arith.constant 2.560000e+02 : f32
    %195 = vector.broadcast %cst_64 : f32 to vector<1x1xf32>
    %196 = arith.divf %194, %195 : vector<1x1xf32>
    %197 = arith.addf %176, %196 : vector<1x1xf32>
    %198 = vector.extract_strided_slice %60 {offsets = [3, 0], sizes = [1, 256], strides = [1, 1]} : vector<16x256xf32> to vector<1x256xf32>
    %199 = vector.extract_strided_slice %53 {offsets = [11, 0], sizes = [1, 256], strides = [1, 1]} : vector<45x256xf32> to vector<1x256xf32>
    %200 = vector.extract_strided_slice %53 {offsets = [10, 0], sizes = [1, 256], strides = [1, 1]} : vector<45x256xf32> to vector<1x256xf32>
    %201 = arith.subf %199, %200 : vector<1x256xf32>
    %cst_65 = arith.constant 0.000000e+00 : f32
    %202 = vector.broadcast %cst_65 : f32 to vector<1x256xf32>
    %203 = arith.maximumf %201, %202 : vector<1x256xf32>
    %204 = math.absf %201 : vector<1x256xf32>
    %cst_66 = arith.constant 0.000000e+00 : f32
    %205 = vector.broadcast %cst_66 : f32 to vector<1x256xf32>
    %206 = arith.subf %205, %204 : vector<1x256xf32>
    %207 = math.exp %206 : vector<1x256xf32>
    %cst_67 = arith.constant 1.000000e+00 : f32
    %208 = vector.broadcast %cst_67 : f32 to vector<1x256xf32>
    %209 = arith.addf %208, %207 : vector<1x256xf32>
    %210 = math.log %209 : vector<1x256xf32>
    %211 = arith.addf %203, %210 : vector<1x256xf32>
    %212 = arith.mulf %198, %201 : vector<1x256xf32>
    %213 = arith.subf %211, %212 : vector<1x256xf32>
    %cst_68 = arith.constant dense<0.000000e+00> : vector<1xf32>
    %214 = vector.multi_reduction <add>, %213, %cst_68 [1] : vector<1x256xf32> to vector<1xf32>
    %215 = vector.shape_cast %214 : vector<1xf32> to vector<1x1xf32>
    %cst_69 = arith.constant 2.560000e+02 : f32
    %216 = vector.broadcast %cst_69 : f32 to vector<1x1xf32>
    %217 = arith.divf %215, %216 : vector<1x1xf32>
    %218 = arith.addf %197, %217 : vector<1x1xf32>
    %219 = vector.extract_strided_slice %60 {offsets = [4, 0], sizes = [1, 256], strides = [1, 1]} : vector<16x256xf32> to vector<1x256xf32>
    %220 = vector.extract_strided_slice %53 {offsets = [13, 0], sizes = [1, 256], strides = [1, 1]} : vector<45x256xf32> to vector<1x256xf32>
    %221 = vector.extract_strided_slice %53 {offsets = [12, 0], sizes = [1, 256], strides = [1, 1]} : vector<45x256xf32> to vector<1x256xf32>
    %222 = arith.subf %220, %221 : vector<1x256xf32>
    %cst_70 = arith.constant 0.000000e+00 : f32
    %223 = vector.broadcast %cst_70 : f32 to vector<1x256xf32>
    %224 = arith.maximumf %222, %223 : vector<1x256xf32>
    %225 = math.absf %222 : vector<1x256xf32>
    %cst_71 = arith.constant 0.000000e+00 : f32
    %226 = vector.broadcast %cst_71 : f32 to vector<1x256xf32>
    %227 = arith.subf %226, %225 : vector<1x256xf32>
    %228 = math.exp %227 : vector<1x256xf32>
    %cst_72 = arith.constant 1.000000e+00 : f32
    %229 = vector.broadcast %cst_72 : f32 to vector<1x256xf32>
    %230 = arith.addf %229, %228 : vector<1x256xf32>
    %231 = math.log %230 : vector<1x256xf32>
    %232 = arith.addf %224, %231 : vector<1x256xf32>
    %233 = arith.mulf %219, %222 : vector<1x256xf32>
    %234 = arith.subf %232, %233 : vector<1x256xf32>
    %cst_73 = arith.constant dense<0.000000e+00> : vector<1xf32>
    %235 = vector.multi_reduction <add>, %234, %cst_73 [1] : vector<1x256xf32> to vector<1xf32>
    %236 = vector.shape_cast %235 : vector<1xf32> to vector<1x1xf32>
    %cst_74 = arith.constant 2.560000e+02 : f32
    %237 = vector.broadcast %cst_74 : f32 to vector<1x1xf32>
    %238 = arith.divf %236, %237 : vector<1x1xf32>
    %239 = arith.addf %218, %238 : vector<1x1xf32>
    %240 = vector.extract_strided_slice %60 {offsets = [5, 0], sizes = [1, 256], strides = [1, 1]} : vector<16x256xf32> to vector<1x256xf32>
    %241 = vector.extract_strided_slice %53 {offsets = [15, 0], sizes = [1, 256], strides = [1, 1]} : vector<45x256xf32> to vector<1x256xf32>
    %242 = vector.extract_strided_slice %53 {offsets = [14, 0], sizes = [1, 256], strides = [1, 1]} : vector<45x256xf32> to vector<1x256xf32>
    %243 = arith.subf %241, %242 : vector<1x256xf32>
    %cst_75 = arith.constant 0.000000e+00 : f32
    %244 = vector.broadcast %cst_75 : f32 to vector<1x256xf32>
    %245 = arith.maximumf %243, %244 : vector<1x256xf32>
    %246 = math.absf %243 : vector<1x256xf32>
    %cst_76 = arith.constant 0.000000e+00 : f32
    %247 = vector.broadcast %cst_76 : f32 to vector<1x256xf32>
    %248 = arith.subf %247, %246 : vector<1x256xf32>
    %249 = math.exp %248 : vector<1x256xf32>
    %cst_77 = arith.constant 1.000000e+00 : f32
    %250 = vector.broadcast %cst_77 : f32 to vector<1x256xf32>
    %251 = arith.addf %250, %249 : vector<1x256xf32>
    %252 = math.log %251 : vector<1x256xf32>
    %253 = arith.addf %245, %252 : vector<1x256xf32>
    %254 = arith.mulf %240, %243 : vector<1x256xf32>
    %255 = arith.subf %253, %254 : vector<1x256xf32>
    %cst_78 = arith.constant dense<0.000000e+00> : vector<1xf32>
    %256 = vector.multi_reduction <add>, %255, %cst_78 [1] : vector<1x256xf32> to vector<1xf32>
    %257 = vector.shape_cast %256 : vector<1xf32> to vector<1x1xf32>
    %cst_79 = arith.constant 2.560000e+02 : f32
    %258 = vector.broadcast %cst_79 : f32 to vector<1x1xf32>
    %259 = arith.divf %257, %258 : vector<1x1xf32>
    %260 = arith.addf %239, %259 : vector<1x1xf32>
    %261 = vector.extract_strided_slice %60 {offsets = [6, 0], sizes = [1, 256], strides = [1, 1]} : vector<16x256xf32> to vector<1x256xf32>
    %262 = vector.extract_strided_slice %53 {offsets = [17, 0], sizes = [1, 256], strides = [1, 1]} : vector<45x256xf32> to vector<1x256xf32>
    %263 = vector.extract_strided_slice %53 {offsets = [16, 0], sizes = [1, 256], strides = [1, 1]} : vector<45x256xf32> to vector<1x256xf32>
    %264 = arith.subf %262, %263 : vector<1x256xf32>
    %cst_80 = arith.constant 0.000000e+00 : f32
    %265 = vector.broadcast %cst_80 : f32 to vector<1x256xf32>
    %266 = arith.maximumf %264, %265 : vector<1x256xf32>
    %267 = math.absf %264 : vector<1x256xf32>
    %cst_81 = arith.constant 0.000000e+00 : f32
    %268 = vector.broadcast %cst_81 : f32 to vector<1x256xf32>
    %269 = arith.subf %268, %267 : vector<1x256xf32>
    %270 = math.exp %269 : vector<1x256xf32>
    %cst_82 = arith.constant 1.000000e+00 : f32
    %271 = vector.broadcast %cst_82 : f32 to vector<1x256xf32>
    %272 = arith.addf %271, %270 : vector<1x256xf32>
    %273 = math.log %272 : vector<1x256xf32>
    %274 = arith.addf %266, %273 : vector<1x256xf32>
    %275 = arith.mulf %261, %264 : vector<1x256xf32>
    %276 = arith.subf %274, %275 : vector<1x256xf32>
    %cst_83 = arith.constant dense<0.000000e+00> : vector<1xf32>
    %277 = vector.multi_reduction <add>, %276, %cst_83 [1] : vector<1x256xf32> to vector<1xf32>
    %278 = vector.shape_cast %277 : vector<1xf32> to vector<1x1xf32>
    %cst_84 = arith.constant 2.560000e+02 : f32
    %279 = vector.broadcast %cst_84 : f32 to vector<1x1xf32>
    %280 = arith.divf %278, %279 : vector<1x1xf32>
    %281 = arith.addf %260, %280 : vector<1x1xf32>
    %282 = vector.extract_strided_slice %60 {offsets = [7, 0], sizes = [1, 256], strides = [1, 1]} : vector<16x256xf32> to vector<1x256xf32>
    %283 = vector.extract_strided_slice %53 {offsets = [19, 0], sizes = [1, 256], strides = [1, 1]} : vector<45x256xf32> to vector<1x256xf32>
    %284 = vector.extract_strided_slice %53 {offsets = [18, 0], sizes = [1, 256], strides = [1, 1]} : vector<45x256xf32> to vector<1x256xf32>
    %285 = arith.subf %283, %284 : vector<1x256xf32>
    %cst_85 = arith.constant 0.000000e+00 : f32
    %286 = vector.broadcast %cst_85 : f32 to vector<1x256xf32>
    %287 = arith.maximumf %285, %286 : vector<1x256xf32>
    %288 = math.absf %285 : vector<1x256xf32>
    %cst_86 = arith.constant 0.000000e+00 : f32
    %289 = vector.broadcast %cst_86 : f32 to vector<1x256xf32>
    %290 = arith.subf %289, %288 : vector<1x256xf32>
    %291 = math.exp %290 : vector<1x256xf32>
    %cst_87 = arith.constant 1.000000e+00 : f32
    %292 = vector.broadcast %cst_87 : f32 to vector<1x256xf32>
    %293 = arith.addf %292, %291 : vector<1x256xf32>
    %294 = math.log %293 : vector<1x256xf32>
    %295 = arith.addf %287, %294 : vector<1x256xf32>
    %296 = arith.mulf %282, %285 : vector<1x256xf32>
    %297 = arith.subf %295, %296 : vector<1x256xf32>
    %cst_88 = arith.constant dense<0.000000e+00> : vector<1xf32>
    %298 = vector.multi_reduction <add>, %297, %cst_88 [1] : vector<1x256xf32> to vector<1xf32>
    %299 = vector.shape_cast %298 : vector<1xf32> to vector<1x1xf32>
    %cst_89 = arith.constant 2.560000e+02 : f32
    %300 = vector.broadcast %cst_89 : f32 to vector<1x1xf32>
    %301 = arith.divf %299, %300 : vector<1x1xf32>
    %302 = arith.addf %281, %301 : vector<1x1xf32>
    %303 = vector.extract_strided_slice %60 {offsets = [8, 0], sizes = [1, 256], strides = [1, 1]} : vector<16x256xf32> to vector<1x256xf32>
    %304 = vector.extract_strided_slice %53 {offsets = [21, 0], sizes = [1, 256], strides = [1, 1]} : vector<45x256xf32> to vector<1x256xf32>
    %305 = vector.extract_strided_slice %53 {offsets = [20, 0], sizes = [1, 256], strides = [1, 1]} : vector<45x256xf32> to vector<1x256xf32>
    %306 = arith.subf %304, %305 : vector<1x256xf32>
    %cst_90 = arith.constant 0.000000e+00 : f32
    %307 = vector.broadcast %cst_90 : f32 to vector<1x256xf32>
    %308 = arith.maximumf %306, %307 : vector<1x256xf32>
    %309 = math.absf %306 : vector<1x256xf32>
    %cst_91 = arith.constant 0.000000e+00 : f32
    %310 = vector.broadcast %cst_91 : f32 to vector<1x256xf32>
    %311 = arith.subf %310, %309 : vector<1x256xf32>
    %312 = math.exp %311 : vector<1x256xf32>
    %cst_92 = arith.constant 1.000000e+00 : f32
    %313 = vector.broadcast %cst_92 : f32 to vector<1x256xf32>
    %314 = arith.addf %313, %312 : vector<1x256xf32>
    %315 = math.log %314 : vector<1x256xf32>
    %316 = arith.addf %308, %315 : vector<1x256xf32>
    %317 = arith.mulf %303, %306 : vector<1x256xf32>
    %318 = arith.subf %316, %317 : vector<1x256xf32>
    %cst_93 = arith.constant dense<0.000000e+00> : vector<1xf32>
    %319 = vector.multi_reduction <add>, %318, %cst_93 [1] : vector<1x256xf32> to vector<1xf32>
    %320 = vector.shape_cast %319 : vector<1xf32> to vector<1x1xf32>
    %cst_94 = arith.constant 2.560000e+02 : f32
    %321 = vector.broadcast %cst_94 : f32 to vector<1x1xf32>
    %322 = arith.divf %320, %321 : vector<1x1xf32>
    %323 = arith.addf %302, %322 : vector<1x1xf32>
    %324 = vector.extract_strided_slice %60 {offsets = [9, 0], sizes = [1, 256], strides = [1, 1]} : vector<16x256xf32> to vector<1x256xf32>
    %325 = vector.extract_strided_slice %53 {offsets = [23, 0], sizes = [1, 256], strides = [1, 1]} : vector<45x256xf32> to vector<1x256xf32>
    %326 = vector.extract_strided_slice %53 {offsets = [22, 0], sizes = [1, 256], strides = [1, 1]} : vector<45x256xf32> to vector<1x256xf32>
    %327 = arith.subf %325, %326 : vector<1x256xf32>
    %cst_95 = arith.constant 0.000000e+00 : f32
    %328 = vector.broadcast %cst_95 : f32 to vector<1x256xf32>
    %329 = arith.maximumf %327, %328 : vector<1x256xf32>
    %330 = math.absf %327 : vector<1x256xf32>
    %cst_96 = arith.constant 0.000000e+00 : f32
    %331 = vector.broadcast %cst_96 : f32 to vector<1x256xf32>
    %332 = arith.subf %331, %330 : vector<1x256xf32>
    %333 = math.exp %332 : vector<1x256xf32>
    %cst_97 = arith.constant 1.000000e+00 : f32
    %334 = vector.broadcast %cst_97 : f32 to vector<1x256xf32>
    %335 = arith.addf %334, %333 : vector<1x256xf32>
    %336 = math.log %335 : vector<1x256xf32>
    %337 = arith.addf %329, %336 : vector<1x256xf32>
    %338 = arith.mulf %324, %327 : vector<1x256xf32>
    %339 = arith.subf %337, %338 : vector<1x256xf32>
    %cst_98 = arith.constant dense<0.000000e+00> : vector<1xf32>
    %340 = vector.multi_reduction <add>, %339, %cst_98 [1] : vector<1x256xf32> to vector<1xf32>
    %341 = vector.shape_cast %340 : vector<1xf32> to vector<1x1xf32>
    %cst_99 = arith.constant 2.560000e+02 : f32
    %342 = vector.broadcast %cst_99 : f32 to vector<1x1xf32>
    %343 = arith.divf %341, %342 : vector<1x1xf32>
    %344 = arith.addf %323, %343 : vector<1x1xf32>
    %345 = vector.extract_strided_slice %60 {offsets = [10, 0], sizes = [1, 256], strides = [1, 1]} : vector<16x256xf32> to vector<1x256xf32>
    %346 = vector.extract_strided_slice %53 {offsets = [25, 0], sizes = [1, 256], strides = [1, 1]} : vector<45x256xf32> to vector<1x256xf32>
    %347 = vector.extract_strided_slice %53 {offsets = [24, 0], sizes = [1, 256], strides = [1, 1]} : vector<45x256xf32> to vector<1x256xf32>
    %348 = arith.subf %346, %347 : vector<1x256xf32>
    %cst_100 = arith.constant 0.000000e+00 : f32
    %349 = vector.broadcast %cst_100 : f32 to vector<1x256xf32>
    %350 = arith.maximumf %348, %349 : vector<1x256xf32>
    %351 = math.absf %348 : vector<1x256xf32>
    %cst_101 = arith.constant 0.000000e+00 : f32
    %352 = vector.broadcast %cst_101 : f32 to vector<1x256xf32>
    %353 = arith.subf %352, %351 : vector<1x256xf32>
    %354 = math.exp %353 : vector<1x256xf32>
    %cst_102 = arith.constant 1.000000e+00 : f32
    %355 = vector.broadcast %cst_102 : f32 to vector<1x256xf32>
    %356 = arith.addf %355, %354 : vector<1x256xf32>
    %357 = math.log %356 : vector<1x256xf32>
    %358 = arith.addf %350, %357 : vector<1x256xf32>
    %359 = arith.mulf %345, %348 : vector<1x256xf32>
    %360 = arith.subf %358, %359 : vector<1x256xf32>
    %cst_103 = arith.constant dense<0.000000e+00> : vector<1xf32>
    %361 = vector.multi_reduction <add>, %360, %cst_103 [1] : vector<1x256xf32> to vector<1xf32>
    %362 = vector.shape_cast %361 : vector<1xf32> to vector<1x1xf32>
    %cst_104 = arith.constant 2.560000e+02 : f32
    %363 = vector.broadcast %cst_104 : f32 to vector<1x1xf32>
    %364 = arith.divf %362, %363 : vector<1x1xf32>
    %365 = arith.addf %344, %364 : vector<1x1xf32>
    %366 = vector.extract_strided_slice %60 {offsets = [11, 0], sizes = [1, 256], strides = [1, 1]} : vector<16x256xf32> to vector<1x256xf32>
    %367 = vector.extract_strided_slice %53 {offsets = [27, 0], sizes = [1, 256], strides = [1, 1]} : vector<45x256xf32> to vector<1x256xf32>
    %368 = vector.extract_strided_slice %53 {offsets = [26, 0], sizes = [1, 256], strides = [1, 1]} : vector<45x256xf32> to vector<1x256xf32>
    %369 = arith.subf %367, %368 : vector<1x256xf32>
    %cst_105 = arith.constant 0.000000e+00 : f32
    %370 = vector.broadcast %cst_105 : f32 to vector<1x256xf32>
    %371 = arith.maximumf %369, %370 : vector<1x256xf32>
    %372 = math.absf %369 : vector<1x256xf32>
    %cst_106 = arith.constant 0.000000e+00 : f32
    %373 = vector.broadcast %cst_106 : f32 to vector<1x256xf32>
    %374 = arith.subf %373, %372 : vector<1x256xf32>
    %375 = math.exp %374 : vector<1x256xf32>
    %cst_107 = arith.constant 1.000000e+00 : f32
    %376 = vector.broadcast %cst_107 : f32 to vector<1x256xf32>
    %377 = arith.addf %376, %375 : vector<1x256xf32>
    %378 = math.log %377 : vector<1x256xf32>
    %379 = arith.addf %371, %378 : vector<1x256xf32>
    %380 = arith.mulf %366, %369 : vector<1x256xf32>
    %381 = arith.subf %379, %380 : vector<1x256xf32>
    %cst_108 = arith.constant dense<0.000000e+00> : vector<1xf32>
    %382 = vector.multi_reduction <add>, %381, %cst_108 [1] : vector<1x256xf32> to vector<1xf32>
    %383 = vector.shape_cast %382 : vector<1xf32> to vector<1x1xf32>
    %cst_109 = arith.constant 2.560000e+02 : f32
    %384 = vector.broadcast %cst_109 : f32 to vector<1x1xf32>
    %385 = arith.divf %383, %384 : vector<1x1xf32>
    %386 = arith.addf %365, %385 : vector<1x1xf32>
    %387 = vector.extract_strided_slice %60 {offsets = [12, 0], sizes = [1, 256], strides = [1, 1]} : vector<16x256xf32> to vector<1x256xf32>
    %388 = vector.extract_strided_slice %53 {offsets = [29, 0], sizes = [1, 256], strides = [1, 1]} : vector<45x256xf32> to vector<1x256xf32>
    %389 = vector.extract_strided_slice %53 {offsets = [28, 0], sizes = [1, 256], strides = [1, 1]} : vector<45x256xf32> to vector<1x256xf32>
    %390 = arith.subf %388, %389 : vector<1x256xf32>
    %cst_110 = arith.constant 0.000000e+00 : f32
    %391 = vector.broadcast %cst_110 : f32 to vector<1x256xf32>
    %392 = arith.maximumf %390, %391 : vector<1x256xf32>
    %393 = math.absf %390 : vector<1x256xf32>
    %cst_111 = arith.constant 0.000000e+00 : f32
    %394 = vector.broadcast %cst_111 : f32 to vector<1x256xf32>
    %395 = arith.subf %394, %393 : vector<1x256xf32>
    %396 = math.exp %395 : vector<1x256xf32>
    %cst_112 = arith.constant 1.000000e+00 : f32
    %397 = vector.broadcast %cst_112 : f32 to vector<1x256xf32>
    %398 = arith.addf %397, %396 : vector<1x256xf32>
    %399 = math.log %398 : vector<1x256xf32>
    %400 = arith.addf %392, %399 : vector<1x256xf32>
    %401 = arith.mulf %387, %390 : vector<1x256xf32>
    %402 = arith.subf %400, %401 : vector<1x256xf32>
    %cst_113 = arith.constant dense<0.000000e+00> : vector<1xf32>
    %403 = vector.multi_reduction <add>, %402, %cst_113 [1] : vector<1x256xf32> to vector<1xf32>
    %404 = vector.shape_cast %403 : vector<1xf32> to vector<1x1xf32>
    %cst_114 = arith.constant 2.560000e+02 : f32
    %405 = vector.broadcast %cst_114 : f32 to vector<1x1xf32>
    %406 = arith.divf %404, %405 : vector<1x1xf32>
    %407 = arith.addf %386, %406 : vector<1x1xf32>
    %408 = vector.extract_strided_slice %60 {offsets = [13, 0], sizes = [1, 256], strides = [1, 1]} : vector<16x256xf32> to vector<1x256xf32>
    %409 = vector.extract_strided_slice %53 {offsets = [31, 0], sizes = [1, 256], strides = [1, 1]} : vector<45x256xf32> to vector<1x256xf32>
    %410 = vector.extract_strided_slice %53 {offsets = [30, 0], sizes = [1, 256], strides = [1, 1]} : vector<45x256xf32> to vector<1x256xf32>
    %411 = arith.subf %409, %410 : vector<1x256xf32>
    %cst_115 = arith.constant 0.000000e+00 : f32
    %412 = vector.broadcast %cst_115 : f32 to vector<1x256xf32>
    %413 = arith.maximumf %411, %412 : vector<1x256xf32>
    %414 = math.absf %411 : vector<1x256xf32>
    %cst_116 = arith.constant 0.000000e+00 : f32
    %415 = vector.broadcast %cst_116 : f32 to vector<1x256xf32>
    %416 = arith.subf %415, %414 : vector<1x256xf32>
    %417 = math.exp %416 : vector<1x256xf32>
    %cst_117 = arith.constant 1.000000e+00 : f32
    %418 = vector.broadcast %cst_117 : f32 to vector<1x256xf32>
    %419 = arith.addf %418, %417 : vector<1x256xf32>
    %420 = math.log %419 : vector<1x256xf32>
    %421 = arith.addf %413, %420 : vector<1x256xf32>
    %422 = arith.mulf %408, %411 : vector<1x256xf32>
    %423 = arith.subf %421, %422 : vector<1x256xf32>
    %cst_118 = arith.constant dense<0.000000e+00> : vector<1xf32>
    %424 = vector.multi_reduction <add>, %423, %cst_118 [1] : vector<1x256xf32> to vector<1xf32>
    %425 = vector.shape_cast %424 : vector<1xf32> to vector<1x1xf32>
    %cst_119 = arith.constant 2.560000e+02 : f32
    %426 = vector.broadcast %cst_119 : f32 to vector<1x1xf32>
    %427 = arith.divf %425, %426 : vector<1x1xf32>
    %428 = arith.addf %407, %427 : vector<1x1xf32>
    %429 = vector.extract_strided_slice %60 {offsets = [14, 0], sizes = [1, 256], strides = [1, 1]} : vector<16x256xf32> to vector<1x256xf32>
    %430 = vector.extract_strided_slice %53 {offsets = [33, 0], sizes = [1, 256], strides = [1, 1]} : vector<45x256xf32> to vector<1x256xf32>
    %431 = vector.extract_strided_slice %53 {offsets = [32, 0], sizes = [1, 256], strides = [1, 1]} : vector<45x256xf32> to vector<1x256xf32>
    %432 = arith.subf %430, %431 : vector<1x256xf32>
    %cst_120 = arith.constant 0.000000e+00 : f32
    %433 = vector.broadcast %cst_120 : f32 to vector<1x256xf32>
    %434 = arith.maximumf %432, %433 : vector<1x256xf32>
    %435 = math.absf %432 : vector<1x256xf32>
    %cst_121 = arith.constant 0.000000e+00 : f32
    %436 = vector.broadcast %cst_121 : f32 to vector<1x256xf32>
    %437 = arith.subf %436, %435 : vector<1x256xf32>
    %438 = math.exp %437 : vector<1x256xf32>
    %cst_122 = arith.constant 1.000000e+00 : f32
    %439 = vector.broadcast %cst_122 : f32 to vector<1x256xf32>
    %440 = arith.addf %439, %438 : vector<1x256xf32>
    %441 = math.log %440 : vector<1x256xf32>
    %442 = arith.addf %434, %441 : vector<1x256xf32>
    %443 = arith.mulf %429, %432 : vector<1x256xf32>
    %444 = arith.subf %442, %443 : vector<1x256xf32>
    %cst_123 = arith.constant dense<0.000000e+00> : vector<1xf32>
    %445 = vector.multi_reduction <add>, %444, %cst_123 [1] : vector<1x256xf32> to vector<1xf32>
    %446 = vector.shape_cast %445 : vector<1xf32> to vector<1x1xf32>
    %cst_124 = arith.constant 2.560000e+02 : f32
    %447 = vector.broadcast %cst_124 : f32 to vector<1x1xf32>
    %448 = arith.divf %446, %447 : vector<1x1xf32>
    %449 = arith.addf %428, %448 : vector<1x1xf32>
    %450 = vector.extract_strided_slice %60 {offsets = [15, 0], sizes = [1, 256], strides = [1, 1]} : vector<16x256xf32> to vector<1x256xf32>
    %451 = vector.extract_strided_slice %53 {offsets = [35, 0], sizes = [1, 256], strides = [1, 1]} : vector<45x256xf32> to vector<1x256xf32>
    %452 = vector.extract_strided_slice %53 {offsets = [34, 0], sizes = [1, 256], strides = [1, 1]} : vector<45x256xf32> to vector<1x256xf32>
    %453 = arith.subf %451, %452 : vector<1x256xf32>
    %cst_125 = arith.constant 0.000000e+00 : f32
    %454 = vector.broadcast %cst_125 : f32 to vector<1x256xf32>
    %455 = arith.maximumf %453, %454 : vector<1x256xf32>
    %456 = math.absf %453 : vector<1x256xf32>
    %cst_126 = arith.constant 0.000000e+00 : f32
    %457 = vector.broadcast %cst_126 : f32 to vector<1x256xf32>
    %458 = arith.subf %457, %456 : vector<1x256xf32>
    %459 = math.exp %458 : vector<1x256xf32>
    %cst_127 = arith.constant 1.000000e+00 : f32
    %460 = vector.broadcast %cst_127 : f32 to vector<1x256xf32>
    %461 = arith.addf %460, %459 : vector<1x256xf32>
    %462 = math.log %461 : vector<1x256xf32>
    %463 = arith.addf %455, %462 : vector<1x256xf32>
    %464 = arith.mulf %450, %453 : vector<1x256xf32>
    %465 = arith.subf %463, %464 : vector<1x256xf32>
    %cst_128 = arith.constant dense<0.000000e+00> : vector<1xf32>
    %466 = vector.multi_reduction <add>, %465, %cst_128 [1] : vector<1x256xf32> to vector<1xf32>
    %467 = vector.shape_cast %466 : vector<1xf32> to vector<1x1xf32>
    %cst_129 = arith.constant 2.560000e+02 : f32
    %468 = vector.broadcast %cst_129 : f32 to vector<1x1xf32>
    %469 = arith.divf %467, %468 : vector<1x1xf32>
    %470 = arith.addf %449, %469 : vector<1x1xf32>
    %471 = vector.extract_strided_slice %53 {offsets = [36, 0], sizes = [1, 256], strides = [1, 1]} : vector<45x256xf32> to vector<1x256xf32>
    %472 = arith.subf %62, %471 : vector<1x256xf32>
    %473 = arith.mulf %472, %472 : vector<1x256xf32>
    %cst_130 = arith.constant dense<0.000000e+00> : vector<1xf32>
    %474 = vector.multi_reduction <add>, %473, %cst_130 [1] : vector<1x256xf32> to vector<1xf32>
    %475 = vector.shape_cast %474 : vector<1xf32> to vector<1x1xf32>
    %cst_131 = arith.constant 2.560000e+02 : f32
    %476 = vector.broadcast %cst_131 : f32 to vector<1x1xf32>
    %477 = arith.divf %475, %476 : vector<1x1xf32>
    %478 = vector.extract_strided_slice %64 {offsets = [0, 0], sizes = [1, 256], strides = [1, 1]} : vector<4x256xf32> to vector<1x256xf32>
    %479 = vector.extract_strided_slice %53 {offsets = [37, 0], sizes = [1, 256], strides = [1, 1]} : vector<45x256xf32> to vector<1x256xf32>
    %480 = arith.subf %478, %479 : vector<1x256xf32>
    %481 = arith.mulf %480, %480 : vector<1x256xf32>
    %482 = vector.extract_strided_slice %58 {offsets = [0, 0], sizes = [1, 256], strides = [1, 1]} : vector<2x256xf32> to vector<1x256xf32>
    %483 = arith.mulf %481, %482 : vector<1x256xf32>
    %cst_132 = arith.constant dense<0.000000e+00> : vector<1xf32>
    %484 = vector.multi_reduction <add>, %483, %cst_132 [1] : vector<1x256xf32> to vector<1xf32>
    %485 = vector.shape_cast %484 : vector<1xf32> to vector<1x1xf32>
    %cst_133 = arith.constant 2.560000e+02 : f32
    %486 = vector.broadcast %cst_133 : f32 to vector<1x1xf32>
    %487 = arith.divf %485, %486 : vector<1x1xf32>
    %488 = arith.mulf %487, %81 : vector<1x1xf32>
    %cst_134 = arith.constant 0.000000e+00 : f32
    %489 = vector.broadcast %cst_134 : f32 to vector<1x1xf32>
    %490 = arith.addf %489, %488 : vector<1x1xf32>
    %491 = vector.extract_strided_slice %64 {offsets = [1, 0], sizes = [1, 256], strides = [1, 1]} : vector<4x256xf32> to vector<1x256xf32>
    %492 = vector.extract_strided_slice %53 {offsets = [38, 0], sizes = [1, 256], strides = [1, 1]} : vector<45x256xf32> to vector<1x256xf32>
    %493 = arith.subf %491, %492 : vector<1x256xf32>
    %494 = arith.mulf %493, %493 : vector<1x256xf32>
    %495 = vector.extract_strided_slice %58 {offsets = [0, 0], sizes = [1, 256], strides = [1, 1]} : vector<2x256xf32> to vector<1x256xf32>
    %496 = arith.mulf %494, %495 : vector<1x256xf32>
    %cst_135 = arith.constant dense<0.000000e+00> : vector<1xf32>
    %497 = vector.multi_reduction <add>, %496, %cst_135 [1] : vector<1x256xf32> to vector<1xf32>
    %498 = vector.shape_cast %497 : vector<1xf32> to vector<1x1xf32>
    %cst_136 = arith.constant 2.560000e+02 : f32
    %499 = vector.broadcast %cst_136 : f32 to vector<1x1xf32>
    %500 = arith.divf %498, %499 : vector<1x1xf32>
    %501 = arith.mulf %500, %81 : vector<1x1xf32>
    %502 = arith.addf %490, %501 : vector<1x1xf32>
    %503 = vector.extract_strided_slice %64 {offsets = [2, 0], sizes = [1, 256], strides = [1, 1]} : vector<4x256xf32> to vector<1x256xf32>
    %504 = vector.extract_strided_slice %53 {offsets = [39, 0], sizes = [1, 256], strides = [1, 1]} : vector<45x256xf32> to vector<1x256xf32>
    %505 = arith.subf %503, %504 : vector<1x256xf32>
    %506 = arith.mulf %505, %505 : vector<1x256xf32>
    %507 = vector.extract_strided_slice %58 {offsets = [1, 0], sizes = [1, 256], strides = [1, 1]} : vector<2x256xf32> to vector<1x256xf32>
    %508 = arith.mulf %506, %507 : vector<1x256xf32>
    %cst_137 = arith.constant dense<0.000000e+00> : vector<1xf32>
    %509 = vector.multi_reduction <add>, %508, %cst_137 [1] : vector<1x256xf32> to vector<1xf32>
    %510 = vector.shape_cast %509 : vector<1xf32> to vector<1x1xf32>
    %cst_138 = arith.constant 2.560000e+02 : f32
    %511 = vector.broadcast %cst_138 : f32 to vector<1x1xf32>
    %512 = arith.divf %510, %511 : vector<1x1xf32>
    %513 = arith.mulf %512, %92 : vector<1x1xf32>
    %514 = arith.addf %502, %513 : vector<1x1xf32>
    %515 = vector.extract_strided_slice %64 {offsets = [3, 0], sizes = [1, 256], strides = [1, 1]} : vector<4x256xf32> to vector<1x256xf32>
    %516 = vector.extract_strided_slice %53 {offsets = [40, 0], sizes = [1, 256], strides = [1, 1]} : vector<45x256xf32> to vector<1x256xf32>
    %517 = arith.subf %515, %516 : vector<1x256xf32>
    %518 = arith.mulf %517, %517 : vector<1x256xf32>
    %519 = vector.extract_strided_slice %58 {offsets = [1, 0], sizes = [1, 256], strides = [1, 1]} : vector<2x256xf32> to vector<1x256xf32>
    %520 = arith.mulf %518, %519 : vector<1x256xf32>
    %cst_139 = arith.constant dense<0.000000e+00> : vector<1xf32>
    %521 = vector.multi_reduction <add>, %520, %cst_139 [1] : vector<1x256xf32> to vector<1xf32>
    %522 = vector.shape_cast %521 : vector<1xf32> to vector<1x1xf32>
    %cst_140 = arith.constant 2.560000e+02 : f32
    %523 = vector.broadcast %cst_140 : f32 to vector<1x1xf32>
    %524 = arith.divf %522, %523 : vector<1x1xf32>
    %525 = arith.mulf %524, %92 : vector<1x1xf32>
    %526 = arith.addf %514, %525 : vector<1x1xf32>
    %527 = vector.extract_strided_slice %53 {offsets = [41, 0], sizes = [1, 256], strides = [1, 1]} : vector<45x256xf32> to vector<1x256xf32>
    %528 = arith.subf %527, %66 : vector<1x256xf32>
    %529 = math.sin %528 : vector<1x256xf32>
    %530 = arith.mulf %529, %529 : vector<1x256xf32>
    %cst_141 = arith.constant dense<0.000000e+00> : vector<1xf32>
    %531 = vector.multi_reduction <add>, %530, %cst_141 [1] : vector<1x256xf32> to vector<1xf32>
    %532 = vector.shape_cast %531 : vector<1xf32> to vector<1x1xf32>
    %cst_142 = arith.constant 2.560000e+02 : f32
    %533 = vector.broadcast %cst_142 : f32 to vector<1x1xf32>
    %534 = arith.divf %532, %533 : vector<1x1xf32>
    %535 = vector.extract_strided_slice %53 {offsets = [42, 0], sizes = [1, 256], strides = [1, 1]} : vector<45x256xf32> to vector<1x256xf32>
    %536 = arith.subf %68, %535 : vector<1x256xf32>
    %537 = arith.mulf %536, %536 : vector<1x256xf32>
    %cst_143 = arith.constant dense<0.000000e+00> : vector<1xf32>
    %538 = vector.multi_reduction <add>, %537, %cst_143 [1] : vector<1x256xf32> to vector<1xf32>
    %539 = vector.shape_cast %538 : vector<1xf32> to vector<1x1xf32>
    %cst_144 = arith.constant 2.560000e+02 : f32
    %540 = vector.broadcast %cst_144 : f32 to vector<1x1xf32>
    %541 = arith.divf %539, %540 : vector<1x1xf32>
    %542 = vector.extract_strided_slice %70 {offsets = [0, 0], sizes = [1, 256], strides = [1, 1]} : vector<2x256xf32> to vector<1x256xf32>
    %543 = vector.extract_strided_slice %53 {offsets = [43, 0], sizes = [1, 256], strides = [1, 1]} : vector<45x256xf32> to vector<1x256xf32>
    %544 = arith.subf %542, %543 : vector<1x256xf32>
    %545 = arith.mulf %544, %544 : vector<1x256xf32>
    %546 = vector.extract_strided_slice %58 {offsets = [0, 0], sizes = [1, 256], strides = [1, 1]} : vector<2x256xf32> to vector<1x256xf32>
    %547 = arith.mulf %545, %546 : vector<1x256xf32>
    %cst_145 = arith.constant dense<0.000000e+00> : vector<1xf32>
    %548 = vector.multi_reduction <add>, %547, %cst_145 [1] : vector<1x256xf32> to vector<1xf32>
    %549 = vector.shape_cast %548 : vector<1xf32> to vector<1x1xf32>
    %cst_146 = arith.constant 2.560000e+02 : f32
    %550 = vector.broadcast %cst_146 : f32 to vector<1x1xf32>
    %551 = arith.divf %549, %550 : vector<1x1xf32>
    %552 = arith.mulf %551, %81 : vector<1x1xf32>
    %cst_147 = arith.constant 0.000000e+00 : f32
    %553 = vector.broadcast %cst_147 : f32 to vector<1x1xf32>
    %554 = arith.addf %553, %552 : vector<1x1xf32>
    %555 = vector.extract_strided_slice %70 {offsets = [1, 0], sizes = [1, 256], strides = [1, 1]} : vector<2x256xf32> to vector<1x256xf32>
    %556 = vector.extract_strided_slice %53 {offsets = [44, 0], sizes = [1, 256], strides = [1, 1]} : vector<45x256xf32> to vector<1x256xf32>
    %557 = arith.subf %555, %556 : vector<1x256xf32>
    %558 = arith.mulf %557, %557 : vector<1x256xf32>
    %559 = vector.extract_strided_slice %58 {offsets = [1, 0], sizes = [1, 256], strides = [1, 1]} : vector<2x256xf32> to vector<1x256xf32>
    %560 = arith.mulf %558, %559 : vector<1x256xf32>
    %cst_148 = arith.constant dense<0.000000e+00> : vector<1xf32>
    %561 = vector.multi_reduction <add>, %560, %cst_148 [1] : vector<1x256xf32> to vector<1xf32>
    %562 = vector.shape_cast %561 : vector<1xf32> to vector<1x1xf32>
    %cst_149 = arith.constant 2.560000e+02 : f32
    %563 = vector.broadcast %cst_149 : f32 to vector<1x1xf32>
    %564 = arith.divf %562, %563 : vector<1x1xf32>
    %565 = arith.mulf %564, %92 : vector<1x1xf32>
    %566 = arith.addf %554, %565 : vector<1x1xf32>
    %cst_150 = arith.constant 1.000000e+00 : f32
    %567 = vector.broadcast %cst_150 : f32 to vector<1x1xf32>
    %568 = arith.mulf %133, %567 : vector<1x1xf32>
    %cst_151 = arith.constant 1.000000e+00 : f32
    %569 = vector.broadcast %cst_151 : f32 to vector<1x1xf32>
    %570 = arith.mulf %470, %569 : vector<1x1xf32>
    %cst_152 = arith.constant 5.000000e+00 : f32
    %571 = vector.broadcast %cst_152 : f32 to vector<1x1xf32>
    %572 = arith.mulf %477, %571 : vector<1x1xf32>
    %cst_153 = arith.constant 5.000000e-01 : f32
    %573 = vector.broadcast %cst_153 : f32 to vector<1x1xf32>
    %574 = arith.mulf %526, %573 : vector<1x1xf32>
    %cst_154 = arith.constant 1.000000e+00 : f32
    %575 = vector.broadcast %cst_154 : f32 to vector<1x1xf32>
    %576 = arith.mulf %534, %575 : vector<1x1xf32>
    %cst_155 = arith.constant 1.000000e+00 : f32
    %577 = vector.broadcast %cst_155 : f32 to vector<1x1xf32>
    %578 = arith.mulf %541, %577 : vector<1x1xf32>
    %cst_156 = arith.constant 1.000000e-01 : f32
    %579 = vector.broadcast %cst_156 : f32 to vector<1x1xf32>
    %580 = arith.mulf %566, %579 : vector<1x1xf32>
    %581 = vector.shape_cast %568 : vector<1x1xf32> to vector<1x1xf32>
    %582 = vector.broadcast %581 : vector<1x1xf32> to vector<1x128xf32>
    %c0_157 = arith.constant 0 : index
    %c0_158 = arith.constant 0 : index
    %c0_159 = arith.constant 0 : index
    %583 = vector.load %arg11[%c0_157, %c0_158, %c0_159] : memref<1x8x128xf32, #tpu.memory_space<vmem>>, vector<1x1x128xf32>
    %584 = vector.shape_cast %583 : vector<1x1x128xf32> to vector<1x128xf32>
    %585 = vector.shape_cast %582 : vector<1x128xf32> to vector<1x1x128xf32>
    tpu.vector_store %arg11[%c0_157, %c0_158, %c0_159], %585 {strides = array<i32>} : memref<1x8x128xf32, #tpu.memory_space<vmem>>, vector<1x1x128xf32>,
    %586 = vector.shape_cast %570 : vector<1x1xf32> to vector<1x1xf32>
    %587 = vector.broadcast %586 : vector<1x1xf32> to vector<1x128xf32>
    %c0_160 = arith.constant 0 : index
    %c1 = arith.constant 1 : index
    %c0_161 = arith.constant 0 : index
    %588 = vector.load %arg11[%c0_160, %c1, %c0_161] : memref<1x8x128xf32, #tpu.memory_space<vmem>>, vector<1x1x128xf32>
    %589 = vector.shape_cast %588 : vector<1x1x128xf32> to vector<1x128xf32>
    %590 = vector.shape_cast %587 : vector<1x128xf32> to vector<1x1x128xf32>
    tpu.vector_store %arg11[%c0_160, %c1, %c0_161], %590 {strides = array<i32>} : memref<1x8x128xf32, #tpu.memory_space<vmem>>, vector<1x1x128xf32>,
    %591 = vector.shape_cast %572 : vector<1x1xf32> to vector<1x1xf32>
    %592 = vector.broadcast %591 : vector<1x1xf32> to vector<1x128xf32>
    %c0_162 = arith.constant 0 : index
    %c2 = arith.constant 2 : index
    %c0_163 = arith.constant 0 : index
    %593 = vector.load %arg11[%c0_162, %c2, %c0_163] : memref<1x8x128xf32, #tpu.memory_space<vmem>>, vector<1x1x128xf32>
    %594 = vector.shape_cast %593 : vector<1x1x128xf32> to vector<1x128xf32>
    %595 = vector.shape_cast %592 : vector<1x128xf32> to vector<1x1x128xf32>
    tpu.vector_store %arg11[%c0_162, %c2, %c0_163], %595 {strides = array<i32>} : memref<1x8x128xf32, #tpu.memory_space<vmem>>, vector<1x1x128xf32>,
    %596 = vector.shape_cast %574 : vector<1x1xf32> to vector<1x1xf32>
    %597 = vector.broadcast %596 : vector<1x1xf32> to vector<1x128xf32>
    %c0_164 = arith.constant 0 : index
    %c3 = arith.constant 3 : index
    %c0_165 = arith.constant 0 : index
    %598 = vector.load %arg11[%c0_164, %c3, %c0_165] : memref<1x8x128xf32, #tpu.memory_space<vmem>>, vector<1x1x128xf32>
    %599 = vector.shape_cast %598 : vector<1x1x128xf32> to vector<1x128xf32>
    %600 = vector.shape_cast %597 : vector<1x128xf32> to vector<1x1x128xf32>
    tpu.vector_store %arg11[%c0_164, %c3, %c0_165], %600 {strides = array<i32>} : memref<1x8x128xf32, #tpu.memory_space<vmem>>, vector<1x1x128xf32>,
    %601 = vector.shape_cast %576 : vector<1x1xf32> to vector<1x1xf32>
    %602 = vector.broadcast %601 : vector<1x1xf32> to vector<1x128xf32>
    %c0_166 = arith.constant 0 : index
    %c4 = arith.constant 4 : index
    %c0_167 = arith.constant 0 : index
    %603 = vector.load %arg11[%c0_166, %c4, %c0_167] : memref<1x8x128xf32, #tpu.memory_space<vmem>>, vector<1x1x128xf32>
    %604 = vector.shape_cast %603 : vector<1x1x128xf32> to vector<1x128xf32>
    %605 = vector.shape_cast %602 : vector<1x128xf32> to vector<1x1x128xf32>
    tpu.vector_store %arg11[%c0_166, %c4, %c0_167], %605 {strides = array<i32>} : memref<1x8x128xf32, #tpu.memory_space<vmem>>, vector<1x1x128xf32>,
    %606 = vector.shape_cast %578 : vector<1x1xf32> to vector<1x1xf32>
    %607 = vector.broadcast %606 : vector<1x1xf32> to vector<1x128xf32>
    %c0_168 = arith.constant 0 : index
    %c5 = arith.constant 5 : index
    %c0_169 = arith.constant 0 : index
    %608 = vector.load %arg11[%c0_168, %c5, %c0_169] : memref<1x8x128xf32, #tpu.memory_space<vmem>>, vector<1x1x128xf32>
    %609 = vector.shape_cast %608 : vector<1x1x128xf32> to vector<1x128xf32>
    %610 = vector.shape_cast %607 : vector<1x128xf32> to vector<1x1x128xf32>
    tpu.vector_store %arg11[%c0_168, %c5, %c0_169], %610 {strides = array<i32>} : memref<1x8x128xf32, #tpu.memory_space<vmem>>, vector<1x1x128xf32>,
    %611 = vector.shape_cast %580 : vector<1x1xf32> to vector<1x1xf32>
    %612 = vector.broadcast %611 : vector<1x1xf32> to vector<1x128xf32>
    %c0_170 = arith.constant 0 : index
    %c6 = arith.constant 6 : index
    %c0_171 = arith.constant 0 : index
    %613 = vector.load %arg11[%c0_170, %c6, %c0_171] : memref<1x8x128xf32, #tpu.memory_space<vmem>>, vector<1x1x128xf32>
    %614 = vector.shape_cast %613 : vector<1x1x128xf32> to vector<1x128xf32>
    %615 = vector.shape_cast %612 : vector<1x128xf32> to vector<1x1x128xf32>
    tpu.vector_store %arg11[%c0_170, %c6, %c0_171], %615 {strides = array<i32>} : memref<1x8x128xf32, #tpu.memory_space<vmem>>, vector<1x1x128xf32>,
    %cst_172 = arith.constant 0.000000e+00 : f32
    %616 = vector.broadcast %cst_172 : f32 to vector<1x1xf32>
    %617 = vector.shape_cast %616 : vector<1x1xf32> to vector<1x1xf32>
    %618 = vector.broadcast %617 : vector<1x1xf32> to vector<1x128xf32>
    %c0_173 = arith.constant 0 : index
    %c7 = arith.constant 7 : index
    %c0_174 = arith.constant 0 : index
    %619 = vector.load %arg11[%c0_173, %c7, %c0_174] : memref<1x8x128xf32, #tpu.memory_space<vmem>>, vector<1x1x128xf32>
    %620 = vector.shape_cast %619 : vector<1x1x128xf32> to vector<1x128xf32>
    %621 = vector.shape_cast %618 : vector<1x128xf32> to vector<1x1x128xf32>
    tpu.vector_store %arg11[%c0_173, %c7, %c0_174], %621 {strides = array<i32>} : memref<1x8x128xf32, #tpu.memory_space<vmem>>, vector<1x1x128xf32>,
    return
  }
  func.func @transform_0(%arg0: i32) -> (i32, i32, i32) {
    %c0_i32 = arith.constant 0 : i32
    %c0_i32_0 = arith.constant 0 : i32
    %c0_i32_1 = arith.constant 0 : i32
    return %arg0, %c0_i32, %c0_i32_0 : i32, i32, i32
  }
  func.func @transform_1(%arg0: i32) -> (i32, i32) {
    %c0_i32 = arith.constant 0 : i32
    %c0_i32_0 = arith.constant 0 : i32
    %c0_i32_1 = arith.constant 0 : i32
    return %c0_i32, %c0_i32_0 : i32, i32
  }
  func.func @transform_2(%arg0: i32) -> (i32, i32) {
    %c0_i32 = arith.constant 0 : i32
    %c0_i32_0 = arith.constant 0 : i32
    %c0_i32_1 = arith.constant 0 : i32
    return %c0_i32, %c0_i32_0 : i32, i32
  }
  func.func @transform_3(%arg0: i32) -> (i32, i32, i32) {
    %c0_i32 = arith.constant 0 : i32
    %c0_i32_0 = arith.constant 0 : i32
    %c0_i32_1 = arith.constant 0 : i32
    return %arg0, %c0_i32, %c0_i32_0 : i32, i32, i32
  }
  func.func @transform_4(%arg0: i32) -> (i32, i32, i32) {
    %c0_i32 = arith.constant 0 : i32
    %c0_i32_0 = arith.constant 0 : i32
    %c0_i32_1 = arith.constant 0 : i32
    return %arg0, %c0_i32, %c0_i32_0 : i32, i32, i32
  }
  func.func @transform_5(%arg0: i32) -> (i32, i32, i32) {
    %c0_i32 = arith.constant 0 : i32
    %c0_i32_0 = arith.constant 0 : i32
    %c0_i32_1 = arith.constant 0 : i32
    return %arg0, %c0_i32, %c0_i32_0 : i32, i32, i32
  }
  func.func @transform_6(%arg0: i32) -> (i32, i32, i32) {
    %c0_i32 = arith.constant 0 : i32
    %c0_i32_0 = arith.constant 0 : i32
    %c0_i32_1 = arith.constant 0 : i32
    return %arg0, %c0_i32, %c0_i32_0 : i32, i32, i32
  }
  func.func @transform_7(%arg0: i32) -> (i32, i32, i32) {
    %c0_i32 = arith.constant 0 : i32
    %c0_i32_0 = arith.constant 0 : i32
    %c0_i32_1 = arith.constant 0 : i32
    return %arg0, %c0_i32, %c0_i32_0 : i32, i32, i32
  }
  func.func @transform_8(%arg0: i32) -> (i32, i32, i32) {
    %c0_i32 = arith.constant 0 : i32
    %c0_i32_0 = arith.constant 0 : i32
    %c0_i32_1 = arith.constant 0 : i32
    return %arg0, %c0_i32, %c0_i32_0 : i32, i32, i32
  }
  func.func @transform_9(%arg0: i32) -> (i32, i32, i32) {
    %c0_i32 = arith.constant 0 : i32
    %c0_i32_0 = arith.constant 0 : i32
    %c0_i32_1 = arith.constant 0 : i32
    return %arg0, %c0_i32, %c0_i32_0 : i32, i32, i32
  }
  func.func @transform_10(%arg0: i32) -> (i32, i32, i32) {
    %c0_i32 = arith.constant 0 : i32
    %c0_i32_0 = arith.constant 0 : i32
    %c0_i32_1 = arith.constant 0 : i32
    return %arg0, %c0_i32, %c0_i32_0 : i32, i32, i32
  }
  func.func @transform_11(%arg0: i32) -> (i32, i32, i32) {
    %c0_i32 = arith.constant 0 : i32
    %c0_i32_0 = arith.constant 0 : i32
    %c0_i32_1 = arith.constant 0 : i32
    return %arg0, %c0_i32, %c0_i32_0 : i32, i32, i32
  }
}

</mosaic_0001>

<llo_original>
// kernel: tpu_custom_call.1
$region0: #{tpu_custom_call.1}
  #allocation0 [shape = 'u32[]', space=smem, size = 0x4, offset = 0x4, fixed_abs, tag = 'smem constant byte address 0x4 - core index']
  #allocation1 [shape = 'u32[144,128]{1,0:T(1,128)}', space=vmem, size = 0x12000, scoped, tag = 'internal scratch']
  %s0 = inlined_call_operand.vmem [shape: f32[2,8,256], index: 0, kind: input, shape index: {}]
  %s1 = inlined_call_operand.vmem [shape: f32[45,8], index: 1, kind: input, shape index: {}]
  %s2 = inlined_call_operand.vmem [shape: f32[45,1], index: 2, kind: input, shape index: {}]
  %s3 = inlined_call_operand.hbm [shape: f32[2,2,256], index: 3, kind: input, shape index: {}]
  %s4 = inlined_call_operand.vmem [shape: f32[2,16,256], index: 4, kind: input, shape index: {}]
  %s5 = inlined_call_operand.hbm [shape: f32[2,1,256], index: 5, kind: input, shape index: {}]
  %s6 = inlined_call_operand.vmem [shape: f32[2,4,256], index: 6, kind: input, shape index: {}]
  %s7 = inlined_call_operand.hbm [shape: f32[2,1,256], index: 7, kind: input, shape index: {}]
  %s8 = inlined_call_operand.hbm [shape: f32[2,1,256], index: 8, kind: input, shape index: {}]
  %s9 = inlined_call_operand.vmem [shape: f32[2,2,256], index: 9, kind: input, shape index: {}]
  %s10 = inlined_call_operand.hbm [shape: f32[2,8,128], index: 10, kind: output, shape index: {0}]
  %s11 = inlined_call_operand.vmem [shape: f32[2,45,256], index: 11, kind: output, shape index: {1}]
  %12 = xla_tuple %s10, %s11
  %s13 = sld [smem:[#allocation0]]
  $region97: #{tpu_custom_call.1} parent=0
    _
  %s15 = ssub.s32 1, %s13
  %s16 = scalar_select 0, %s15, %s13
  $region1: #{tpu_custom_call.1} parent=0
    #allocation2 [shape = 'u8[4096]{0}', space=vmem, size = 0x1000, scoped, tag = 'input window, operand 3']
    #allocation3 [shape = 's32[2]{0}', space=sflag, size = 0x8, scoped, tag = 'scoped memory for tpu_custom_call.1']
    #allocation4 [shape = 's32[2]{0}', space=sflag, size = 0x8, scoped, tag = 'scoped memory for tpu_custom_call.1']
    #allocation5 [shape = 'u8[2048]{0}', space=vmem, size = 0x800, scoped, tag = 'input window, operand 5']
    #allocation6 [shape = 's32[2]{0}', space=sflag, size = 0x8, scoped, tag = 'scoped memory for tpu_custom_call.1']
    #allocation7 [shape = 'u8[2048]{0}', space=vmem, size = 0x800, scoped, tag = 'input window, operand 7']
    #allocation8 [shape = 'u8[2048]{0}', space=vmem, size = 0x800, scoped, tag = 'input window, operand 8']
    #allocation9 [shape = 's32[2]{0}', space=sflag, size = 0x8, scoped, tag = 'scoped memory for tpu_custom_call.1']
    #allocation10 [shape = 'u8[8192]{0}', space=vmem, size = 0x2000, scoped, tag = 'output window, operand 0']
    %17 = vsyncpa [#allocation3], 0
    %s18 = scalar_lea.sflag [#allocation3], 1
    %19 = vsyncpa %s18, 0
    %20 = vsyncpa [#allocation6], 0
    %s21 = scalar_lea.sflag [#allocation6], 1
    %22 = vsyncpa %s21, 0
    %23 = vsyncpa [#allocation9], 0
    %s24 = scalar_lea.sflag [#allocation9], 1
    %25 = vsyncpa %s24, 0
    %26 = vsyncpa [#allocation4], 0
    %s27 = scalar_lea.sflag [#allocation4], 1
    %28 = vsyncpa %s27, 0
    loop: start=0, step=1, limit=4
    $region2: #{tpu_custom_call.1} parent=1 // loop_pre_header
      _
    $region3: #{tpu_custom_call.1} parent=1 // loop_header
      %s30 = sphi 0, %s34
      %p31 = scmp.ge.s32.totalorder %s30, 4
      %s40 = sphi 0, %s42
      %s43 = sphi 0, %s40
      %s44 = sphi 0, %s43
      %s60 = sphi 0, %s44
      %s64 = sphi 0, %s64
      %s66 = sphi 0, %s64
      %s67 = sphi 0, %s66
      %s81 = sphi 0, %s67
      %s85 = sphi 0, %s85
      %s87 = sphi 0, %s85
      %s88 = sphi 0, %s87
      %s102 = sphi 0, %s88
      %s108 = sphi 0, %s110
      %s111 = sphi 0, %s108
      %s112 = sphi 0, %s111
      %s128 = sphi 0, %s112
      %s134 = sphi 0, %s136
      %s137 = sphi 0, %s134
      %s138 = sphi 0, %s137
      %s154 = sphi 0, %s138
      %s160 = sphi 0, %s162
      %s163 = sphi 0, %s160
      %s164 = sphi 0, %s163
      %s180 = sphi 0, %s164
      %s186 = sphi 0, %s188
      %s189 = sphi 0, %s186
      %s190 = sphi 0, %s189
      %s206 = sphi 0, %s190
      %s212 = sphi 0, %s214
      %s215 = sphi 0, %s212
      %s216 = sphi 0, %s215
      %s232 = sphi 0, %s216
      %s238 = sphi 0, %s240
      %s241 = sphi 0, %s238
      %s242 = sphi 0, %s241
      %s258 = sphi 0, %s242
      %s264 = sphi 0, %s266
      %s267 = sphi 0, %s264
      %s268 = sphi 0, %s267
      %s284 = sphi 0, %s268
      %s290 = sphi 0, %s292
      %s293 = sphi 0, %s290
      %s294 = sphi 0, %s293
      %s310 = sphi 0, %s294
      %s316 = sphi 0, %s318
      %s319 = sphi 0, %s316
      %s320 = sphi 0, %s319
      %s336 = sphi 0, %s320
    $region4: #{tpu_custom_call.1} parent=1 // loop_header_branch
      %33 = sbr.rel (%p31) target = $region8
    $region5: #{tpu_custom_call.1} parent=1 // loop_body
      %s35 = ssub.s32 %s30, 1
      %s36 = ssub.s32 %s30, 2
      %s37 = sadd.s32 %s30, 1
      %s38 = ssub.s32 %s30, %s37
      %p39 = scmp.eq.s32.totalorder %s38, 0
      %s41 = sadd.s32 %s40, 1
      %s42 = scalar_select %p39, %s40, %s41
      %p45 = pneg %p39
      %p46 = scmp.eq.s32.totalorder %s30, 1
      %p47 = por %p45, %p46
      %p48 = scmp.ne.s32.totalorder %s40, %s43
      %p49 = scmp.eq.s32.totalorder %s30, 0
      %p50 = por %p48, %p49
      %p51 = scmp.ne.s32.totalorder %s40, %s43
      %p52 = scmp.eq.s32.totalorder %s35, 1
      %p53 = por %p51, %p52
      %p54 = scmp.ne.s32.totalorder %s43, %s44
      %p55 = scmp.eq.s32.totalorder %s35, 0
      %p56 = por %p54, %p55
      %p57 = scmp.ne.s32.totalorder %s43, %s44
      %p58 = scmp.eq.s32.totalorder %s36, 1
      %p59 = por %p57, %p58
      %p61 = scmp.ne.s32.totalorder %s44, %s60
      %p62 = scmp.eq.s32.totalorder %s36, 0
      %p63 = por %p61, %p62
      %s65 = sadd.s32 %s64, 1
      %p68 = scmp.eq.s32.totalorder %s30, 1
      %p69 = scmp.ne.s32.totalorder %s64, %s66
      %p70 = scmp.eq.s32.totalorder %s30, 0
      %p71 = por %p69, %p70
      %p72 = scmp.ne.s32.totalorder %s64, %s66
      %p73 = scmp.eq.s32.totalorder %s35, 1
      %p74 = por %p72, %p73
      %p75 = scmp.ne.s32.totalorder %s66, %s67
      %p76 = scmp.eq.s32.totalorder %s35, 0
      %p77 = por %p75, %p76
      %p78 = scmp.ne.s32.totalorder %s66, %s67
      %p79 = scmp.eq.s32.totalorder %s36, 1
      %p80 = por %p78, %p79
      %p82 = scmp.ne.s32.totalorder %s67, %s81
      %p83 = scmp.eq.s32.totalorder %s36, 0
      %p84 = por %p82, %p83
      %s86 = sadd.s32 %s85, 1
      %p89 = scmp.eq.s32.totalorder %s30, 1
      %p90 = scmp.ne.s32.totalorder %s85, %s87
      %p91 = scmp.eq.s32.totalorder %s30, 0
      %p92 = por %p90, %p91
      %p93 = scmp.ne.s32.totalorder %s85, %s87
      %p94 = scmp.eq.s32.totalorder %s35, 1
      %p95 = por %p93, %p94
      %p96 = scmp.ne.s32.totalorder %s87, %s88
      %p97 = scmp.eq.s32.totalorder %s35, 0
      %p98 = por %p96, %p97
      %p99 = scmp.ne.s32.totalorder %s87, %s88
      %p100 = scmp.eq.s32.totalorder %s36, 1
      %p101 = por %p99, %p100
      %p103 = scmp.ne.s32.totalorder %s88, %s102
      %p104 = scmp.eq.s32.totalorder %s36, 0
      %p105 = por %p103, %p104
      %s106 = ssub.s32 %s30, %s37
      %p107 = scmp.eq.s32.totalorder %s106, 0
      %s109 = sadd.s32 %s108, 1
      %s110 = scalar_select %p107, %s108, %s109
      %p113 = pneg %p107
      %p114 = scmp.eq.s32.totalorder %s30, 1
      %p115 = por %p113, %p114
      %p116 = scmp.ne.s32.totalorder %s108, %s111
      %p117 = scmp.eq.s32.totalorder %s30, 0
      %p118 = por %p116, %p117
      %p119 = scmp.ne.s32.totalorder %s108, %s111
      %p120 = scmp.eq.s32.totalorder %s35, 1
      %p121 = por %p119, %p120
      %p122 = scmp.ne.s32.totalorder %s111, %s112
      %p123 = scmp.eq.s32.totalorder %s35, 0
      %p124 = por %p122, %p123
      %p125 = scmp.ne.s32.totalorder %s111, %s112
      %p126 = scmp.eq.s32.totalorder %s36, 1
      %p127 = por %p125, %p126
      %p129 = scmp.ne.s32.totalorder %s112, %s128
      %p130 = scmp.eq.s32.totalorder %s36, 0
      %p131 = por %p129, %p130
      %s132 = ssub.s32 %s30, %s37
      %p133 = scmp.eq.s32.totalorder %s132, 0
      %s135 = sadd.s32 %s134, 1
      %s136 = scalar_select %p133, %s134, %s135
      %p139 = pneg %p133
      %p140 = scmp.eq.s32.totalorder %s30, 1
      %p141 = por %p139, %p140
      %p142 = scmp.ne.s32.totalorder %s134, %s137
      %p143 = scmp.eq.s32.totalorder %s30, 0
      %p144 = por %p142, %p143
      %p145 = scmp.ne.s32.totalorder %s134, %s137
      %p146 = scmp.eq.s32.totalorder %s35, 1
      %p147 = por %p145, %p146
      %p148 = scmp.ne.s32.totalorder %s137, %s138
      %p149 = scmp.eq.s32.totalorder %s35, 0
      %p150 = por %p148, %p149
      %p151 = scmp.ne.s32.totalorder %s137, %s138
      %p152 = scmp.eq.s32.totalorder %s36, 1
      %p153 = por %p151, %p152
      %p155 = scmp.ne.s32.totalorder %s138, %s154
      %p156 = scmp.eq.s32.totalorder %s36, 0
      %p157 = por %p155, %p156
      %s158 = ssub.s32 %s30, %s37
      %p159 = scmp.eq.s32.totalorder %s158, 0
      %s161 = sadd.s32 %s160, 1
      %s162 = scalar_select %p159, %s160, %s161
      %p165 = pneg %p159
      %p166 = scmp.eq.s32.totalorder %s30, 1
      %p167 = por %p165, %p166
      %p168 = scmp.ne.s32.totalorder %s160, %s163
      %p169 = scmp.eq.s32.totalorder %s30, 0
      %p170 = por %p168, %p169
      %p171 = scmp.ne.s32.totalorder %s160, %s163
      %p172 = scmp.eq.s32.totalorder %s35, 1
      %p173 = por %p171, %p172
      %p174 = scmp.ne.s32.totalorder %s163, %s164
      %p175 = scmp.eq.s32.totalorder %s35, 0
      %p176 = por %p174, %p175
      %p177 = scmp.ne.s32.totalorder %s163, %s164
      %p178 = scmp.eq.s32.totalorder %s36, 1
      %p179 = por %p177, %p178
      %p181 = scmp.ne.s32.totalorder %s164, %s180
      %p182 = scmp.eq.s32.totalorder %s36, 0
      %p183 = por %p181, %p182
      %s184 = ssub.s32 %s30, %s37
      %p185 = scmp.eq.s32.totalorder %s184, 0
      %s187 = sadd.s32 %s186, 1
      %s188 = scalar_select %p185, %s186, %s187
      %p191 = pneg %p185
      %p192 = scmp.eq.s32.totalorder %s30, 1
      %p193 = por %p191, %p192
      %p194 = scmp.ne.s32.totalorder %s186, %s189
      %p195 = scmp.eq.s32.totalorder %s30, 0
      %p196 = por %p194, %p195
      %p197 = scmp.ne.s32.totalorder %s186, %s189
      %p198 = scmp.eq.s32.totalorder %s35, 1
      %p199 = por %p197, %p198
      %p200 = scmp.ne.s32.totalorder %s189, %s190
      %p201 = scmp.eq.s32.totalorder %s35, 0
      %p202 = por %p200, %p201
      %p203 = scmp.ne.s32.totalorder %s189, %s190
      %p204 = scmp.eq.s32.totalorder %s36, 1
      %p205 = por %p203, %p204
      %p207 = scmp.ne.s32.totalorder %s190, %s206
      %p208 = scmp.eq.s32.totalorder %s36, 0
      %p209 = por %p207, %p208
      %s210 = ssub.s32 %s30, %s37
      %p211 = scmp.eq.s32.totalorder %s210, 0
      %s213 = sadd.s32 %s212, 1
      %s214 = scalar_select %p211, %s212, %s213
      %p217 = pneg %p211
      %p218 = scmp.eq.s32.totalorder %s30, 1
      %p219 = por %p217, %p218
      %p220 = scmp.ne.s32.totalorder %s212, %s215
      %p221 = scmp.eq.s32.totalorder %s30, 0
      %p222 = por %p220, %p221
      %p223 = scmp.ne.s32.totalorder %s212, %s215
      %p224 = scmp.eq.s32.totalorder %s35, 1
      %p225 = por %p223, %p224
      %p226 = scmp.ne.s32.totalorder %s215, %s216
      %p227 = scmp.eq.s32.totalorder %s35, 0
      %p228 = por %p226, %p227
      %p229 = scmp.ne.s32.totalorder %s215, %s216
      %p230 = scmp.eq.s32.totalorder %s36, 1
      %p231 = por %p229, %p230
      %p233 = scmp.ne.s32.totalorder %s216, %s232
      %p234 = scmp.eq.s32.totalorder %s36, 0
      %p235 = por %p233, %p234
      %s236 = ssub.s32 %s30, %s37
      %p237 = scmp.eq.s32.totalorder %s236, 0
      %s239 = sadd.s32 %s238, 1
      %s240 = scalar_select %p237, %s238, %s239
      %p243 = pneg %p237
      %p244 = scmp.eq.s32.totalorder %s30, 1
      %p245 = por %p243, %p244
      %p246 = scmp.ne.s32.totalorder %s238, %s241
      %p247 = scmp.eq.s32.totalorder %s30, 0
      %p248 = por %p246, %p247
      %p249 = scmp.ne.s32.totalorder %s238, %s241
      %p250 = scmp.eq.s32.totalorder %s35, 1
      %p251 = por %p249, %p250
      %p252 = scmp.ne.s32.totalorder %s241, %s242
      %p253 = scmp.eq.s32.totalorder %s35, 0
      %p254 = por %p252, %p253
      %p255 = scmp.ne.s32.totalorder %s241, %s242
      %p256 = scmp.eq.s32.totalorder %s36, 1
      %p257 = por %p255, %p256
      %p259 = scmp.ne.s32.totalorder %s242, %s258
      %p260 = scmp.eq.s32.totalorder %s36, 0
      %p261 = por %p259, %p260
      %s262 = ssub.s32 %s30, %s37
      %p263 = scmp.eq.s32.totalorder %s262, 0
      %s265 = sadd.s32 %s264, 1
      %s266 = scalar_select %p263, %s264, %s265
      %p269 = pneg %p263
      %p270 = scmp.eq.s32.totalorder %s30, 1
      %p271 = por %p269, %p270
      %p272 = scmp.ne.s32.totalorder %s264, %s267
      %p273 = scmp.eq.s32.totalorder %s30, 0
      %p274 = por %p272, %p273
      %p275 = scmp.ne.s32.totalorder %s264, %s267
      %p276 = scmp.eq.s32.totalorder %s35, 1
      %p277 = por %p275, %p276
      %p278 = scmp.ne.s32.totalorder %s267, %s268
      %p279 = scmp.eq.s32.totalorder %s35, 0
      %p280 = por %p278, %p279
      %p281 = scmp.ne.s32.totalorder %s267, %s268
      %p282 = scmp.eq.s32.totalorder %s36, 1
      %p283 = por %p281, %p282
      %p285 = scmp.ne.s32.totalorder %s268, %s284
      %p286 = scmp.eq.s32.totalorder %s36, 0
      %p287 = por %p285, %p286
      %s288 = ssub.s32 %s30, %s37
      %p289 = scmp.eq.s32.totalorder %s288, 0
      %s291 = sadd.s32 %s290, 1
      %s292 = scalar_select %p289, %s290, %s291
      %p295 = pneg %p289
      %p296 = scmp.eq.s32.totalorder %s30, 1
      %p297 = por %p295, %p296
      %p298 = scmp.ne.s32.totalorder %s290, %s293
      %p299 = scmp.eq.s32.totalorder %s30, 0
      %p300 = por %p298, %p299
      %p301 = scmp.ne.s32.totalorder %s290, %s293
      %p302 = scmp.eq.s32.totalorder %s35, 1
      %p303 = por %p301, %p302
      %p304 = scmp.ne.s32.totalorder %s293, %s294
      %p305 = scmp.eq.s32.totalorder %s35, 0
      %p306 = por %p304, %p305
      %p307 = scmp.ne.s32.totalorder %s293, %s294
      %p308 = scmp.eq.s32.totalorder %s36, 1
      %p309 = por %p307, %p308
      %p311 = scmp.ne.s32.totalorder %s294, %s310
      %p312 = scmp.eq.s32.totalorder %s36, 0
      %p313 = por %p311, %p312
      %s314 = ssub.s32 %s30, %s37
      %p315 = scmp.eq.s32.totalorder %s314, 0
      %s317 = sadd.s32 %s316, 1
      %s318 = scalar_select %p315, %s316, %s317
      %p321 = pneg %p315
      %p322 = scmp.eq.s32.totalorder %s30, 1
      %p323 = por %p321, %p322
      %p324 = scmp.ne.s32.totalorder %s316, %s319
      %p325 = scmp.eq.s32.totalorder %s30, 0
      %p326 = por %p324, %p325
      %p327 = scmp.ne.s32.totalorder %s316, %s319
      %p328 = scmp.eq.s32.totalorder %s35, 1
      %p329 = por %p327, %p328
      %p330 = scmp.ne.s32.totalorder %s319, %s320
      %p331 = scmp.eq.s32.totalorder %s35, 0
      %p332 = por %p330, %p331
      %p333 = scmp.ne.s32.totalorder %s319, %s320
      %p334 = scmp.eq.s32.totalorder %s36, 1
      %p335 = por %p333, %p334
      %p337 = scmp.ne.s32.totalorder %s320, %s336
      %p338 = scmp.eq.s32.totalorder %s36, 0
      %p339 = por %p337, %p338
      %p340 = scmp.le.s32.totalorder 1, %s30
      %p341 = scmp.lt.s32.totalorder %s30, 3
      %p342 = pnand %p340, %p341
      %p343 = pneg %p342
      // Predicated region
      $region9: #{tpu_custom_call.1} parent=5 // pred_check
        _
      $region10: #{tpu_custom_call.1} parent=5 // pred_check_branch
        %345 = sbr.rel (%p342) target = $region12
      $region11: #{tpu_custom_call.1} parent=5 // pred_region
        %s346 = ssub.s32 %s30, 1
        // Predicated region
        $region13: #{tpu_custom_call.1} parent=11 // pred_check
          %p347 = pneg %p77
        $region14: #{tpu_custom_call.1} parent=11 // pred_check_branch
          %349 = sbr.rel (%p347) target = $region16
        $region15: #{tpu_custom_call.1} parent=11 // pred_region
          _
        $region16: #{tpu_custom_call.1} parent=11 // pred_fallthru
          _
        // Predicated region
        $region17: #{tpu_custom_call.1} parent=11 // pred_check
          %p350 = pneg %p98
        $region18: #{tpu_custom_call.1} parent=11 // pred_check_branch
          %352 = sbr.rel (%p350) target = $region20
        $region19: #{tpu_custom_call.1} parent=11 // pred_region
          _
        $region20: #{tpu_custom_call.1} parent=11 // pred_fallthru
          _
      $region12: #{tpu_custom_call.1} parent=5 // pred_fallthru
        _
      %p353 = scmp.lt.s32.totalorder %s30, 2
      // Predicated region
      $region21: #{tpu_custom_call.1} parent=5 // pred_check
        %p354 = pneg %p353
      $region22: #{tpu_custom_call.1} parent=5 // pred_check_branch
        %356 = sbr.rel (%p354) target = $region24
      $region23: #{tpu_custom_call.1} parent=5 // pred_region
        // Predicated region
        $region25: #{tpu_custom_call.1} parent=23 // pred_check
          %p357 = pneg %p50
        $region26: #{tpu_custom_call.1} parent=23 // pred_check_branch
          %359 = sbr.rel (%p357) target = $region28
        $region27: #{tpu_custom_call.1} parent=23 // pred_region
          %p360 = scmp.lt.s32.totalorder %s30, 1
          %s361 = scalar_select %p360, %s30, 1
          %s362 = smul.addr %s361, 2
          %s363 = smul.addr %s362, 8
          %s364 = scalar_lea.vmem %s0, %s363
        $region28: #{tpu_custom_call.1} parent=23 // pred_fallthru
          _
        // Predicated region
        $region29: #{tpu_custom_call.1} parent=23 // pred_check
          %p365 = pneg %p118
        $region30: #{tpu_custom_call.1} parent=23 // pred_check_branch
          %367 = sbr.rel (%p365) target = $region32
        $region31: #{tpu_custom_call.1} parent=23 // pred_region
          %s368 = sand.u32 %s108, 1
          %s369 = scalar_lea.sflag [#allocation3], %s368
          %s370 = sand.u32 %s108, 1
          %s371 = smul.addr %s370, 4
          %s372 = scalar_lea.vmem [#allocation2], %s371
          %s374 = ssub.s32 64, 64
          %375 = vsyncadd %s369, %s374
          %s376 = smul.addr %s30, 2
          %s377 = smul.addr %s376, 32
          %s378 = scalar_lea.hbm %s3, %s377
          %s380 = sshll.u32 %s372, 4
          %s381 = int_to_ptr.vmem [resolvable:$true] %s380
          %383 = dma.hbm_to_vmem [thread:$0]  %s378, 64, %s381, %s369
        $region32: #{tpu_custom_call.1} parent=23 // pred_fallthru
          _
        // Predicated region
        $region33: #{tpu_custom_call.1} parent=23 // pred_check
          %p384 = pneg %p144
        $region34: #{tpu_custom_call.1} parent=23 // pred_check_branch
          %386 = sbr.rel (%p384) target = $region36
        $region35: #{tpu_custom_call.1} parent=23 // pred_region
          %p387 = scmp.lt.s32.totalorder %s30, 1
          %s388 = scalar_select %p387, %s30, 1
          %s389 = smul.addr %s388, 4
          %s390 = smul.addr %s389, 8
          %s391 = scalar_lea.vmem %s4, %s390
        $region36: #{tpu_custom_call.1} parent=23 // pred_fallthru
          _
        // Predicated region
        $region37: #{tpu_custom_call.1} parent=23 // pred_check
          %p392 = pneg %p170
        $region38: #{tpu_custom_call.1} parent=23 // pred_check_branch
          %394 = sbr.rel (%p392) target = $region40
        $region39: #{tpu_custom_call.1} parent=23 // pred_region
          %s395 = sand.u32 %s30, 1
          %s396 = scalar_lea.sflag [#allocation6], %s395
          %s397 = sand.u32 %s160, 1
          %s398 = smul.addr %s397, 2
          %s399 = scalar_lea.vmem [#allocation5], %s398
          %s401 = ssub.s32 32, 32
          %402 = vsyncadd %s396, %s401
          %s403 = smul.addr %s30, 2
          %s404 = smul.addr %s403, 16
          %s405 = scalar_lea.hbm %s5, %s404
          %s407 = sshll.u32 %s399, 4
          %s408 = int_to_ptr.vmem [resolvable:$true] %s407
          %410 = dma.hbm_to_vmem [thread:$0]  %s405, 32, %s408, %s396
        $region40: #{tpu_custom_call.1} parent=23 // pred_fallthru
          _
        // Predicated region
        $region41: #{tpu_custom_call.1} parent=23 // pred_check
          %p411 = pneg %p196
        $region42: #{tpu_custom_call.1} parent=23 // pred_check_branch
          %413 = sbr.rel (%p411) target = $region44
        $region43: #{tpu_custom_call.1} parent=23 // pred_region
          %p414 = scmp.lt.s32.totalorder %s30, 1
          %s415 = scalar_select %p414, %s30, 1
          %s416 = smul.addr %s415, 2
          %s417 = smul.addr %s416, 4
          %s418 = scalar_lea.vmem %s6, %s417
        $region44: #{tpu_custom_call.1} parent=23 // pred_fallthru
          _
        // Predicated region
        $region45: #{tpu_custom_call.1} parent=23 // pred_check
          %p419 = pneg %p222
        $region46: #{tpu_custom_call.1} parent=23 // pred_check_branch
          %421 = sbr.rel (%p419) target = $region48
        $region47: #{tpu_custom_call.1} parent=23 // pred_region
          %s422 = sand.u32 %s30, 1
          %s423 = scalar_lea.sflag [#allocation6], %s422
          %s424 = sand.u32 %s212, 1
          %s425 = smul.addr %s424, 2
          %s426 = scalar_lea.vmem [#allocation7], %s425
          %s428 = ssub.s32 32, 32
          %429 = vsyncadd %s423, %s428
          %s430 = smul.addr %s30, 2
          %s431 = smul.addr %s430, 16
          %s432 = scalar_lea.hbm %s7, %s431
          %s434 = sshll.u32 %s426, 4
          %s435 = int_to_ptr.vmem [resolvable:$true] %s434
          %437 = dma.hbm_to_vmem [thread:$0]  %s432, 32, %s435, %s423
        $region48: #{tpu_custom_call.1} parent=23 // pred_fallthru
          _
        // Predicated region
        $region49: #{tpu_custom_call.1} parent=23 // pred_check
          %p438 = pneg %p248
        $region50: #{tpu_custom_call.1} parent=23 // pred_check_branch
          %440 = sbr.rel (%p438) target = $region52
        $region51: #{tpu_custom_call.1} parent=23 // pred_region
          %s441 = sand.u32 %s238, 1
          %s442 = scalar_lea.sflag [#allocation9], %s441
          %s443 = sand.u32 %s238, 1
          %s444 = smul.addr %s443, 2
          %s445 = scalar_lea.vmem [#allocation8], %s444
          %s447 = ssub.s32 32, 32
          %448 = vsyncadd %s442, %s447
          %s449 = smul.addr %s30, 2
          %s450 = smul.addr %s449, 16
          %s451 = scalar_lea.hbm %s8, %s450
          %s453 = sshll.u32 %s445, 4
          %s454 = int_to_ptr.vmem [resolvable:$true] %s453
          %456 = dma.hbm_to_vmem [thread:$0]  %s451, 32, %s454, %s442
        $region52: #{tpu_custom_call.1} parent=23 // pred_fallthru
          _
        // Predicated region
        $region53: #{tpu_custom_call.1} parent=23 // pred_check
          %p457 = pneg %p274
        $region54: #{tpu_custom_call.1} parent=23 // pred_check_branch
          %459 = sbr.rel (%p457) target = $region56
        $region55: #{tpu_custom_call.1} parent=23 // pred_region
          %p460 = scmp.lt.s32.totalorder %s30, 1
          %s461 = scalar_select %p460, %s30, 1
          %s462 = smul.addr %s461, 2
          %s463 = smul.addr %s462, 2
          %s464 = scalar_lea.vmem %s9, %s463
        $region56: #{tpu_custom_call.1} parent=23 // pred_fallthru
          _
      $region24: #{tpu_custom_call.1} parent=5 // pred_fallthru
        _
      %p465 = scmp.le.s32.totalorder 1, %s30
      %p466 = scmp.lt.s32.totalorder %s30, 3
      %p467 = pnand %p465, %p466
      %p468 = pneg %p467
      // Predicated region
      $region57: #{tpu_custom_call.1} parent=5 // pred_check
        _
      $region58: #{tpu_custom_call.1} parent=5 // pred_check_branch
        %470 = sbr.rel (%p467) target = $region60
      $region59: #{tpu_custom_call.1} parent=5 // pred_region
        %s471 = ssub.s32 %s30, 1
        %s472 = sand.u32 %s111, 1
        %s473 = scalar_lea.sflag [#allocation3], %s472
        %s474 = sand.u32 %s111, 1
        %s475 = smul.addr %s474, 4
        %s476 = scalar_lea.vmem [#allocation2], %s475
        // Predicated region
        $region61: #{tpu_custom_call.1} parent=59 // pred_check
          %p477 = pneg %p124
        $region62: #{tpu_custom_call.1} parent=59 // pred_check_branch
          %479 = sbr.rel (%p477) target = $region64
        $region63: #{tpu_custom_call.1} parent=59 // pred_region
          %480 = dma.done %s473, 64
        $region64: #{tpu_custom_call.1} parent=59 // pred_fallthru
          _
        %s481 = sand.u32 %s35, 1
        %s482 = scalar_lea.sflag [#allocation6], %s481
        %s483 = sand.u32 %s163, 1
        %s484 = smul.addr %s483, 2
        %s485 = scalar_lea.vmem [#allocation5], %s484
        // Predicated region
        $region65: #{tpu_custom_call.1} parent=59 // pred_check
          %p486 = pneg %p176
        $region66: #{tpu_custom_call.1} parent=59 // pred_check_branch
          %488 = sbr.rel (%p486) target = $region68
        $region67: #{tpu_custom_call.1} parent=59 // pred_region
          %489 = dma.done %s482, 32
        $region68: #{tpu_custom_call.1} parent=59 // pred_fallthru
          _
        %s490 = sand.u32 %s35, 1
        %s491 = scalar_lea.sflag [#allocation6], %s490
        %s492 = sand.u32 %s215, 1
        %s493 = smul.addr %s492, 2
        %s494 = scalar_lea.vmem [#allocation7], %s493
        // Predicated region
        $region69: #{tpu_custom_call.1} parent=59 // pred_check
          %p495 = pneg %p228
        $region70: #{tpu_custom_call.1} parent=59 // pred_check_branch
          %497 = sbr.rel (%p495) target = $region72
        $region71: #{tpu_custom_call.1} parent=59 // pred_region
          %498 = dma.done %s491, 32
        $region72: #{tpu_custom_call.1} parent=59 // pred_fallthru
          _
        %s499 = sand.u32 %s241, 1
        %s500 = scalar_lea.sflag [#allocation9], %s499
        %s501 = sand.u32 %s241, 1
        %s502 = smul.addr %s501, 2
        %s503 = scalar_lea.vmem [#allocation8], %s502
        // Predicated region
        $region73: #{tpu_custom_call.1} parent=59 // pred_check
          %p504 = pneg %p254
        $region74: #{tpu_custom_call.1} parent=59 // pred_check_branch
          %506 = sbr.rel (%p504) target = $region76
        $region75: #{tpu_custom_call.1} parent=59 // pred_region
          %507 = dma.done %s500, 32
        $region76: #{tpu_custom_call.1} parent=59 // pred_fallthru
          _
        %p508 = scmp.lt.s32.totalorder %s35, 1
        %s509 = scalar_select %p508, %s35, 1
        %s510 = smul.addr %s509, 2
        %s511 = smul.addr %s510, 8
        %s512 = scalar_lea.vmem %s0, %s511
        %p513 = pneg %p56
        %p514 = pneg %p53
        %p515 = pneg %p77
        %p516 = pneg %p74
        %p517 = pneg %p98
        %p518 = pneg %p95
        %s519 = sand.u32 %s111, 1
        %s520 = scalar_lea.sflag [#allocation3], %s519
        %s521 = sand.u32 %s111, 1
        %s522 = smul.addr %s521, 4
        %s523 = scalar_lea.vmem [#allocation2], %s522
        %p524 = pneg %p124
        %p525 = pneg %p121
        %p526 = scmp.lt.s32.totalorder %s35, 1
        %s527 = scalar_select %p526, %s35, 1
        %s528 = smul.addr %s527, 4
        %s529 = smul.addr %s528, 8
        %s530 = scalar_lea.vmem %s4, %s529
        %p531 = pneg %p150
        %p532 = pneg %p147
        %s533 = sand.u32 %s35, 1
        %s534 = scalar_lea.sflag [#allocation6], %s533
        %s535 = sand.u32 %s163, 1
        %s536 = smul.addr %s535, 2
        %s537 = scalar_lea.vmem [#allocation5], %s536
        %p538 = pneg %p176
        %p539 = pneg %p173
        %p540 = scmp.lt.s32.totalorder %s35, 1
        %s541 = scalar_select %p540, %s35, 1
        %s542 = smul.addr %s541, 2
        %s543 = smul.addr %s542, 4
        %s544 = scalar_lea.vmem %s6, %s543
        %p545 = pneg %p202
        %p546 = pneg %p199
        %s547 = sand.u32 %s35, 1
        %s548 = scalar_lea.sflag [#allocation6], %s547
        %s549 = sand.u32 %s215, 1
        %s550 = smul.addr %s549, 2
        %s551 = scalar_lea.vmem [#allocation7], %s550
        %p552 = pneg %p228
        %p553 = pneg %p225
        %s554 = sand.u32 %s241, 1
        %s555 = scalar_lea.sflag [#allocation9], %s554
        %s556 = sand.u32 %s241, 1
        %s557 = smul.addr %s556, 2
        %s558 = scalar_lea.vmem [#allocation8], %s557
        %p559 = pneg %p254
        %p560 = pneg %p251
        %p561 = scmp.lt.s32.totalorder %s35, 1
        %s562 = scalar_select %p561, %s35, 1
        %s563 = smul.addr %s562, 2
        %s564 = smul.addr %s563, 2
        %s565 = scalar_lea.vmem %s9, %s564
        %p566 = pneg %p280
        %p567 = pneg %p277
        %p568 = pneg %p306
        %p569 = pneg %p303
        %s570 = sand.u32 %s293, 1
        %s571 = scalar_lea.sflag [#allocation4], %s570
        %s572 = sand.u32 %s293, 1
        %s573 = smul.addr %s572, 8
        %s574 = scalar_lea.vmem [#allocation10], %s573
        %p575 = pneg %p332
        %p576 = pneg %p329
        %p577 = scmp.lt.s32.totalorder %s35, 1
        %s578 = scalar_select %p577, %s35, 1
        %s579 = smul.addr %s578, 12
        %s580 = smul.addr %s579, 8
        %s581 = scalar_lea.vmem %s11, %s580
        %p582 = scmp.lt.s32.totalorder %s35, 1
        %s583 = scalar_select %p582, %s35, 1
        %s584 = smul.addr %s583, 2
        %s585 = smul.addr %s584, 8
        %s586 = scalar_lea.vmem %s0, %s585
        %p587 = scmp.lt.s32.totalorder %s35, 1
        %s588 = scalar_select %p587, %s35, 1
        %s589 = smul.addr %s588, 4
        %s590 = smul.addr %s589, 8
        %s591 = scalar_lea.vmem %s4, %s590
        %p592 = scmp.lt.s32.totalorder %s35, 1
        %s593 = scalar_select %p592, %s35, 1
        %s594 = smul.addr %s593, 2
        %s595 = smul.addr %s594, 4
        %s596 = scalar_lea.vmem %s6, %s595
        %p597 = scmp.lt.s32.totalorder %s35, 1
        %s598 = scalar_select %p597, %s35, 1
        %s599 = smul.addr %s598, 2
        %s600 = smul.addr %s599, 2
        %s601 = scalar_lea.vmem %s9, %s600
        %p602 = scmp.lt.s32.totalorder %s35, 1
        %s603 = scalar_select %p602, %s35, 1
        %s604 = smul.addr %s603, 12
        %s605 = smul.addr %s604, 8
        %s606 = scalar_lea.vmem %s11, %s605
        %v607 = vld [vmem:[%s586] sm:$0xff]
        %v608 = vld [vmem:[%s586 + $0x8] sm:$0xff]
        %v609 = vld [vmem:[%s1] sm:$0xff]
        %v610 = vld [vmem:[%s1 + $0x8] sm:$0xff]
        %v611 = vld [vmem:[%s1 + $0x10] sm:$0xff]
        %v612 = vld [vmem:[%s1 + $0x18] sm:$0xff]
        %v613 = vld [vmem:[%s1 + $0x20] sm:$0xff]
        %v614 = vld [vmem:[%s1 + $0x28] sm:$0x1f]
        %v615 = vld [vmem:[%s2] sm:$0xff]
        %v616 = vld [vmem:[%s2 + $0x8] sm:$0xff]
        %v617 = vld [vmem:[%s2 + $0x10] sm:$0xff]
        %v618 = vld [vmem:[%s2 + $0x18] sm:$0xff]
        %v619 = vld [vmem:[%s2 + $0x20] sm:$0xff]
        %v620 = vld [vmem:[%s2 + $0x28] sm:$0x1f]
        %622 = vset.pattern.permute.xlu0 0
        %623 = vperm.xlu0 %622, %v615
        %v624 = vpop.permute.xlu0 %623
        %627 = vset.pattern.permute.xlu0 0
        %628 = vperm.xlu0 %627, %v616
        %v629 = vpop.permute.xlu0 %628
        %632 = vset.pattern.permute.xlu0 0
        %633 = vperm.xlu0 %632, %v617
        %v634 = vpop.permute.xlu0 %633
        %637 = vset.pattern.permute.xlu0 0
        %638 = vperm.xlu0 %637, %v618
        %v639 = vpop.permute.xlu0 %638
        %642 = vset.pattern.permute.xlu0 0
        %643 = vperm.xlu0 %642, %v619
        %v644 = vpop.permute.xlu0 %643
        %647 = vset.pattern.permute.xlu0 0
        %648 = vperm.xlu0 %647, %v620
        %v649 = vpop.permute.xlu0 %648
        %652 = vset.pattern.permute.xlu0 0
        %653 = vperm.xlu0 %652, %v609
        %v654 = vpop.permute.xlu0 %653
        %657 = vset.pattern.permute.xlu0 0
        %658 = vperm.xlu0 %657, %v610
        %v659 = vpop.permute.xlu0 %658
        %662 = vset.pattern.permute.xlu0 0
        %663 = vperm.xlu0 %662, %v611
        %v664 = vpop.permute.xlu0 %663
        %667 = vset.pattern.permute.xlu0 0
        %668 = vperm.xlu0 %667, %v612
        %v669 = vpop.permute.xlu0 %668
        %672 = vset.pattern.permute.xlu0 0
        %673 = vperm.xlu0 %672, %v613
        %v674 = vpop.permute.xlu0 %673
        %677 = vset.pattern.permute.xlu0 0
        %678 = vperm.xlu0 %677, %v614
        %v679 = vpop.permute.xlu0 %678
        %v681 = vlaneseq
        %v682 = vshrl.u32 %v681, 7
        %v683 = vsub.s32 0, %v682
        %v684 = vrot.slane %v607, %v683
        %v685 = vlaneseq
        %v686 = vshrl.u32 %v685, 7
        %v687 = vsub.s32 0, %v686
        %v688 = vrot.slane %v608, %v687
        %v689 = vmul.f32 %v654, %v684
        %v690 = vmul.f32 %v654, %v688
        %v691 = vmul.f32 %v659, %v684
        %v692 = vmul.f32 %v659, %v688
        %v693 = vmul.f32 %v664, %v684
        %v694 = vmul.f32 %v664, %v688
        %v695 = vmul.f32 %v669, %v684
        %v696 = vmul.f32 %v669, %v688
        %v697 = vmul.f32 %v674, %v684
        %v698 = vmul.f32 %v674, %v688
        %v699 = vmul.f32 %v679, %v684
        %v700 = vmul.f32 %v679, %v688
        %v701 = vadd.f32 %v624, %v689
        %v702 = vadd.f32 %v624, %v690
        %v703 = vadd.f32 %v629, %v691
        %v704 = vadd.f32 %v629, %v692
        %v705 = vadd.f32 %v634, %v693
        %v706 = vadd.f32 %v634, %v694
        %v707 = vadd.f32 %v639, %v695
        %v708 = vadd.f32 %v639, %v696
        %v709 = vadd.f32 %v644, %v697
        %v710 = vadd.f32 %v644, %v698
        %v711 = vadd.f32 %v649, %v699
        %v712 = vadd.f32 %v649, %v700
        %713 = vset.pattern.permute.xlu0 1
        %714 = vperm.xlu0 %713, %v609
        %v715 = vpop.permute.xlu0 %714
        %717 = vset.pattern.permute.xlu0 1
        %718 = vperm.xlu0 %717, %v610
        %v719 = vpop.permute.xlu0 %718
        %721 = vset.pattern.permute.xlu0 1
        %722 = vperm.xlu0 %721, %v611
        %v723 = vpop.permute.xlu0 %722
        %725 = vset.pattern.permute.xlu0 1
        %726 = vperm.xlu0 %725, %v612
        %v727 = vpop.permute.xlu0 %726
        %729 = vset.pattern.permute.xlu0 1
        %730 = vperm.xlu0 %729, %v613
        %v731 = vpop.permute.xlu0 %730
        %733 = vset.pattern.permute.xlu0 1
        %734 = vperm.xlu0 %733, %v614
        %v735 = vpop.permute.xlu0 %734
        %v737 = vlaneseq
        %v738 = vshrl.u32 %v737, 7
        %v739 = vsub.s32 1, %v738
        %v740 = vrot.slane %v607, %v739
        %v741 = vlaneseq
        %v742 = vshrl.u32 %v741, 7
        %v743 = vsub.s32 1, %v742
        %v744 = vrot.slane %v608, %v743
        %v745 = vmul.f32 %v715, %v740
        %v746 = vmul.f32 %v715, %v744
        %v747 = vmul.f32 %v719, %v740
        %v748 = vmul.f32 %v719, %v744
        %v749 = vmul.f32 %v723, %v740
        %v750 = vmul.f32 %v723, %v744
        %v751 = vmul.f32 %v727, %v740
        %v752 = vmul.f32 %v727, %v744
        %v753 = vmul.f32 %v731, %v740
        %v754 = vmul.f32 %v731, %v744
        %v755 = vmul.f32 %v735, %v740
        %v756 = vmul.f32 %v735, %v744
        %v757 = vadd.f32 %v701, %v745
        %v758 = vadd.f32 %v702, %v746
        %v759 = vadd.f32 %v703, %v747
        %v760 = vadd.f32 %v704, %v748
        %v761 = vadd.f32 %v705, %v749
        %v762 = vadd.f32 %v706, %v750
        %v763 = vadd.f32 %v707, %v751
        %v764 = vadd.f32 %v708, %v752
        %v765 = vadd.f32 %v709, %v753
        %v766 = vadd.f32 %v710, %v754
        %v767 = vadd.f32 %v711, %v755
        %v768 = vadd.f32 %v712, %v756
        %769 = vset.pattern.permute.xlu0 2
        %770 = vperm.xlu0 %769, %v609
        %v771 = vpop.permute.xlu0 %770
        %773 = vset.pattern.permute.xlu0 2
        %774 = vperm.xlu0 %773, %v610
        %v775 = vpop.permute.xlu0 %774
        %777 = vset.pattern.permute.xlu0 2
        %778 = vperm.xlu0 %777, %v611
        %v779 = vpop.permute.xlu0 %778
        %781 = vset.pattern.permute.xlu0 2
        %782 = vperm.xlu0 %781, %v612
        %v783 = vpop.permute.xlu0 %782
        %785 = vset.pattern.permute.xlu0 2
        %786 = vperm.xlu0 %785, %v613
        %v787 = vpop.permute.xlu0 %786
        %789 = vset.pattern.permute.xlu0 2
        %790 = vperm.xlu0 %789, %v614
        %v791 = vpop.permute.xlu0 %790
        %v793 = vlaneseq
        %v794 = vshrl.u32 %v793, 7
        %v795 = vsub.s32 2, %v794
        %v796 = vrot.slane %v607, %v795
        %v797 = vlaneseq
        %v798 = vshrl.u32 %v797, 7
        %v799 = vsub.s32 2, %v798
        %v800 = vrot.slane %v608, %v799
        %v801 = vmul.f32 %v771, %v796
        %v802 = vmul.f32 %v771, %v800
        %v803 = vmul.f32 %v775, %v796
        %v804 = vmul.f32 %v775, %v800
        %v805 = vmul.f32 %v779, %v796
        %v806 = vmul.f32 %v779, %v800
        %v807 = vmul.f32 %v783, %v796
        %v808 = vmul.f32 %v783, %v800
        %v809 = vmul.f32 %v787, %v796
        %v810 = vmul.f32 %v787, %v800
        %v811 = vmul.f32 %v791, %v796
        %v812 = vmul.f32 %v791, %v800
        %v813 = vadd.f32 %v757, %v801
        %v814 = vadd.f32 %v758, %v802
        %v815 = vadd.f32 %v759, %v803
        %v816 = vadd.f32 %v760, %v804
        %v817 = vadd.f32 %v761, %v805
        %v818 = vadd.f32 %v762, %v806
        %v819 = vadd.f32 %v763, %v807
        %v820 = vadd.f32 %v764, %v808
        %v821 = vadd.f32 %v765, %v809
        %v822 = vadd.f32 %v766, %v810
        %v823 = vadd.f32 %v767, %v811
        %v824 = vadd.f32 %v768, %v812
        %825 = vset.pattern.permute.xlu0 3
        %826 = vperm.xlu0 %825, %v609
        %v827 = vpop.permute.xlu0 %826
        %829 = vset.pattern.permute.xlu0 3
        %830 = vperm.xlu0 %829, %v610
        %v831 = vpop.permute.xlu0 %830
        %833 = vset.pattern.permute.xlu0 3
        %834 = vperm.xlu0 %833, %v611
        %v835 = vpop.permute.xlu0 %834
        %837 = vset.pattern.permute.xlu0 3
        %838 = vperm.xlu0 %837, %v612
        %v839 = vpop.permute.xlu0 %838
        %841 = vset.pattern.permute.xlu0 3
        %842 = vperm.xlu0 %841, %v613
        %v843 = vpop.permute.xlu0 %842
        %845 = vset.pattern.permute.xlu0 3
        %846 = vperm.xlu0 %845, %v614
        %v847 = vpop.permute.xlu0 %846
        %v849 = vlaneseq
        %v850 = vshrl.u32 %v849, 7
        %v851 = vsub.s32 3, %v850
        %v852 = vrot.slane %v607, %v851
        %v853 = vlaneseq
        %v854 = vshrl.u32 %v853, 7
        %v855 = vsub.s32 3, %v854
        %v856 = vrot.slane %v608, %v855
        %v857 = vmul.f32 %v827, %v852
        %v858 = vmul.f32 %v827, %v856
        %v859 = vmul.f32 %v831, %v852
        %v860 = vmul.f32 %v831, %v856
        %v861 = vmul.f32 %v835, %v852
        %v862 = vmul.f32 %v835, %v856
        %v863 = vmul.f32 %v839, %v852
        %v864 = vmul.f32 %v839, %v856
        %v865 = vmul.f32 %v843, %v852
        %v866 = vmul.f32 %v843, %v856
        %v867 = vmul.f32 %v847, %v852
        %v868 = vmul.f32 %v847, %v856
        %v869 = vadd.f32 %v813, %v857
        %v870 = vadd.f32 %v814, %v858
        %v871 = vadd.f32 %v815, %v859
        %v872 = vadd.f32 %v816, %v860
        %v873 = vadd.f32 %v817, %v861
        %v874 = vadd.f32 %v818, %v862
        %v875 = vadd.f32 %v819, %v863
        %v876 = vadd.f32 %v820, %v864
        %v877 = vadd.f32 %v821, %v865
        %v878 = vadd.f32 %v822, %v866
        %v879 = vadd.f32 %v823, %v867
        %v880 = vadd.f32 %v824, %v868
        %881 = vset.pattern.permute.xlu0 4
        %882 = vperm.xlu0 %881, %v609
        %v883 = vpop.permute.xlu0 %882
        %885 = vset.pattern.permute.xlu0 4
        %886 = vperm.xlu0 %885, %v610
        %v887 = vpop.permute.xlu0 %886
        %889 = vset.pattern.permute.xlu0 4
        %890 = vperm.xlu0 %889, %v611
        %v891 = vpop.permute.xlu0 %890
        %893 = vset.pattern.permute.xlu0 4
        %894 = vperm.xlu0 %893, %v612
        %v895 = vpop.permute.xlu0 %894
        %897 = vset.pattern.permute.xlu0 4
        %898 = vperm.xlu0 %897, %v613
        %v899 = vpop.permute.xlu0 %898
        %901 = vset.pattern.permute.xlu0 4
        %902 = vperm.xlu0 %901, %v614
        %v903 = vpop.permute.xlu0 %902
        %v905 = vlaneseq
        %v906 = vshrl.u32 %v905, 7
        %v907 = vsub.s32 4, %v906
        %v908 = vrot.slane %v607, %v907
        %v909 = vlaneseq
        %v910 = vshrl.u32 %v909, 7
        %v911 = vsub.s32 4, %v910
        %v912 = vrot.slane %v608, %v911
        %v913 = vmul.f32 %v883, %v908
        %v914 = vmul.f32 %v883, %v912
        %v915 = vmul.f32 %v887, %v908
        %v916 = vmul.f32 %v887, %v912
        %v917 = vmul.f32 %v891, %v908
        %v918 = vmul.f32 %v891, %v912
        %v919 = vmul.f32 %v895, %v908
        %v920 = vmul.f32 %v895, %v912
        %v921 = vmul.f32 %v899, %v908
        %v922 = vmul.f32 %v899, %v912
        %v923 = vmul.f32 %v903, %v908
        %v924 = vmul.f32 %v903, %v912
        %v925 = vadd.f32 %v869, %v913
        %v926 = vadd.f32 %v870, %v914
        %v927 = vadd.f32 %v871, %v915
        %v928 = vadd.f32 %v872, %v916
        %v929 = vadd.f32 %v873, %v917
        %v930 = vadd.f32 %v874, %v918
        %v931 = vadd.f32 %v875, %v919
        %v932 = vadd.f32 %v876, %v920
        %v933 = vadd.f32 %v877, %v921
        %v934 = vadd.f32 %v878, %v922
        %v935 = vadd.f32 %v879, %v923
        %v936 = vadd.f32 %v880, %v924
        %937 = vset.pattern.permute.xlu0 5
        %938 = vperm.xlu0 %937, %v609
        %v939 = vpop.permute.xlu0 %938
        %941 = vset.pattern.permute.xlu0 5
        %942 = vperm.xlu0 %941, %v610
        %v943 = vpop.permute.xlu0 %942
        %945 = vset.pattern.permute.xlu0 5
        %946 = vperm.xlu0 %945, %v611
        %v947 = vpop.permute.xlu0 %946
        %949 = vset.pattern.permute.xlu0 5
        %950 = vperm.xlu0 %949, %v612
        %v951 = vpop.permute.xlu0 %950
        %953 = vset.pattern.permute.xlu0 5
        %954 = vperm.xlu0 %953, %v613
        %v955 = vpop.permute.xlu0 %954
        %957 = vset.pattern.permute.xlu0 5
        %958 = vperm.xlu0 %957, %v614
        %v959 = vpop.permute.xlu0 %958
        %v961 = vlaneseq
        %v962 = vshrl.u32 %v961, 7
        %v963 = vsub.s32 5, %v962
        %v964 = vrot.slane %v607, %v963
        %v965 = vlaneseq
        %v966 = vshrl.u32 %v965, 7
        %v967 = vsub.s32 5, %v966
        %v968 = vrot.slane %v608, %v967
        %v969 = vmul.f32 %v939, %v964
        %v970 = vmul.f32 %v939, %v968
        %v971 = vmul.f32 %v943, %v964
        %v972 = vmul.f32 %v943, %v968
        %v973 = vmul.f32 %v947, %v964
        %v974 = vmul.f32 %v947, %v968
        %v975 = vmul.f32 %v951, %v964
        %v976 = vmul.f32 %v951, %v968
        %v977 = vmul.f32 %v955, %v964
        %v978 = vmul.f32 %v955, %v968
        %v979 = vmul.f32 %v959, %v964
        %v980 = vmul.f32 %v959, %v968
        %v981 = vadd.f32 %v925, %v969
        %v982 = vadd.f32 %v926, %v970
        %v983 = vadd.f32 %v927, %v971
        %v984 = vadd.f32 %v928, %v972
        %v985 = vadd.f32 %v929, %v973
        %v986 = vadd.f32 %v930, %v974
        %v987 = vadd.f32 %v931, %v975
        %v988 = vadd.f32 %v932, %v976
        %v989 = vadd.f32 %v933, %v977
        %v990 = vadd.f32 %v934, %v978
        %v991 = vadd.f32 %v935, %v979
        %v992 = vadd.f32 %v936, %v980
        %993 = vset.pattern.permute.xlu0 6
        %994 = vperm.xlu0 %993, %v609
        %v995 = vpop.permute.xlu0 %994
        %997 = vset.pattern.permute.xlu0 6
        %998 = vperm.xlu0 %997, %v610
        %v999 = vpop.permute.xlu0 %998
        %1001 = vset.pattern.permute.xlu0 6
        %1002 = vperm.xlu0 %1001, %v611
        %v1003 = vpop.permute.xlu0 %1002
        %1005 = vset.pattern.permute.xlu0 6
        %1006 = vperm.xlu0 %1005, %v612
        %v1007 = vpop.permute.xlu0 %1006
        %1009 = vset.pattern.permute.xlu0 6
        %1010 = vperm.xlu0 %1009, %v613
        %v1011 = vpop.permute.xlu0 %1010
        %1013 = vset.pattern.permute.xlu0 6
        %1014 = vperm.xlu0 %1013, %v614
        %v1015 = vpop.permute.xlu0 %1014
        %v1017 = vlaneseq
        %v1018 = vshrl.u32 %v1017, 7
        %v1019 = vsub.s32 6, %v1018
        %v1020 = vrot.slane %v607, %v1019
        %v1021 = vlaneseq
        %v1022 = vshrl.u32 %v1021, 7
        %v1023 = vsub.s32 6, %v1022
        %v1024 = vrot.slane %v608, %v1023
        %v1025 = vmul.f32 %v995, %v1020
        %v1026 = vmul.f32 %v995, %v1024
        %v1027 = vmul.f32 %v999, %v1020
        %v1028 = vmul.f32 %v999, %v1024
        %v1029 = vmul.f32 %v1003, %v1020
        %v1030 = vmul.f32 %v1003, %v1024
        %v1031 = vmul.f32 %v1007, %v1020
        %v1032 = vmul.f32 %v1007, %v1024
        %v1033 = vmul.f32 %v1011, %v1020
        %v1034 = vmul.f32 %v1011, %v1024
        %v1035 = vmul.f32 %v1015, %v1020
        %v1036 = vmul.f32 %v1015, %v1024
        %v1037 = vadd.f32 %v981, %v1025
        %v1038 = vadd.f32 %v982, %v1026
        %v1039 = vadd.f32 %v983, %v1027
        %v1040 = vadd.f32 %v984, %v1028
        %v1041 = vadd.f32 %v985, %v1029
        %v1042 = vadd.f32 %v986, %v1030
        %v1043 = vadd.f32 %v987, %v1031
        %v1044 = vadd.f32 %v988, %v1032
        %v1045 = vadd.f32 %v989, %v1033
        %v1046 = vadd.f32 %v990, %v1034
        %v1047 = vadd.f32 %v991, %v1035
        %v1048 = vadd.f32 %v992, %v1036
        %1049 = vset.pattern.permute.xlu0 7
        %1050 = vperm.xlu0 %1049, %v609
        %v1051 = vpop.permute.xlu0 %1050
        %1053 = vset.pattern.permute.xlu0 7
        %1054 = vperm.xlu0 %1053, %v610
        %v1055 = vpop.permute.xlu0 %1054
        %1057 = vset.pattern.permute.xlu0 7
        %1058 = vperm.xlu0 %1057, %v611
        %v1059 = vpop.permute.xlu0 %1058
        %1061 = vset.pattern.permute.xlu0 7
        %1062 = vperm.xlu0 %1061, %v612
        %v1063 = vpop.permute.xlu0 %1062
        %1065 = vset.pattern.permute.xlu0 7
        %1066 = vperm.xlu0 %1065, %v613
        %v1067 = vpop.permute.xlu0 %1066
        %1069 = vset.pattern.permute.xlu0 7
        %1070 = vperm.xlu0 %1069, %v614
        %v1071 = vpop.permute.xlu0 %1070
        %v1073 = vlaneseq
        %v1074 = vshrl.u32 %v1073, 7
        %v1075 = vsub.s32 7, %v1074
        %v1076 = vrot.slane %v607, %v1075
        %v1077 = vlaneseq
        %v1078 = vshrl.u32 %v1077, 7
        %v1079 = vsub.s32 7, %v1078
        %v1080 = vrot.slane %v608, %v1079
        %v1081 = vmul.f32 %v1051, %v1076
        %v1082 = vmul.f32 %v1051, %v1080
        %v1083 = vmul.f32 %v1055, %v1076
        %v1084 = vmul.f32 %v1055, %v1080
        %v1085 = vmul.f32 %v1059, %v1076
        %v1086 = vmul.f32 %v1059, %v1080
        %v1087 = vmul.f32 %v1063, %v1076
        %v1088 = vmul.f32 %v1063, %v1080
        %v1089 = vmul.f32 %v1067, %v1076
        %v1090 = vmul.f32 %v1067, %v1080
        %v1091 = vmul.f32 %v1071, %v1076
        %v1092 = vmul.f32 %v1071, %v1080
        %v1093 = vadd.f32 %v1037, %v1081
        %v1094 = vadd.f32 %v1038, %v1082
        %v1095 = vadd.f32 %v1039, %v1083
        %v1096 = vadd.f32 %v1040, %v1084
        %v1097 = vadd.f32 %v1041, %v1085
        %v1098 = vadd.f32 %v1042, %v1086
        %v1099 = vadd.f32 %v1043, %v1087
        %v1100 = vadd.f32 %v1044, %v1088
        %v1101 = vadd.f32 %v1045, %v1089
        %v1102 = vadd.f32 %v1046, %v1090
        %v1103 = vadd.f32 %v1047, %v1091
        %v1104 = vadd.f32 %v1048, %v1092
        %1105 = vst [vmem:[%s606] sm:$0xff] %v1093
        %1106 = vst [vmem:[%s606 + $0x8] sm:$0xff] %v1094
        %1107 = vst [vmem:[%s606 + $0x10] sm:$0xff] %v1095
        %1108 = vst [vmem:[%s606 + $0x18] sm:$0xff] %v1096
        %1109 = vst [vmem:[%s606 + $0x20] sm:$0xff] %v1097
        %1110 = vst [vmem:[%s606 + $0x28] sm:$0xff] %v1098
        %1111 = vst [vmem:[%s606 + $0x30] sm:$0xff] %v1099
        %1112 = vst [vmem:[%s606 + $0x38] sm:$0xff] %v1100
        %1113 = vst [vmem:[%s606 + $0x40] sm:$0xff] %v1101
        %1114 = vst [vmem:[%s606 + $0x48] sm:$0xff] %v1102
        %1115 = vst [vmem:[%s606 + $0x50] sm:$0x1f] %v1103
        %1116 = vst [vmem:[%s606 + $0x58] sm:$0x1f] %v1104
        %v1117 = vld [vmem:[%s476] sm:$0xf]
        %v1118 = vld [vmem:[%s591] sm:$0xff]
        %v1119 = vld [vmem:[%s591 + $0x8] sm:$0xff]
        %v1120 = vld [vmem:[%s591 + $0x10] sm:$0xff]
        %v1121 = vld [vmem:[%s591 + $0x18] sm:$0xff]
        %v1122 = vld [vmem:[%s485] sm:$0x3]
        %v1123 = vld [vmem:[%s596] sm:$0xff]
        %v1124 = vld [vmem:[%s494] sm:$0x3]
        %v1125 = vld [vmem:[%s503] sm:$0x3]
        %v1126 = vld [vmem:[%s601] sm:$0xf]
        %v1128 = vlaneseq
        %v1129 = vshrl.u32 %v1128, 7
        %v1130 = vsub.s32 0, %v1129
        %v1131 = vrot.slane %v1117, %v1130
        %v1132 = vlaneseq
        %v1133 = vshrl.u32 %v1132, 7
        %v1134 = vsub.s32 2, %v1133
        %v1135 = vrot.slane %v1117, %v1134
        %vm1138 = vcmask 1040384
        %v1139 = vsel %vm1138, %v1131, 0.0
        %v1140 = vsel %vm1138, %v1135, 0.0
        %v1141 = vadd.f32 %v1139, %v1140
        %1142 = vadd.xlane.f32.xlu0 %v1141
        %v1143 = vpop.xlane.xlu0 %1142
        %v1144 = vrcp.pop 256.0
        %v1145 = vmul.f32 %v1143, %v1144
        %vm1146 = vcmp.eq.f32.partialorder %v1145, 0.0
        %v1147 = vsel %vm1146, 1.0, %v1145
        %v1148 = vrcp.pop %v1147
        %v1149 = vmul.f32 1.0, %v1148
        %v1150 = vlaneseq
        %v1151 = vshrl.u32 %v1150, 7
        %v1152 = vsub.s32 1, %v1151
        %v1153 = vrot.slane %v1117, %v1152
        %v1154 = vlaneseq
        %v1155 = vshrl.u32 %v1154, 7
        %v1156 = vsub.s32 3, %v1155
        %v1157 = vrot.slane %v1117, %v1156
        %vm1160 = vcmask 1041409
        %v1161 = vsel %vm1160, %v1153, 0.0
        %v1162 = vsel %vm1160, %v1157, 0.0
        %v1163 = vadd.f32 %v1161, %v1162
        %1164 = vadd.xlane.f32.xlu0 %v1163
        %v1165 = vpop.xlane.xlu0 %1164
        %v1166 = vmul.f32 %v1165, %v1144
        %vm1167 = vcmp.eq.f32.partialorder %v1166, 0.0
        %v1168 = vsel %vm1167, 1.0, %v1166
        %v1169 = vrcp.pop %v1168
        %v1170 = vmul.f32 1.0, %v1169
        %v1173 = vrot.slane %v1093, 7
        %v1174 = vrot.slane %v1094, 7
        %v1177 = vsub.f32 %v1093, %v1173
        %v1178 = vsub.f32 %v1094, %v1174
        %v1179 = vmax.f32 %v1177, 0.0
        %v1180 = vmax.f32 %v1178, 0.0
        %v1181 = vand.u32 2147483647, %v1177
        %v1182 = vand.u32 2147483647, %v1178
        %v1183 = vsub.f32 0.0, %v1181
        %v1184 = vsub.f32 0.0, %v1182
        %v1185 = vmul.f32 %v1183, 1.442695
        %v1186 = vpow.pop %v1185
        %v1187 = vmul.f32 %v1184, 1.442695
        %v1188 = vpow.pop %v1187
        %v1189 = vadd.f32 %v1186, 1.0
        %v1190 = vadd.f32 %v1188, 1.0
        %v1191 = vlog2.pop %v1189
        %v1192 = vmul.f32 %v1191, 0.6931472
        %v1193 = vlog2.pop %v1190
        %v1194 = vmul.f32 %v1193, 0.6931472
        %v1195 = vadd.f32 %v1179, %v1192
        %v1196 = vadd.f32 %v1180, %v1194
        %v1199 = vcombine.low %v1177, %v1178
        %v1201 = vunpack.c.l.s4 1983009808
        %v1202 = vunpack.c.0.s8 %v1201
        %v1203 = vlaneseq
        %v1204 = vshrl.u32 %v1203, 7
        %v1205 = vsub.s32 %v1202, %v1204
        %v1206 = vrot.slane %v1199, %v1205
        %v1207 = vrot.slane %v1206, 7
        %v1208 = vrot.slane %v1207, 2
        %v1210 = vmul.f32 %v1117, %v1208
        %v1212 = vlaneseq
        %v1213 = vshrl.u32 %v1212, 7
        %v1214 = vsub.s32 0, %v1213
        %v1215 = vrot.slane %v1210, %v1214
        %v1216 = vlaneseq
        %v1217 = vshrl.u32 %v1216, 7
        %v1218 = vsub.s32 2, %v1217
        %v1219 = vrot.slane %v1210, %v1218
        %v1222 = vsub.f32 %v1195, %v1215
        %v1223 = vsub.f32 %v1196, %v1219
        %v1224 = vsel %vm1160, %v1222, 0.0
        %v1225 = vsel %vm1160, %v1223, 0.0
        %v1226 = vadd.f32 %v1224, %v1225
        %1227 = vadd.xlane.f32.xlu0 %v1226
        %v1228 = vpop.xlane.xlu0 %1227
        %v1229 = vmul.f32 %v1228, %v1144
        %v1230 = vcombine.high %v1206, %v1206
        %v1232 = vmul.f32 %v1117, %v1230
        %v1234 = vlaneseq
        %v1235 = vshrl.u32 %v1234, 7
        %v1236 = vsub.s32 1, %v1235
        %v1237 = vrot.slane %v1232, %v1236
        %v1238 = vlaneseq
        %v1239 = vshrl.u32 %v1238, 7
        %v1240 = vsub.s32 3, %v1239
        %v1241 = vrot.slane %v1232, %v1240
        %v1244 = vsub.f32 %v1195, %v1237
        %v1245 = vsub.f32 %v1196, %v1241
        %vm1246 = vcmask 1043459
        %v1247 = vsel %vm1246, %v1244, 0.0
        %v1248 = vsel %vm1246, %v1245, 0.0
        %v1249 = vadd.f32 %v1247, %v1248
        %1250 = vadd.xlane.f32.xlu0 %v1249
        %v1251 = vpop.xlane.xlu0 %1250
        %v1252 = vmul.f32 %v1251, %v1144
        %v1254 = vrot.slane %v1252, 2
        %v1256 = vadd.f32 %v1229, %v1254
        %v1257 = vrot.slane %v1177, 5
        %v1258 = vrot.slane %v1178, 5
        %v1261 = vmul.f32 %v1118, %v1257
        %v1262 = vmul.f32 %v1119, %v1258
        %v1265 = vrot.slane %v1261, 3
        %v1266 = vrot.slane %v1262, 3
        %v1269 = vsub.f32 %v1195, %v1265
        %v1270 = vsub.f32 %v1196, %v1266
        %vm1271 = vcmask 1045509
        %v1272 = vsel %vm1271, %v1269, 0.0
        %v1273 = vsel %vm1271, %v1270, 0.0
        %v1274 = vadd.f32 %v1272, %v1273
        %1275 = vadd.xlane.f32.xlu0 %v1274
        %v1276 = vpop.xlane.xlu0 %1275
        %v1277 = vmul.f32 %v1276, %v1144
        %v1278 = vadd.f32 %v1277, 0.0
        %v1279 = vrot.slane %v1177, 6
        %v1280 = vrot.slane %v1178, 6
        %v1283 = vmul.f32 %v1118, %v1279
        %v1284 = vmul.f32 %v1119, %v1280
        %v1287 = vrot.slane %v1283, 2
        %v1288 = vrot.slane %v1284, 2
        %v1291 = vsub.f32 %v1195, %v1287
        %v1292 = vsub.f32 %v1196, %v1288
        %vm1293 = vcmask 1047559
        %v1294 = vsel %vm1293, %v1291, 0.0
        %v1295 = vsel %vm1293, %v1292, 0.0
        %v1296 = vadd.f32 %v1294, %v1295
        %1297 = vadd.xlane.f32.xlu0 %v1296
        %v1298 = vpop.xlane.xlu0 %1297
        %v1299 = vmul.f32 %v1298, %v1144
        %v1301 = vrot.slane %v1299, 2
        %v1303 = vadd.f32 %v1278, %v1301
        %v1306 = vrot.slane %v1095, 7
        %v1307 = vrot.slane %v1096, 7
        %v1310 = vsub.f32 %v1095, %v1306
        %v1311 = vsub.f32 %v1096, %v1307
        %v1312 = vmax.f32 %v1310, 0.0
        %v1313 = vmax.f32 %v1311, 0.0
        %v1314 = vand.u32 2147483647, %v1310
        %v1315 = vand.u32 2147483647, %v1311
        %v1316 = vsub.f32 0.0, %v1314
        %v1317 = vsub.f32 0.0, %v1315
        %v1318 = vmul.f32 %v1316, 1.442695
        %v1319 = vpow.pop %v1318
        %v1320 = vmul.f32 %v1317, 1.442695
        %v1321 = vpow.pop %v1320
        %v1322 = vadd.f32 %v1319, 1.0
        %v1323 = vadd.f32 %v1321, 1.0
        %v1324 = vlog2.pop %v1322
        %v1325 = vmul.f32 %v1324, 0.6931472
        %v1326 = vlog2.pop %v1323
        %v1327 = vmul.f32 %v1326, 0.6931472
        %v1328 = vadd.f32 %v1312, %v1325
        %v1329 = vadd.f32 %v1313, %v1327
        %v1332 = vrot.slane %v1310, 7
        %v1333 = vrot.slane %v1311, 7
        %v1336 = vmul.f32 %v1118, %v1332
        %v1337 = vmul.f32 %v1119, %v1333
        %v1340 = vrot.slane %v1336, 1
        %v1341 = vrot.slane %v1337, 1
        %v1344 = vsub.f32 %v1328, %v1340
        %v1345 = vsub.f32 %v1329, %v1341
        %v1346 = vsel %vm1160, %v1344, 0.0
        %v1347 = vsel %vm1160, %v1345, 0.0
        %v1348 = vadd.f32 %v1346, %v1347
        %1349 = vadd.xlane.f32.xlu0 %v1348
        %v1350 = vpop.xlane.xlu0 %1349
        %v1351 = vmul.f32 %v1350, %v1144
        %v1353 = vrot.slane %v1351, 4
        %v1355 = vadd.f32 %v1303, %v1353
        %v1356 = vmul.f32 %v1118, %v1310
        %v1357 = vmul.f32 %v1119, %v1311
        %v1358 = vsub.f32 %v1328, %v1356
        %v1359 = vsub.f32 %v1329, %v1357
        %v1360 = vsel %vm1246, %v1358, 0.0
        %v1361 = vsel %vm1246, %v1359, 0.0
        %v1362 = vadd.f32 %v1360, %v1361
        %1363 = vadd.xlane.f32.xlu0 %v1362
        %v1364 = vpop.xlane.xlu0 %1363
        %v1365 = vmul.f32 %v1364, %v1144
        %v1367 = vrot.slane %v1365, 6
        %v1369 = vadd.f32 %v1355, %v1367
        %v1370 = vrot.slane %v1310, 1
        %v1371 = vrot.slane %v1311, 1
        %v1374 = vmul.f32 %v1118, %v1370
        %v1375 = vmul.f32 %v1119, %v1371
        %v1378 = vrot.slane %v1374, 7
        %v1379 = vrot.slane %v1375, 7
        %v1382 = vsub.f32 %v1328, %v1378
        %v1383 = vsub.f32 %v1329, %v1379
        %v1384 = vsel %vm1271, %v1382, 0.0
        %v1385 = vsel %vm1271, %v1383, 0.0
        %v1386 = vadd.f32 %v1384, %v1385
        %1387 = vadd.xlane.f32.xlu0 %v1386
        %v1388 = vpop.xlane.xlu0 %1387
        %v1389 = vmul.f32 %v1388, %v1144
        %v1390 = vadd.f32 %v1369, %v1389
        %v1391 = vrot.slane %v1310, 2
        %v1392 = vrot.slane %v1311, 2
        %v1395 = vmul.f32 %v1118, %v1391
        %v1396 = vmul.f32 %v1119, %v1392
        %v1399 = vrot.slane %v1395, 6
        %v1400 = vrot.slane %v1396, 6
        %v1403 = vsub.f32 %v1328, %v1399
        %v1404 = vsub.f32 %v1329, %v1400
        %v1405 = vsel %vm1293, %v1403, 0.0
        %v1406 = vsel %vm1293, %v1404, 0.0
        %v1407 = vadd.f32 %v1405, %v1406
        %1408 = vadd.xlane.f32.xlu0 %v1407
        %v1409 = vpop.xlane.xlu0 %1408
        %v1410 = vmul.f32 %v1409, %v1144
        %v1412 = vrot.slane %v1410, 2
        %v1414 = vadd.f32 %v1390, %v1412
        %v1417 = vrot.slane %v1097, 7
        %v1418 = vrot.slane %v1098, 7
        %v1421 = vsub.f32 %v1097, %v1417
        %v1422 = vsub.f32 %v1098, %v1418
        %v1423 = vmax.f32 %v1421, 0.0
        %v1424 = vmax.f32 %v1422, 0.0
        %v1425 = vand.u32 2147483647, %v1421
        %v1426 = vand.u32 2147483647, %v1422
        %v1427 = vsub.f32 0.0, %v1425
        %v1428 = vsub.f32 0.0, %v1426
        %v1429 = vmul.f32 %v1427, 1.442695
        %v1430 = vpow.pop %v1429
        %v1431 = vmul.f32 %v1428, 1.442695
        %v1432 = vpow.pop %v1431
        %v1433 = vadd.f32 %v1430, 1.0
        %v1434 = vadd.f32 %v1432, 1.0
        %v1435 = vlog2.pop %v1433
        %v1436 = vmul.f32 %v1435, 0.6931472
        %v1437 = vlog2.pop %v1434
        %v1438 = vmul.f32 %v1437, 0.6931472
        %v1439 = vadd.f32 %v1423, %v1436
        %v1440 = vadd.f32 %v1424, %v1438
        %v1443 = vrot.slane %v1421, 3
        %v1444 = vrot.slane %v1422, 3
        %v1447 = vmul.f32 %v1118, %v1443
        %v1448 = vmul.f32 %v1119, %v1444
        %v1451 = vrot.slane %v1447, 5
        %v1452 = vrot.slane %v1448, 5
        %v1455 = vsub.f32 %v1439, %v1451
        %v1456 = vsub.f32 %v1440, %v1452
        %v1457 = vsel %vm1160, %v1455, 0.0
        %v1458 = vsel %vm1160, %v1456, 0.0
        %v1459 = vadd.f32 %v1457, %v1458
        %1460 = vadd.xlane.f32.xlu0 %v1459
        %v1461 = vpop.xlane.xlu0 %1460
        %v1462 = vmul.f32 %v1461, %v1144
        %v1464 = vrot.slane %v1462, 4
        %v1466 = vadd.f32 %v1414, %v1464
        %v1467 = vrot.slane %v1421, 4
        %v1468 = vrot.slane %v1422, 4
        %v1471 = vmul.f32 %v1118, %v1467
        %v1472 = vmul.f32 %v1119, %v1468
        %v1475 = vrot.slane %v1471, 4
        %v1476 = vrot.slane %v1472, 4
        %v1479 = vsub.f32 %v1439, %v1475
        %v1480 = vsub.f32 %v1440, %v1476
        %v1481 = vsel %vm1246, %v1479, 0.0
        %v1482 = vsel %vm1246, %v1480, 0.0
        %v1483 = vadd.f32 %v1481, %v1482
        %1484 = vadd.xlane.f32.xlu0 %v1483
        %v1485 = vpop.xlane.xlu0 %1484
        %v1486 = vmul.f32 %v1485, %v1144
        %v1488 = vrot.slane %v1486, 6
        %v1490 = vadd.f32 %v1466, %v1488
        %v1491 = vrot.slane %v1421, 5
        %v1492 = vrot.slane %v1422, 5
        %v1495 = vmul.f32 %v1120, %v1491
        %v1496 = vmul.f32 %v1121, %v1492
        %v1499 = vrot.slane %v1495, 3
        %v1500 = vrot.slane %v1496, 3
        %v1503 = vsub.f32 %v1439, %v1499
        %v1504 = vsub.f32 %v1440, %v1500
        %v1505 = vsel %vm1271, %v1503, 0.0
        %v1506 = vsel %vm1271, %v1504, 0.0
        %v1507 = vadd.f32 %v1505, %v1506
        %1508 = vadd.xlane.f32.xlu0 %v1507
        %v1509 = vpop.xlane.xlu0 %1508
        %v1510 = vmul.f32 %v1509, %v1144
        %v1511 = vadd.f32 %v1490, %v1510
        %v1512 = vrot.slane %v1421, 6
        %v1513 = vrot.slane %v1422, 6
        %v1516 = vmul.f32 %v1120, %v1512
        %v1517 = vmul.f32 %v1121, %v1513
        %v1520 = vrot.slane %v1516, 2
        %v1521 = vrot.slane %v1517, 2
        %v1524 = vsub.f32 %v1439, %v1520
        %v1525 = vsub.f32 %v1440, %v1521
        %v1526 = vsel %vm1293, %v1524, 0.0
        %v1527 = vsel %vm1293, %v1525, 0.0
        %v1528 = vadd.f32 %v1526, %v1527
        %1529 = vadd.xlane.f32.xlu0 %v1528
        %v1530 = vpop.xlane.xlu0 %1529
        %v1531 = vmul.f32 %v1530, %v1144
        %v1533 = vrot.slane %v1531, 2
        %v1535 = vadd.f32 %v1511, %v1533
        %v1538 = vrot.slane %v1099, 7
        %v1539 = vrot.slane %v1100, 7
        %v1542 = vsub.f32 %v1099, %v1538
        %v1543 = vsub.f32 %v1100, %v1539
        %v1544 = vmax.f32 %v1542, 0.0
        %v1545 = vmax.f32 %v1543, 0.0
        %v1546 = vand.u32 2147483647, %v1542
        %v1547 = vand.u32 2147483647, %v1543
        %v1548 = vsub.f32 0.0, %v1546
        %v1549 = vsub.f32 0.0, %v1547
        %v1550 = vmul.f32 %v1548, 1.442695
        %v1551 = vpow.pop %v1550
        %v1552 = vmul.f32 %v1549, 1.442695
        %v1553 = vpow.pop %v1552
        %v1554 = vadd.f32 %v1551, 1.0
        %v1555 = vadd.f32 %v1553, 1.0
        %v1556 = vlog2.pop %v1554
        %v1557 = vmul.f32 %v1556, 0.6931472
        %v1558 = vlog2.pop %v1555
        %v1559 = vmul.f32 %v1558, 0.6931472
        %v1560 = vadd.f32 %v1544, %v1557
        %v1561 = vadd.f32 %v1545, %v1559
        %v1564 = vrot.slane %v1542, 7
        %v1565 = vrot.slane %v1543, 7
        %v1568 = vmul.f32 %v1120, %v1564
        %v1569 = vmul.f32 %v1121, %v1565
        %v1572 = vrot.slane %v1568, 1
        %v1573 = vrot.slane %v1569, 1
        %v1576 = vsub.f32 %v1560, %v1572
        %v1577 = vsub.f32 %v1561, %v1573
        %v1578 = vsel %vm1160, %v1576, 0.0
        %v1579 = vsel %vm1160, %v1577, 0.0
        %v1580 = vadd.f32 %v1578, %v1579
        %1581 = vadd.xlane.f32.xlu0 %v1580
        %v1582 = vpop.xlane.xlu0 %1581
        %v1583 = vmul.f32 %v1582, %v1144
        %v1585 = vrot.slane %v1583, 4
        %v1587 = vadd.f32 %v1535, %v1585
        %v1588 = vmul.f32 %v1120, %v1542
        %v1589 = vmul.f32 %v1121, %v1543
        %v1590 = vsub.f32 %v1560, %v1588
        %v1591 = vsub.f32 %v1561, %v1589
        %v1592 = vsel %vm1246, %v1590, 0.0
        %v1593 = vsel %vm1246, %v1591, 0.0
        %v1594 = vadd.f32 %v1592, %v1593
        %1595 = vadd.xlane.f32.xlu0 %v1594
        %v1596 = vpop.xlane.xlu0 %1595
        %v1597 = vmul.f32 %v1596, %v1144
        %v1599 = vrot.slane %v1597, 6
        %v1601 = vadd.f32 %v1587, %v1599
        %v1602 = vrot.slane %v1542, 1
        %v1603 = vrot.slane %v1543, 1
        %v1606 = vmul.f32 %v1120, %v1602
        %v1607 = vmul.f32 %v1121, %v1603
        %v1610 = vrot.slane %v1606, 7
        %v1611 = vrot.slane %v1607, 7
        %v1614 = vsub.f32 %v1560, %v1610
        %v1615 = vsub.f32 %v1561, %v1611
        %v1616 = vsel %vm1271, %v1614, 0.0
        %v1617 = vsel %vm1271, %v1615, 0.0
        %v1618 = vadd.f32 %v1616, %v1617
        %1619 = vadd.xlane.f32.xlu0 %v1618
        %v1620 = vpop.xlane.xlu0 %1619
        %v1621 = vmul.f32 %v1620, %v1144
        %v1622 = vadd.f32 %v1601, %v1621
        %v1623 = vrot.slane %v1542, 2
        %v1624 = vrot.slane %v1543, 2
        %v1627 = vmul.f32 %v1120, %v1623
        %v1628 = vmul.f32 %v1121, %v1624
        %v1631 = vrot.slane %v1627, 6
        %v1632 = vrot.slane %v1628, 6
        %v1635 = vsub.f32 %v1560, %v1631
        %v1636 = vsub.f32 %v1561, %v1632
        %v1637 = vsel %vm1293, %v1635, 0.0
        %v1638 = vsel %vm1293, %v1636, 0.0
        %v1639 = vadd.f32 %v1637, %v1638
        %1640 = vadd.xlane.f32.xlu0 %v1639
        %v1641 = vpop.xlane.xlu0 %1640
        %v1642 = vmul.f32 %v1641, %v1144
        %v1644 = vrot.slane %v1642, 2
        %v1646 = vadd.f32 %v1622, %v1644
        %v1649 = vrot.slane %v1101, 7
        %v1650 = vrot.slane %v1102, 7
        %v1653 = vsub.f32 %v1101, %v1649
        %v1654 = vsub.f32 %v1102, %v1650
        %v1655 = vmax.f32 %v1653, 0.0
        %v1656 = vmax.f32 %v1654, 0.0
        %v1657 = vand.u32 2147483647, %v1653
        %v1658 = vand.u32 2147483647, %v1654
        %v1659 = vsub.f32 0.0, %v1657
        %v1660 = vsub.f32 0.0, %v1658
        %v1661 = vmul.f32 %v1659, 1.442695
        %v1662 = vpow.pop %v1661
        %v1663 = vmul.f32 %v1660, 1.442695
        %v1664 = vpow.pop %v1663
        %v1665 = vadd.f32 %v1662, 1.0
        %v1666 = vadd.f32 %v1664, 1.0
        %v1667 = vlog2.pop %v1665
        %v1668 = vmul.f32 %v1667, 0.6931472
        %v1669 = vlog2.pop %v1666
        %v1670 = vmul.f32 %v1669, 0.6931472
        %v1671 = vadd.f32 %v1655, %v1668
        %v1672 = vadd.f32 %v1656, %v1670
        %v1675 = vrot.slane %v1653, 3
        %v1676 = vrot.slane %v1654, 3
        %v1679 = vmul.f32 %v1120, %v1675
        %v1680 = vmul.f32 %v1121, %v1676
        %v1683 = vrot.slane %v1679, 5
        %v1684 = vrot.slane %v1680, 5
        %v1687 = vsub.f32 %v1671, %v1683
        %v1688 = vsub.f32 %v1672, %v1684
        %v1689 = vsel %vm1160, %v1687, 0.0
        %v1690 = vsel %vm1160, %v1688, 0.0
        %v1691 = vadd.f32 %v1689, %v1690
        %1692 = vadd.xlane.f32.xlu0 %v1691
        %v1693 = vpop.xlane.xlu0 %1692
        %v1694 = vmul.f32 %v1693, %v1144
        %v1696 = vrot.slane %v1694, 4
        %v1698 = vadd.f32 %v1646, %v1696
        %v1699 = vrot.slane %v1653, 4
        %v1700 = vrot.slane %v1654, 4
        %v1703 = vmul.f32 %v1120, %v1699
        %v1704 = vmul.f32 %v1121, %v1700
        %v1707 = vrot.slane %v1703, 4
        %v1708 = vrot.slane %v1704, 4
        %v1711 = vsub.f32 %v1671, %v1707
        %v1712 = vsub.f32 %v1672, %v1708
        %v1713 = vsel %vm1246, %v1711, 0.0
        %v1714 = vsel %vm1246, %v1712, 0.0
        %v1715 = vadd.f32 %v1713, %v1714
        %1716 = vadd.xlane.f32.xlu0 %v1715
        %v1717 = vpop.xlane.xlu0 %1716
        %v1718 = vmul.f32 %v1717, %v1144
        %v1720 = vrot.slane %v1718, 6
        %v1722 = vadd.f32 %v1698, %v1720
        %v1723 = vcombine.high %v1101, %v1102
        %v1725 = vunpack.c.l.s4 1966171168
        %v1726 = vunpack.c.0.s8 %v1725
        %v1727 = vlaneseq
        %v1728 = vshrl.u32 %v1727, 7
        %v1729 = vsub.s32 %v1726, %v1728
        %v1730 = vrot.slane %v1723, %v1729
        %v1732 = vunpack.c.l.s4 1966171168
        %v1733 = vunpack.c.0.s8 %v1732
        %v1734 = vlaneseq
        %v1735 = vshrl.u32 %v1734, 7
        %v1736 = vsub.s32 %v1733, %v1735
        %v1737 = vrot.slane %v1730, %v1736
        %v1739 = vsub.f32 %v1122, %v1737
        %v1740 = vmul.f32 %v1739, %v1739
        %v1742 = vlaneseq
        %v1743 = vshrl.u32 %v1742, 7
        %v1744 = vsub.s32 0, %v1743
        %v1745 = vrot.slane %v1740, %v1744
        %v1746 = vlaneseq
        %v1747 = vshrl.u32 %v1746, 7
        %v1748 = vsub.s32 1, %v1747
        %v1749 = vrot.slane %v1740, %v1748
        %v1752 = vsel %vm1138, %v1745, 0.0
        %v1753 = vsel %vm1138, %v1749, 0.0
        %v1754 = vadd.f32 %v1752, %v1753
        %1755 = vadd.xlane.f32.xlu0 %v1754
        %v1756 = vpop.xlane.xlu0 %1755
        %v1757 = vmul.f32 %v1756, %v1144
        %v1758 = vrot.slane %v1723, 5
        %v1759 = vrot.slane %v1758, 4
        %v1761 = vsub.f32 %v1123, %v1759
        %v1762 = vmul.f32 %v1761, %v1761
        %v1764 = vunpack.c.l.s4 572653568
        %v1765 = vunpack.c.0.s8 %v1764
        %v1766 = vlaneseq
        %v1767 = vshrl.u32 %v1766, 7
        %v1768 = vsub.s32 %v1765, %v1767
        %v1769 = vrot.slane %v1117, %v1768
        %v1771 = vmul.f32 %v1762, %v1769
        %v1773 = vlaneseq
        %v1774 = vshrl.u32 %v1773, 7
        %v1775 = vsub.s32 0, %v1774
        %v1776 = vrot.slane %v1771, %v1775
        %v1777 = vlaneseq
        %v1778 = vshrl.u32 %v1777, 7
        %v1779 = vsub.s32 4, %v1778
        %v1780 = vrot.slane %v1771, %v1779
        %v1783 = vsel %vm1138, %v1776, 0.0
        %v1784 = vsel %vm1138, %v1780, 0.0
        %v1785 = vadd.f32 %v1783, %v1784
        %1786 = vadd.xlane.f32.xlu0 %v1785
        %v1787 = vpop.xlane.xlu0 %1786
        %v1788 = vmul.f32 %v1787, %v1144
        %v1789 = vmul.f32 %v1788, %v1149
        %v1790 = vadd.f32 %v1789, 0.0
        %v1791 = vlaneseq
        %v1792 = vshrl.u32 %v1791, 7
        %v1793 = vsub.s32 1, %v1792
        %v1794 = vrot.slane %v1771, %v1793
        %v1795 = vlaneseq
        %v1796 = vshrl.u32 %v1795, 7
        %v1797 = vsub.s32 5, %v1796
        %v1798 = vrot.slane %v1771, %v1797
        %v1801 = vsel %vm1160, %v1794, 0.0
        %v1802 = vsel %vm1160, %v1798, 0.0
        %v1803 = vadd.f32 %v1801, %v1802
        %1804 = vadd.xlane.f32.xlu0 %v1803
        %v1805 = vpop.xlane.xlu0 %1804
        %v1806 = vmul.f32 %v1805, %v1144
        %v1808 = vrot.slane %v1149, 7
        %v1810 = vmul.f32 %v1806, %v1808
        %v1812 = vrot.slane %v1810, 1
        %v1814 = vadd.f32 %v1790, %v1812
        %v1816 = vunpack.c.l.s4 858984721
        %v1817 = vunpack.c.0.s8 %v1816
        %v1818 = vlaneseq
        %v1819 = vshrl.u32 %v1818, 7
        %v1820 = vsub.s32 %v1817, %v1819
        %v1821 = vrot.slane %v1117, %v1820
        %v1823 = vmul.f32 %v1762, %v1821
        %v1825 = vlaneseq
        %v1826 = vshrl.u32 %v1825, 7
        %v1827 = vsub.s32 2, %v1826
        %v1828 = vrot.slane %v1823, %v1827
        %v1829 = vlaneseq
        %v1830 = vshrl.u32 %v1829, 7
        %v1831 = vsub.s32 6, %v1830
        %v1832 = vrot.slane %v1823, %v1831
        %vm1835 = vcmask 1042434
        %v1836 = vsel %vm1835, %v1828, 0.0
        %v1837 = vsel %vm1835, %v1832, 0.0
        %v1838 = vadd.f32 %v1836, %v1837
        %1839 = vadd.xlane.f32.xlu0 %v1838
        %v1840 = vpop.xlane.xlu0 %1839
        %v1841 = vmul.f32 %v1840, %v1144
        %v1843 = vrot.slane %v1170, 7
        %v1845 = vmul.f32 %v1841, %v1843
        %v1847 = vrot.slane %v1845, 2
        %v1849 = vadd.f32 %v1814, %v1847
        %v1852 = vcombine.low %v1103, %v1104
        %v1853 = vrot.slane %v1852, 5
        %v1855 = vsub.f32 %v1123, %v1853
        %v1856 = vmul.f32 %v1855, %v1855
        %v1857 = vmul.f32 %v1856, %v1821
        %v1859 = vlaneseq
        %v1860 = vshrl.u32 %v1859, 7
        %v1861 = vsub.s32 3, %v1860
        %v1862 = vrot.slane %v1857, %v1861
        %v1863 = vlaneseq
        %v1864 = vshrl.u32 %v1863, 7
        %v1865 = vsub.s32 7, %v1864
        %v1866 = vrot.slane %v1857, %v1865
        %v1869 = vsel %vm1246, %v1862, 0.0
        %v1870 = vsel %vm1246, %v1866, 0.0
        %v1871 = vadd.f32 %v1869, %v1870
        %1872 = vadd.xlane.f32.xlu0 %v1871
        %v1873 = vpop.xlane.xlu0 %1872
        %v1874 = vmul.f32 %v1873, %v1144
        %v1875 = vrot.slane %v1170, 6
        %v1877 = vmul.f32 %v1874, %v1875
        %v1879 = vrot.slane %v1877, 3
        %v1881 = vadd.f32 %v1849, %v1879
        %v1883 = vlaneseq
        %v1884 = vshrl.u32 %v1883, 7
        %v1885 = vsub.s32 0, %v1884
        %v1886 = vrot.slane %v1124, %v1885
        %v1887 = vlaneseq
        %v1888 = vshrl.u32 %v1887, 7
        %v1889 = vsub.s32 1, %v1888
        %v1890 = vrot.slane %v1124, %v1889
        %v1893 = vsub.f32 %v1103, %v1886
        %v1894 = vsub.f32 %v1104, %v1890
        %v1895 = vand.u32 2147483647, %v1893
        %vm1896 = vcmp.le.f32.partialorder %v1895, 0.7853982
        %vm1897 = vcmp.lt.s32.totalorder %v1893, 0
        %v1898 = vand.u32 %v1893, 2139095040
        %v1899 = vshrl.u32 %v1898, 23
        %v1900 = vsub.s32 %v1899, 127
        %v1901 = vand.u32 2147483647, %v1893
        %v1902 = vand.u32 %v1901, 8388607
        %v1903 = vor.u32 %v1902, 8388608
        %v1904 = vsub.s32 0, %v1903
        %v1905 = vadd.s32 %v1900, 1
        %vm1906 = vcmp.gt.s32.totalorder %v1905, 0
        %v1907 = vsel %vm1906, %v1905, 0
        %v1908 = vshrl.u32 %v1907, 5
        %v1909 = vand.u32 %v1907, 31
        %v1910 = vsub.s32 32, %v1909
        %v1911 = vshrl.u32 683565275, %v1910
        %v1912 = vshll.u32 683565275, %v1909
        %v1913 = vshrl.u32 2475754826, %v1910
        %v1914 = vor.u32 %v1912, %v1913
        %v1915 = vshll.u32 2475754826, %v1909
        %v1916 = vshrl.u32 2131351028, %v1910
        %v1917 = vor.u32 %v1915, %v1916
        %v1918 = vshll.u32 2131351028, %v1909
        %v1919 = vshrl.u32 2102212464, %v1910
        %v1920 = vor.u32 %v1918, %v1919
        %v1921 = vshll.u32 2102212464, %v1909
        %v1922 = vshrl.u32 920167782, %v1910
        %v1923 = vor.u32 %v1921, %v1922
        %v1924 = vshll.u32 920167782, %v1909
        %v1925 = vshrl.u32 1326507024, %v1910
        %v1926 = vor.u32 %v1924, %v1925
        %vm1927 = vcmp.lt.s32.totalorder %v1908, 1
        %vm1928 = vcmp.lt.s32.totalorder %v1908, 2
        %vm1929 = vcmp.lt.s32.totalorder %v1908, 3
        %vm1930 = vcmp.lt.s32.totalorder %v1908, 4
        %v1931 = vsel %vm1927, %v1911, %v1914
        %v1932 = vsel %vm1930, %v1920, 2102212464
        %v1933 = vsel %vm1929, %v1917, %v1932
        %v1934 = vsel %vm1928, %v1931, %v1933
        %v1935 = vsel %vm1927, %v1914, %v1917
        %v1936 = vsel %vm1930, %v1923, 920167782
        %v1937 = vsel %vm1929, %v1920, %v1936
        %v1938 = vsel %vm1928, %v1935, %v1937
        %v1939 = vsel %vm1927, %v1917, %v1920
        %v1940 = vsel %vm1930, %v1926, 1326507024
        %v1941 = vsel %vm1929, %v1923, %v1940
        %v1942 = vsel %vm1928, %v1939, %v1941
        %v1943 = vshll.u32 %v1903, 8
        %v1944 = vmul.u32.u64.compose %v1943, %v1942
        %v1945 = vextract.low.u32 %v1944
        %v1946 = vextract.high.u32 %v1944
        %v1947 = vmul.u32.u64.compose %v1943, %v1938
        %v1948 = vextract.low.u32 %v1947
        %v1949 = vextract.high.u32 %v1947
        %v1950 = vmul.u32 %v1943, %v1934
        %v1951 = vadd.s32 %v1946, %v1948
        %vm1952 = vc.u32 %v1946, %v1948
        %v1953 = vadd.s32 %v1949, 1
        %v1954 = vsel %vm1952, %v1953, %v1949
        %v1955 = vadd.s32 %v1950, %v1954
        %v1956 = vadd.s32 %v1955, 536870912
        %v1957 = vshrl.u32 %v1956, 30
        %v1958 = vshll.u32 %v1957, 30
        %v1959 = vsub.s32 %v1955, %v1958
        %vm1960 = vcmp.lt.s32.totalorder %v1959, 0
        %v1961 = vsub.s32 0, %v1959
        %v1962 = vsel %vm1960, %v1961, %v1959
        %v1963 = vclz %v1962
        %v1964 = vsub.s32 %v1963, 2
        %vm1965 = vcmp.gt.s32.totalorder 0, %v1964
        %v1966 = vsel %vm1965, 0, %v1964
        %v1967 = vsub.s32 32, %v1966
        %v1968 = vshll.u32 %v1959, %v1966
        %v1969 = vshrl.u32 %v1951, %v1967
        %v1970 = vor.u32 %v1968, %v1969
        %v1971 = vsub.s32 4294967266, %v1966
        %v1972 = vadd.s32 %v1971, 127
        %v1973 = vshll.u32 %v1972, 23
        %v1974 = vor.u32 4788187, %v1973
        %v1975 = vand.u32 2147483647, %v1974
        %v1977 = vcvt.s32.f32 %v1970
        %v1978 = vmul.f32 %v1977, %v1975
        %v1979 = vxor.u32 %v1978, 2147483648
        %v1980 = vsel %vm1897, %v1979, %v1978
        %v1981 = vsub.s32 4, %v1957
        %v1982 = vsel %vm1897, %v1981, %v1957
        %v1983 = vsel %vm1896, %v1893, %v1980
        %v1984 = vsel %vm1896, 0, %v1982
        %v1985 = vcosq.f32.pop %v1983
        %v1986 = vsinq.f32.pop %v1983
        %vm1987 = vweird.f32 %v1893
        %v1988 = vadd.s32 %v1984, 3
        %v1989 = vand.u32 %v1988, 3
        %vm1990 = vcmp.lt.s32.totalorder %v1989, 2
        %vm1991 = vcmp.eq.s32.totalorder %v1989, 0
        %v1992 = vxor.u32 %v1986, 2147483648
        %v1993 = vsel %vm1991, %v1985, %v1992
        %vm1994 = vcmp.eq.s32.totalorder %v1989, 2
        %v1995 = vxor.u32 %v1985, 2147483648
        %v1996 = vsel %vm1994, %v1995, %v1986
        %v1997 = vsel %vm1990, %v1993, %v1996
        %v1998 = vsel %vm1987, nan, %v1997
        %v1999 = vand.u32 2147483647, %v1894
        %vm2000 = vcmp.le.f32.partialorder %v1999, 0.7853982
        %vm2001 = vcmp.lt.s32.totalorder %v1894, 0
        %v2002 = vand.u32 %v1894, 2139095040
        %v2003 = vshrl.u32 %v2002, 23
        %v2004 = vsub.s32 %v2003, 127
        %v2005 = vand.u32 2147483647, %v1894
        %v2006 = vand.u32 %v2005, 8388607
        %v2007 = vor.u32 %v2006, 8388608
        %v2008 = vsub.s32 0, %v2007
        %v2009 = vadd.s32 %v2004, 1
        %vm2010 = vcmp.gt.s32.totalorder %v2009, 0
        %v2011 = vsel %vm2010, %v2009, 0
        %v2012 = vshrl.u32 %v2011, 5
        %v2013 = vand.u32 %v2011, 31
        %v2014 = vsub.s32 32, %v2013
        %v2015 = vshrl.u32 683565275, %v2014
        %v2016 = vshll.u32 683565275, %v2013
        %v2017 = vshrl.u32 2475754826, %v2014
        %v2018 = vor.u32 %v2016, %v2017
        %v2019 = vshll.u32 2475754826, %v2013
        %v2020 = vshrl.u32 2131351028, %v2014
        %v2021 = vor.u32 %v2019, %v2020
        %v2022 = vshll.u32 2131351028, %v2013
        %v2023 = vshrl.u32 2102212464, %v2014
        %v2024 = vor.u32 %v2022, %v2023
        %v2025 = vshll.u32 2102212464, %v2013
        %v2026 = vshrl.u32 920167782, %v2014
        %v2027 = vor.u32 %v2025, %v2026
        %v2028 = vshll.u32 920167782, %v2013
        %v2029 = vshrl.u32 1326507024, %v2014
        %v2030 = vor.u32 %v2028, %v2029
        %vm2031 = vcmp.lt.s32.totalorder %v2012, 1
        %vm2032 = vcmp.lt.s32.totalorder %v2012, 2
        %vm2033 = vcmp.lt.s32.totalorder %v2012, 3
        %vm2034 = vcmp.lt.s32.totalorder %v2012, 4
        %v2035 = vsel %vm2031, %v2015, %v2018
        %v2036 = vsel %vm2034, %v2024, 2102212464
        %v2037 = vsel %vm2033, %v2021, %v2036
        %v2038 = vsel %vm2032, %v2035, %v2037
        %v2039 = vsel %vm2031, %v2018, %v2021
        %v2040 = vsel %vm2034, %v2027, 920167782
        %v2041 = vsel %vm2033, %v2024, %v2040
        %v2042 = vsel %vm2032, %v2039, %v2041
        %v2043 = vsel %vm2031, %v2021, %v2024
        %v2044 = vsel %vm2034, %v2030, 1326507024
        %v2045 = vsel %vm2033, %v2027, %v2044
        %v2046 = vsel %vm2032, %v2043, %v2045
        %v2047 = vshll.u32 %v2007, 8
        %v2048 = vmul.u32.u64.compose %v2047, %v2046
        %v2049 = vextract.low.u32 %v2048
        %v2050 = vextract.high.u32 %v2048
        %v2051 = vmul.u32.u64.compose %v2047, %v2042
        %v2052 = vextract.low.u32 %v2051
        %v2053 = vextract.high.u32 %v2051
        %v2054 = vmul.u32 %v2047, %v2038
        %v2055 = vadd.s32 %v2050, %v2052
        %vm2056 = vc.u32 %v2050, %v2052
        %v2057 = vadd.s32 %v2053, 1
        %v2058 = vsel %vm2056, %v2057, %v2053
        %v2059 = vadd.s32 %v2054, %v2058
        %v2060 = vadd.s32 %v2059, 536870912
        %v2061 = vshrl.u32 %v2060, 30
        %v2062 = vshll.u32 %v2061, 30
        %v2063 = vsub.s32 %v2059, %v2062
        %vm2064 = vcmp.lt.s32.totalorder %v2063, 0
        %v2065 = vsub.s32 0, %v2063
        %v2066 = vsel %vm2064, %v2065, %v2063
        %v2067 = vclz %v2066
        %v2068 = vsub.s32 %v2067, 2
        %vm2069 = vcmp.gt.s32.totalorder 0, %v2068
        %v2070 = vsel %vm2069, 0, %v2068
        %v2071 = vsub.s32 32, %v2070
        %v2072 = vshll.u32 %v2063, %v2070
        %v2073 = vshrl.u32 %v2055, %v2071
        %v2074 = vor.u32 %v2072, %v2073
        %v2075 = vsub.s32 4294967266, %v2070
        %v2076 = vadd.s32 %v2075, 127
        %v2077 = vshll.u32 %v2076, 23
        %v2078 = vor.u32 4788187, %v2077
        %v2079 = vand.u32 2147483647, %v2078
        %v2081 = vcvt.s32.f32 %v2074
        %v2082 = vmul.f32 %v2081, %v2079
        %v2083 = vxor.u32 %v2082, 2147483648
        %v2084 = vsel %vm2001, %v2083, %v2082
        %v2085 = vsub.s32 4, %v2061
        %v2086 = vsel %vm2001, %v2085, %v2061
        %v2087 = vsel %vm2000, %v1894, %v2084
        %v2088 = vsel %vm2000, 0, %v2086
        %v2089 = vcosq.f32.pop %v2087
        %v2090 = vsinq.f32.pop %v2087
        %vm2091 = vweird.f32 %v1894
        %v2092 = vadd.s32 %v2088, 3
        %v2093 = vand.u32 %v2092, 3
        %vm2094 = vcmp.lt.s32.totalorder %v2093, 2
        %vm2095 = vcmp.eq.s32.totalorder %v2093, 0
        %v2096 = vxor.u32 %v2090, 2147483648
        %v2097 = vsel %vm2095, %v2089, %v2096
        %vm2098 = vcmp.eq.s32.totalorder %v2093, 2
        %v2099 = vxor.u32 %v2089, 2147483648
        %v2100 = vsel %vm2098, %v2099, %v2090
        %v2101 = vsel %vm2094, %v2097, %v2100
        %v2102 = vsel %vm2091, nan, %v2101
        %v2103 = vmul.f32 %v1998, %v1998
        %v2104 = vmul.f32 %v2102, %v2102
        %v2105 = vsel %vm1160, %v2103, 0.0
        %v2106 = vsel %vm1160, %v2104, 0.0
        %v2107 = vadd.f32 %v2105, %v2106
        %2108 = vadd.xlane.f32.xlu0 %v2107
        %v2109 = vpop.xlane.xlu0 %2108
        %v2110 = vmul.f32 %v2109, %v1144
        %v2112 = vunpack.c.l.s4 1966171168
        %v2113 = vunpack.c.0.s8 %v2112
        %v2114 = vlaneseq
        %v2115 = vshrl.u32 %v2114, 7
        %v2116 = vsub.s32 %v2113, %v2115
        %v2117 = vrot.slane %v1852, %v2116
        %v2119 = vunpack.c.l.s4 1966171168
        %v2120 = vunpack.c.0.s8 %v2119
        %v2121 = vlaneseq
        %v2122 = vshrl.u32 %v2121, 7
        %v2123 = vsub.s32 %v2120, %v2122
        %v2124 = vrot.slane %v2117, %v2123
        %v2125 = vcombine.high %v2124, %v2124
        %v2127 = vsub.f32 %v1125, %v2125
        %v2128 = vmul.f32 %v2127, %v2127
        %v2130 = vlaneseq
        %v2131 = vshrl.u32 %v2130, 7
        %v2132 = vsub.s32 0, %v2131
        %v2133 = vrot.slane %v2128, %v2132
        %v2134 = vlaneseq
        %v2135 = vshrl.u32 %v2134, 7
        %v2136 = vsub.s32 1, %v2135
        %v2137 = vrot.slane %v2128, %v2136
        %v2140 = vsel %vm1138, %v2133, 0.0
        %v2141 = vsel %vm1138, %v2137, 0.0
        %v2142 = vadd.f32 %v2140, %v2141
        %2143 = vadd.xlane.f32.xlu0 %v2142
        %v2144 = vpop.xlane.xlu0 %2143
        %v2145 = vmul.f32 %v2144, %v1144
        %v2147 = vunpack.c.l.s4 1983009808
        %v2148 = vunpack.c.0.s8 %v2147
        %v2149 = vlaneseq
        %v2150 = vshrl.u32 %v2149, 7
        %v2151 = vsub.s32 %v2148, %v2150
        %v2152 = vrot.slane %v1852, %v2151
        %v2153 = vcombine.high %v2152, %v2152
        %v2154 = vrot.slane %v2153, 7
        %v2155 = vrot.slane %v2154, 2
        %v2157 = vsub.f32 %v1126, %v2155
        %v2158 = vmul.f32 %v2157, %v2157
        %v2159 = vmul.f32 %v2158, %v1117
        %v2161 = vlaneseq
        %v2162 = vshrl.u32 %v2161, 7
        %v2163 = vsub.s32 0, %v2162
        %v2164 = vrot.slane %v2159, %v2163
        %v2165 = vlaneseq
        %v2166 = vshrl.u32 %v2165, 7
        %v2167 = vsub.s32 2, %v2166
        %v2168 = vrot.slane %v2159, %v2167
        %v2171 = vsel %vm1138, %v2164, 0.0
        %v2172 = vsel %vm1138, %v2168, 0.0
        %v2173 = vadd.f32 %v2171, %v2172
        %2174 = vadd.xlane.f32.xlu0 %v2173
        %v2175 = vpop.xlane.xlu0 %2174
        %v2176 = vmul.f32 %v2175, %v1144
        %v2177 = vmul.f32 %v2176, %v1149
        %v2178 = vadd.f32 %v2177, 0.0
        %v2179 = vcombine.high %v1103, %v1104
        %v2181 = vunpack.c.l.s4 1983009808
        %v2182 = vunpack.c.0.s8 %v2181
        %v2183 = vlaneseq
        %v2184 = vshrl.u32 %v2183, 7
        %v2185 = vsub.s32 %v2182, %v2184
        %v2186 = vrot.slane %v2179, %v2185
        %v2187 = vrot.slane %v2186, 7
        %v2189 = vsub.f32 %v1126, %v2187
        %v2190 = vmul.f32 %v2189, %v2189
        %v2191 = vmul.f32 %v2190, %v1117
        %v2193 = vlaneseq
        %v2194 = vshrl.u32 %v2193, 7
        %v2195 = vsub.s32 1, %v2194
        %v2196 = vrot.slane %v2191, %v2195
        %v2197 = vlaneseq
        %v2198 = vshrl.u32 %v2197, 7
        %v2199 = vsub.s32 3, %v2198
        %v2200 = vrot.slane %v2191, %v2199
        %v2203 = vsel %vm1160, %v2196, 0.0
        %v2204 = vsel %vm1160, %v2200, 0.0
        %v2205 = vadd.f32 %v2203, %v2204
        %2206 = vadd.xlane.f32.xlu0 %v2205
        %v2207 = vpop.xlane.xlu0 %2206
        %v2208 = vmul.f32 %v2207, %v1144
        %v2209 = vmul.f32 %v2208, %v1170
        %v2211 = vrot.slane %v2209, 1
        %v2213 = vadd.f32 %v2178, %v2211
        %v2214 = vmul.f32 %v1757, 5.0
        %v2215 = vmul.f32 %v1881, 0.5
        %v2216 = vmul.f32 %v2213, 0.1
        %2218 = vset.pattern.permute.xlu0 0
        %2219 = vperm.xlu0 %2218, %v1256
        %v2220 = vpop.permute.xlu0 %2219
        %2222 = vst [vmem:[%s574 - $0x1] sm:$0x2] %v2220
        %2224 = vset.pattern.permute.xlu0 0
        %2225 = vperm.xlu0 %2224, %v1722
        %v2226 = vpop.permute.xlu0 %2225
        %2228 = vst [vmem:[%s574 - $0x4] sm:$0x20] %v2226
        %2229 = vst [vmem:[%s574 + $0x2] sm:$0x1] %v2214
        %2231 = vset.pattern.permute.xlu0 0
        %2232 = vperm.xlu0 %2231, %v2215
        %v2233 = vpop.permute.xlu0 %2232
        %2235 = vst [vmem:[%s574 + $0x3] sm:$0x1] %v2233
        %2236 = vst [vmem:[%s574 + $0x3] sm:$0x2] %v2110
        %2237 = vst [vmem:[%s574 + $0x5] sm:$0x1] %v2145
        %2239 = vset.pattern.permute.xlu0 0
        %2240 = vperm.xlu0 %2239, %v2216
        %v2241 = vpop.permute.xlu0 %2240
        %2243 = vst [vmem:[%s574 + $0x6] sm:$0x1] %v2241
        %2244 = vst [vmem:[%s574 + $0x7] sm:$0x1] 0.0
        %s2245 = sand.u32 %s293, 1
        %s2246 = scalar_lea.sflag [#allocation4], %s2245
        %s2247 = sand.u32 %s293, 1
        %s2248 = smul.addr %s2247, 8
        %s2249 = scalar_lea.vmem [#allocation10], %s2248
        %p2250 = scmp.lt.s32.totalorder %s35, 1
        %s2251 = scalar_select %p2250, %s35, 1
        %s2252 = smul.addr %s2251, 12
        %s2253 = smul.addr %s2252, 8
        %s2254 = scalar_lea.vmem %s11, %s2253
        // Predicated region
        $region77: #{tpu_custom_call.1} parent=59 // pred_check
          %p2255 = pneg %p303
        $region78: #{tpu_custom_call.1} parent=59 // pred_check_branch
          %2257 = sbr.rel (%p2255) target = $region80
        $region79: #{tpu_custom_call.1} parent=59 // pred_region
          %s2259 = ssub.s32 128, 128
          %2260 = vsyncadd %s2246, %s2259
          %s2261 = smul.addr %s35, 128
          %s2262 = scalar_lea.hbm %s10, %s2261
          %s2264 = sshll.u32 %s2249, 4
          %s2265 = int_to_ptr.vmem [resolvable:$true] %s2264
          %2267 = dma.vmem_to_hbm [thread:$0]  %s2265, 128, %s2262, %s2246
        $region80: #{tpu_custom_call.1} parent=59 // pred_fallthru
          _
        // Predicated region
        $region81: #{tpu_custom_call.1} parent=59 // pred_check
          %p2268 = pneg %p329
        $region82: #{tpu_custom_call.1} parent=59 // pred_check_branch
          %2270 = sbr.rel (%p2268) target = $region84
        $region83: #{tpu_custom_call.1} parent=59 // pred_region
          _
        $region84: #{tpu_custom_call.1} parent=59 // pred_fallthru
          _
      $region60: #{tpu_custom_call.1} parent=5 // pred_fallthru
        _
      %p2271 = scmp.le.s32.totalorder 2, %s30
      // Predicated region
      $region85: #{tpu_custom_call.1} parent=5 // pred_check
        %p2272 = pneg %p2271
      $region86: #{tpu_custom_call.1} parent=5 // pred_check_branch
        %2274 = sbr.rel (%p2272) target = $region88
      $region87: #{tpu_custom_call.1} parent=5 // pred_region
        %s2275 = ssub.s32 %s30, 2
        // Predicated region
        $region89: #{tpu_custom_call.1} parent=87 // pred_check
          %p2276 = pneg %p309
        $region90: #{tpu_custom_call.1} parent=87 // pred_check_branch
          %2278 = sbr.rel (%p2276) target = $region92
        $region91: #{tpu_custom_call.1} parent=87 // pred_region
          %s2279 = sand.u32 %s294, 1
          %s2280 = scalar_lea.sflag [#allocation4], %s2279
          %s2281 = sand.u32 %s294, 1
          %s2282 = smul.addr %s2281, 8
          %s2283 = scalar_lea.vmem [#allocation10], %s2282
          %2284 = dma.done %s2280, 128
        $region92: #{tpu_custom_call.1} parent=87 // pred_fallthru
          _
        // Predicated region
        $region93: #{tpu_custom_call.1} parent=87 // pred_check
          %p2285 = pneg %p335
        $region94: #{tpu_custom_call.1} parent=87 // pred_check_branch
          %2287 = sbr.rel (%p2285) target = $region96
        $region95: #{tpu_custom_call.1} parent=87 // pred_region
          %p2288 = scmp.lt.s32.totalorder %s36, 1
          %s2289 = scalar_select %p2288, %s36, 1
          %s2290 = smul.addr %s2289, 12
          %s2291 = smul.addr %s2290, 8
          %s2292 = scalar_lea.vmem %s11, %s2291
        $region96: #{tpu_custom_call.1} parent=87 // pred_fallthru
          _
      $region88: #{tpu_custom_call.1} parent=5 // pred_fallthru
        _
    $region6: #{tpu_custom_call.1} parent=1 // loop_footer
      %s34 = sadd.s32 1, %s30
    $region7: #{tpu_custom_call.1} parent=1 // loop_footer_branch
      %29 = sbr.rel target = $region3
    $region8: #{tpu_custom_call.1} parent=1 // loop_exit
      _
    %2293 = vsyncpa [#allocation3], 1
    %s2294 = scalar_lea.sflag [#allocation3], 1
    %2295 = vsyncpa %s2294, 1
    %2296 = vsyncpa [#allocation6], 1
    %s2297 = scalar_lea.sflag [#allocation6], 1
    %2298 = vsyncpa %s2297, 1
    %2299 = vsyncpa [#allocation9], 1
    %s2300 = scalar_lea.sflag [#allocation9], 1
    %2301 = vsyncpa %s2300, 1
    %2302 = vsyncpa [#allocation4], 1
    %s2303 = scalar_lea.sflag [#allocation4], 1
    %2304 = vsyncpa %s2303, 1

</llo_original>
